<compile_context>
chip_gen: v7x
topology: tpu7x:2x2x1
jax: 0.10.0
libtpu: 0.0.40
codegen_flags: <defaults>
</compile_context>

<pallas_src>
import jax
import jax.numpy as jnp
import numpy as np
from jax.experimental import pallas as pl
from jax.experimental.pallas import tpu as pltpu

EMBEDDING_SIZE = 100
LSTM_SIZE = 200

# Set to jnp.bfloat16 for native-MXU throughput on v5e/v6e/v7x (keep f32
# accumulation via preferred_element_type; relax the test tolerance to ~1e-2).
MM_DTYPE = jnp.float32


def _round_up(x, m):
    return ((x + m - 1) // m) * m


def _mm(x):
    return x.astype(MM_DTYPE)


def lstm_lm_kernel(x_ref, w_ih_ref, w_hh_ref, b_ref, w_fc_ref, b_fc_ref,
                   out_ref, xproj_ref):
    """Single-invocation kernel: whole (padded) sequence resident in VMEM.

    x_ref     : (T*Bp, Ep)   time-major embeddings (row t*Bp+b), zero-padded
    w_ih_ref  : (Ep, 4*Hp)   input->gates weights, gate-blocked & transposed
    w_hh_ref  : (Hp, 4*Hp)   hidden->gates weights, gate-blocked & transposed
    b_ref     : (1, 4*Hp)    b_ih + b_hh, gate-blocked
    w_fc_ref  : (Hp, Mp)     final linear weights (transposed)
    b_fc_ref  : (1, Mp)      final linear bias
    out_ref   : (Bp, Mp)
    xproj_ref : (T*Bp, 4*Hp) VMEM scratch holding the hoisted input projection
    """
    Bp = out_ref.shape[0]
    Hp = w_hh_ref.shape[0]
    T = x_ref.shape[0] // Bp

    # Hoisted input projection for every timestep: one big MXU matmul.
    xproj_ref[...] = (
        jnp.dot(_mm(x_ref[...]), _mm(w_ih_ref[...]),
                preferred_element_type=jnp.float32)
        + b_ref[...])

    def step(t, carry):
        h, c = carry
        row0 = pl.multiple_of(t * Bp, Bp)
        gates = xproj_ref[pl.ds(row0, Bp), :] + jnp.dot(
            _mm(h), _mm(w_hh_ref[...]), preferred_element_type=jnp.float32)
        # Gate blocks are Hp(=256)-wide -> 128-lane-aligned static slices.
        i_g = jax.nn.sigmoid(gates[:, 0 * Hp:1 * Hp])
        f_g = jax.nn.sigmoid(gates[:, 1 * Hp:2 * Hp])
        g_g = jnp.tanh(gates[:, 2 * Hp:3 * Hp])
        o_g = jax.nn.sigmoid(gates[:, 3 * Hp:4 * Hp])
        c_new = f_g * c + i_g * g_g
        h_new = o_g * jnp.tanh(c_new)
        return h_new, c_new

    h0 = jnp.zeros((Bp, Hp), jnp.float32)
    c0 = jnp.zeros((Bp, Hp), jnp.float32)
    _, c = jax.lax.fori_loop(0, T, step, (h0, c0), unroll=True)

    # fc(dropout(c.squeeze(0))) -- dropout is identity in eval mode.
    out_ref[...] = (jnp.dot(_mm(c), _mm(w_fc_ref[...]),
                            preferred_element_type=jnp.float32)
                    + b_fc_ref[...]).astype(out_ref.dtype)


def _pack_gate_weights_t(w, H, Hp, in_dim, in_pad):
    """(4H, in_dim) PyTorch gate-stacked weights -> (in_pad, 4*Hp): transposed,
    each gate block zero-padded to Hp so gate slices become lane-aligned."""
    out = jnp.zeros((in_pad, 4 * Hp), jnp.float32)
    for g in range(4):
        out = out.at[:in_dim, g * Hp:g * Hp + H].set(w[g * H:(g + 1) * H, :].T)
    return out


def _pack_gate_bias(b, H, Hp):
    out = jnp.zeros((1, 4 * Hp), jnp.float32)
    for g in range(4):
        out = out.at[0, g * Hp:g * Hp + H].set(b[g * H:(g + 1) * H])
    return out


@jax.jit
def lstm_language_module_forward(token_ids, params):
    """token_ids: (B, T) int32.  Returns (B, message_size) float32."""
    emb = params["emb"]          # (V, E)
    w_ih = params["w_ih"]        # (4H, E)  PyTorch layout, gate order i,f,g,o
    w_hh = params["w_hh"]        # (4H, H)
    b_ih = params["b_ih"]        # (4H,)
    b_hh = params["b_hh"]        # (4H,)
    w_fc = params["w_fc"]        # (M, H)
    b_fc = params["b_fc"]        # (M,)

    B, T = token_ids.shape
    E = emb.shape[1]
    H = w_hh.shape[1]
    M = w_fc.shape[0]

    # vreg-friendly padded sizes.
    Ep = _round_up(E, 128)
    Hp = _round_up(H, 128)
    Mp = _round_up(M, 128)
    Bp = _round_up(B, 8)

    # Embedding lookup (glue): tokens.transpose(0,1) -> time-major (T, B, E),
    # zero-padded to (T, Bp, Ep) and flattened into one MXU-friendly slab.
    word_emb = jnp.take(emb, token_ids.T, axis=0).astype(jnp.float32)
    x = jnp.zeros((T, Bp, Ep), jnp.float32).at[:, :B, :E].set(word_emb)
    x = x.reshape(T * Bp, Ep)

    # Gate-blocked, zero-padded, transposed weights (padding leaves the valid
    # h/c lanes exactly zero throughout the recurrence).
    w_ih_p = _pack_gate_weights_t(w_ih, H, Hp, E, Ep)              # (Ep, 4Hp)
    w_hh_p = _pack_gate_weights_t(w_hh, H, Hp, H, Hp)              # (Hp, 4Hp)
    b_p = _pack_gate_bias(b_ih + b_hh, H, Hp)                      # (1, 4Hp)
    w_fc_p = jnp.zeros((Hp, Mp), jnp.float32).at[:H, :M].set(w_fc.T)
    b_fc_p = jnp.zeros((1, Mp), jnp.float32).at[0, :M].set(b_fc)

    out_pad = pl.pallas_call(
        lstm_lm_kernel,
        out_shape=jax.ShapeDtypeStruct((Bp, Mp), jnp.float32),
        grid=(1,),
        in_specs=[
            pl.BlockSpec((T * Bp, Ep), lambda i: (0, 0)),
            pl.BlockSpec((Ep, 4 * Hp), lambda i: (0, 0)),
            pl.BlockSpec((Hp, 4 * Hp), lambda i: (0, 0)),
            pl.BlockSpec((1, 4 * Hp), lambda i: (0, 0)),
            pl.BlockSpec((Hp, Mp), lambda i: (0, 0)),
            pl.BlockSpec((1, Mp), lambda i: (0, 0)),
        ],
        out_specs=pl.BlockSpec((Bp, Mp), lambda i: (0, 0)),
        scratch_shapes=[pltpu.VMEM((T * Bp, 4 * Hp), jnp.float32)],
        compiler_params=pltpu.CompilerParams(
            dimension_semantics=("arbitrary",),   # recurrence => sequential
        ),
    )(x, w_ih_p, w_hh_p, b_p, w_fc_p, b_fc_p)

    return out_pad[:B, :M]


def init_params(key, vocabulary_size, message_size):
    E, H = EMBEDDING_SIZE, LSTM_SIZE
    ks = jax.random.split(key, 7)
    k_lstm = 1.0 / np.sqrt(H)
    emb = jax.random.normal(ks[0], (vocabulary_size, E), jnp.float32)
    w_ih = jax.random.uniform(ks[1], (4 * H, E), jnp.float32, -k_lstm, k_lstm)
    w_hh = jax.random.uniform(ks[2], (4 * H, H), jnp.float32, -k_lstm, k_lstm)
    b_ih = jax.random.uniform(ks[3], (4 * H,), jnp.float32, -k_lstm, k_lstm)
    b_hh = jax.random.uniform(ks[4], (4 * H,), jnp.float32, -k_lstm, k_lstm)
    w_fc = jax.random.uniform(ks[5], (message_size, H), jnp.float32, -k_lstm, k_lstm)
    b_fc = jax.random.uniform(ks[6], (message_size,), jnp.float32, -k_lstm, k_lstm)
    return {"emb": emb, "w_ih": w_ih, "w_hh": w_hh, "b_ih": b_ih,
            "b_hh": b_hh, "w_fc": w_fc, "b_fc": b_fc}


def reference_forward(token_ids, params):
    """Pure-JAX f32 reference (eval-mode dropout), unpadded PyTorch layout."""
    H = LSTM_SIZE
    emb = jnp.take(params["emb"], token_ids.T, axis=0).astype(jnp.float32)  # (T,B,E)
    B = token_ids.shape[0]
    h = jnp.zeros((B, H), jnp.float32)
    c = jnp.zeros((B, H), jnp.float32)
    w_ih_t = params["w_ih"].T
    w_hh_t = params["w_hh"].T
    b = (params["b_ih"] + params["b_hh"])[None, :]
    for t in range(emb.shape[0]):
        gates = emb[t] @ w_ih_t + h @ w_hh_t + b
        i = jax.nn.sigmoid(gates[:, 0 * H:1 * H])
        f = jax.nn.sigmoid(gates[:, 1 * H:2 * H])
        g = jnp.tanh(gates[:, 2 * H:3 * H])
        o = jax.nn.sigmoid(gates[:, 3 * H:4 * H])
        c = f * c + i * g
        h = o * jnp.tanh(c)
    return c @ params["w_fc"].T + params["b_fc"][None, :]


if __name__ == "__main__":
    vocabulary_size = 50
    message_size = 16
    batch = 4
    seq_len = 8

    key = jax.random.PRNGKey(0)
    k_params, k_tok = jax.random.split(key)
    params = init_params(k_params, vocabulary_size, message_size)
    token_ids = jax.random.randint(k_tok, (batch, seq_len), 0, vocabulary_size,
                                   dtype=jnp.int32)

    out = lstm_language_module_forward(token_ids, params)
    out = jax.block_until_ready(out)

    ref = reference_forward(token_ids, params)
    np.testing.assert_allclose(np.asarray(out), np.asarray(ref),
                               rtol=1e-4, atol=1e-4)
    print("KERNEL_OK")
</pallas_src>

<mosaic_0001>
module attributes {stable_mosaic.version = 11 : i64} {
  func.func @lstm_lm_kernel(%arg0: i32, %arg1: memref<64x128xf32, #tpu.memory_space<vmem>>, %arg2: memref<128x1024xf32, #tpu.memory_space<vmem>>, %arg3: memref<256x1024xf32, #tpu.memory_space<vmem>>, %arg4: memref<1x1024xf32, #tpu.memory_space<vmem>>, %arg5: memref<256x128xf32, #tpu.memory_space<vmem>>, %arg6: memref<1x128xf32, #tpu.memory_space<vmem>>, %arg7: memref<8x128xf32, #tpu.memory_space<vmem>>, %arg8: memref<64x1024xf32, #tpu.memory_space<vmem>>) attributes {dimension_semantics = [#tpu.dimension_semantics<arbitrary>], iteration_bounds = array<i64: 1>, scalar_prefetch = 0 : i64, scratch_operands = 1 : i64, tpu.core_type = #tpu.core_type<tc>, window_params = [{pipeline_mode = #tpu.pipeline_mode<synchronous>, transform_indices = @transform_0, window_bounds = array<i64: 64, 128>}, {pipeline_mode = #tpu.pipeline_mode<synchronous>, transform_indices = @transform_1, window_bounds = array<i64: 128, 1024>}, {pipeline_mode = #tpu.pipeline_mode<synchronous>, transform_indices = @transform_2, window_bounds = array<i64: 256, 1024>}, {pipeline_mode = #tpu.pipeline_mode<synchronous>, transform_indices = @transform_3, window_bounds = array<i64: 1, 1024>}, {pipeline_mode = #tpu.pipeline_mode<synchronous>, transform_indices = @transform_4, window_bounds = array<i64: 256, 128>}, {pipeline_mode = #tpu.pipeline_mode<synchronous>, transform_indices = @transform_5, window_bounds = array<i64: 1, 128>}, {pipeline_mode = #tpu.pipeline_mode<synchronous>, transform_indices = @transform_6, window_bounds = array<i64: 8, 128>}]} {
    %c0 = arith.constant 0 : index
    %c0_0 = arith.constant 0 : index
    %0 = vector.load %arg1[%c0, %c0_0] : memref<64x128xf32, #tpu.memory_space<vmem>>, vector<64x128xf32>
    %c0_1 = arith.constant 0 : index
    %c0_2 = arith.constant 0 : index
    %1 = vector.load %arg2[%c0_1, %c0_2] : memref<128x1024xf32, #tpu.memory_space<vmem>>, vector<128x1024xf32>
    %cst = arith.constant dense<0.000000e+00> : vector<64x1024xf32>
    %2 = tpu.matmul %0, %1, %cst {dimension_numbers = #tpu.dot_dimension_numbers<[1], [0], [0], [1], [0, 0, 1, 1], [], []>} : vector<64x128xf32>, vector<128x1024xf32>, vector<64x1024xf32> -> vector<64x1024xf32>
    %c0_3 = arith.constant 0 : index
    %c0_4 = arith.constant 0 : index
    %3 = vector.load %arg4[%c0_3, %c0_4] : memref<1x1024xf32, #tpu.memory_space<vmem>>, vector<1x1024xf32>
    %4 = vector.broadcast %3 : vector<1x1024xf32> to vector<64x1024xf32>
    %5 = arith.addf %2, %4 : vector<64x1024xf32>
    %c0_5 = arith.constant 0 : index
    %c0_6 = arith.constant 0 : index
    %6 = vector.load %arg8[%c0_5, %c0_6] : memref<64x1024xf32, #tpu.memory_space<vmem>>, vector<64x1024xf32>
    tpu.vector_store %arg8[%c0_5, %c0_6], %5 {strides = array<i32>} : memref<64x1024xf32, #tpu.memory_space<vmem>>, vector<64x1024xf32>,
    %cst_7 = arith.constant 0.000000e+00 : f32
    %7 = vector.broadcast %cst_7 : f32 to vector<8x256xf32>
    %cst_8 = arith.constant 0.000000e+00 : f32
    %8 = vector.broadcast %cst_8 : f32 to vector<8x256xf32>
    %c0_i32 = arith.constant 0 : i32
    %c8_i32 = arith.constant 8 : i32
    %9 = arith.muli %c0_i32, %c8_i32 : i32
    %10 = tpu.assume_multiple %9, 8 : i32
    %11 = arith.index_cast %10 : i32 to index
    %c0_9 = arith.constant 0 : index
    %12 = vector.load %arg8[%11, %c0_9] : memref<64x1024xf32, #tpu.memory_space<vmem>>, vector<8x1024xf32>
    %c0_10 = arith.constant 0 : index
    %c0_11 = arith.constant 0 : index
    %13 = vector.load %arg3[%c0_10, %c0_11] : memref<256x1024xf32, #tpu.memory_space<vmem>>, vector<256x1024xf32>
    %cst_12 = arith.constant dense<0.000000e+00> : vector<8x1024xf32>
    %14 = tpu.matmul %7, %13, %cst_12 {dimension_numbers = #tpu.dot_dimension_numbers<[1], [0], [0], [1], [0, 0, 1, 1], [], []>} : vector<8x256xf32>, vector<256x1024xf32>, vector<8x1024xf32> -> vector<8x1024xf32>
    %15 = arith.addf %12, %14 : vector<8x1024xf32>
    %16 = vector.extract_strided_slice %15 {offsets = [0, 0], sizes = [8, 256], strides = [1, 1]} : vector<8x1024xf32> to vector<8x256xf32>
    %17 = arith.negf %16 : vector<8x256xf32>
    %18 = math.exp %17 : vector<8x256xf32>
    %cst_13 = arith.constant 1.000000e+00 : f32
    %19 = vector.broadcast %cst_13 : f32 to vector<8x256xf32>
    %20 = arith.addf %19, %18 : vector<8x256xf32>
    %21 = arith.divf %19, %20 : vector<8x256xf32>
    %22 = vector.extract_strided_slice %15 {offsets = [0, 256], sizes = [8, 256], strides = [1, 1]} : vector<8x1024xf32> to vector<8x256xf32>
    %23 = arith.negf %22 : vector<8x256xf32>
    %24 = math.exp %23 : vector<8x256xf32>
    %cst_14 = arith.constant 1.000000e+00 : f32
    %25 = vector.broadcast %cst_14 : f32 to vector<8x256xf32>
    %26 = arith.addf %25, %24 : vector<8x256xf32>
    %27 = arith.divf %25, %26 : vector<8x256xf32>
    %28 = vector.extract_strided_slice %15 {offsets = [0, 512], sizes = [8, 256], strides = [1, 1]} : vector<8x1024xf32> to vector<8x256xf32>
    %29 = math.tanh %28 : vector<8x256xf32>
    %30 = vector.extract_strided_slice %15 {offsets = [0, 768], sizes = [8, 256], strides = [1, 1]} : vector<8x1024xf32> to vector<8x256xf32>
    %31 = arith.negf %30 : vector<8x256xf32>
    %32 = math.exp %31 : vector<8x256xf32>
    %cst_15 = arith.constant 1.000000e+00 : f32
    %33 = vector.broadcast %cst_15 : f32 to vector<8x256xf32>
    %34 = arith.addf %33, %32 : vector<8x256xf32>
    %35 = arith.divf %33, %34 : vector<8x256xf32>
    %36 = arith.mulf %27, %8 : vector<8x256xf32>
    %37 = arith.mulf %21, %29 : vector<8x256xf32>
    %38 = arith.addf %36, %37 : vector<8x256xf32>
    %39 = math.tanh %38 : vector<8x256xf32>
    %40 = arith.mulf %35, %39 : vector<8x256xf32>
    %c1_i32 = arith.constant 1 : i32
    %c8_i32_16 = arith.constant 8 : i32
    %41 = arith.muli %c1_i32, %c8_i32_16 : i32
    %42 = tpu.assume_multiple %41, 8 : i32
    %43 = arith.index_cast %42 : i32 to index
    %c0_17 = arith.constant 0 : index
    %44 = vector.load %arg8[%43, %c0_17] : memref<64x1024xf32, #tpu.memory_space<vmem>>, vector<8x1024xf32>
    %c0_18 = arith.constant 0 : index
    %c0_19 = arith.constant 0 : index
    %45 = vector.load %arg3[%c0_18, %c0_19] : memref<256x1024xf32, #tpu.memory_space<vmem>>, vector<256x1024xf32>
    %cst_20 = arith.constant dense<0.000000e+00> : vector<8x1024xf32>
    %46 = tpu.matmul %40, %45, %cst_20 {dimension_numbers = #tpu.dot_dimension_numbers<[1], [0], [0], [1], [0, 0, 1, 1], [], []>} : vector<8x256xf32>, vector<256x1024xf32>, vector<8x1024xf32> -> vector<8x1024xf32>
    %47 = arith.addf %44, %46 : vector<8x1024xf32>
    %48 = vector.extract_strided_slice %47 {offsets = [0, 0], sizes = [8, 256], strides = [1, 1]} : vector<8x1024xf32> to vector<8x256xf32>
    %49 = arith.negf %48 : vector<8x256xf32>
    %50 = math.exp %49 : vector<8x256xf32>
    %cst_21 = arith.constant 1.000000e+00 : f32
    %51 = vector.broadcast %cst_21 : f32 to vector<8x256xf32>
    %52 = arith.addf %51, %50 : vector<8x256xf32>
    %53 = arith.divf %51, %52 : vector<8x256xf32>
    %54 = vector.extract_strided_slice %47 {offsets = [0, 256], sizes = [8, 256], strides = [1, 1]} : vector<8x1024xf32> to vector<8x256xf32>
    %55 = arith.negf %54 : vector<8x256xf32>
    %56 = math.exp %55 : vector<8x256xf32>
    %cst_22 = arith.constant 1.000000e+00 : f32
    %57 = vector.broadcast %cst_22 : f32 to vector<8x256xf32>
    %58 = arith.addf %57, %56 : vector<8x256xf32>
    %59 = arith.divf %57, %58 : vector<8x256xf32>
    %60 = vector.extract_strided_slice %47 {offsets = [0, 512], sizes = [8, 256], strides = [1, 1]} : vector<8x1024xf32> to vector<8x256xf32>
    %61 = math.tanh %60 : vector<8x256xf32>
    %62 = vector.extract_strided_slice %47 {offsets = [0, 768], sizes = [8, 256], strides = [1, 1]} : vector<8x1024xf32> to vector<8x256xf32>
    %63 = arith.negf %62 : vector<8x256xf32>
    %64 = math.exp %63 : vector<8x256xf32>
    %cst_23 = arith.constant 1.000000e+00 : f32
    %65 = vector.broadcast %cst_23 : f32 to vector<8x256xf32>
    %66 = arith.addf %65, %64 : vector<8x256xf32>
    %67 = arith.divf %65, %66 : vector<8x256xf32>
    %68 = arith.mulf %59, %38 : vector<8x256xf32>
    %69 = arith.mulf %53, %61 : vector<8x256xf32>
    %70 = arith.addf %68, %69 : vector<8x256xf32>
    %71 = math.tanh %70 : vector<8x256xf32>
    %72 = arith.mulf %67, %71 : vector<8x256xf32>
    %c2_i32 = arith.constant 2 : i32
    %c8_i32_24 = arith.constant 8 : i32
    %73 = arith.muli %c2_i32, %c8_i32_24 : i32
    %74 = tpu.assume_multiple %73, 8 : i32
    %75 = arith.index_cast %74 : i32 to index
    %c0_25 = arith.constant 0 : index
    %76 = vector.load %arg8[%75, %c0_25] : memref<64x1024xf32, #tpu.memory_space<vmem>>, vector<8x1024xf32>
    %c0_26 = arith.constant 0 : index
    %c0_27 = arith.constant 0 : index
    %77 = vector.load %arg3[%c0_26, %c0_27] : memref<256x1024xf32, #tpu.memory_space<vmem>>, vector<256x1024xf32>
    %cst_28 = arith.constant dense<0.000000e+00> : vector<8x1024xf32>
    %78 = tpu.matmul %72, %77, %cst_28 {dimension_numbers = #tpu.dot_dimension_numbers<[1], [0], [0], [1], [0, 0, 1, 1], [], []>} : vector<8x256xf32>, vector<256x1024xf32>, vector<8x1024xf32> -> vector<8x1024xf32>
    %79 = arith.addf %76, %78 : vector<8x1024xf32>
    %80 = vector.extract_strided_slice %79 {offsets = [0, 0], sizes = [8, 256], strides = [1, 1]} : vector<8x1024xf32> to vector<8x256xf32>
    %81 = arith.negf %80 : vector<8x256xf32>
    %82 = math.exp %81 : vector<8x256xf32>
    %cst_29 = arith.constant 1.000000e+00 : f32
    %83 = vector.broadcast %cst_29 : f32 to vector<8x256xf32>
    %84 = arith.addf %83, %82 : vector<8x256xf32>
    %85 = arith.divf %83, %84 : vector<8x256xf32>
    %86 = vector.extract_strided_slice %79 {offsets = [0, 256], sizes = [8, 256], strides = [1, 1]} : vector<8x1024xf32> to vector<8x256xf32>
    %87 = arith.negf %86 : vector<8x256xf32>
    %88 = math.exp %87 : vector<8x256xf32>
    %cst_30 = arith.constant 1.000000e+00 : f32
    %89 = vector.broadcast %cst_30 : f32 to vector<8x256xf32>
    %90 = arith.addf %89, %88 : vector<8x256xf32>
    %91 = arith.divf %89, %90 : vector<8x256xf32>
    %92 = vector.extract_strided_slice %79 {offsets = [0, 512], sizes = [8, 256], strides = [1, 1]} : vector<8x1024xf32> to vector<8x256xf32>
    %93 = math.tanh %92 : vector<8x256xf32>
    %94 = vector.extract_strided_slice %79 {offsets = [0, 768], sizes = [8, 256], strides = [1, 1]} : vector<8x1024xf32> to vector<8x256xf32>
    %95 = arith.negf %94 : vector<8x256xf32>
    %96 = math.exp %95 : vector<8x256xf32>
    %cst_31 = arith.constant 1.000000e+00 : f32
    %97 = vector.broadcast %cst_31 : f32 to vector<8x256xf32>
    %98 = arith.addf %97, %96 : vector<8x256xf32>
    %99 = arith.divf %97, %98 : vector<8x256xf32>
    %100 = arith.mulf %91, %70 : vector<8x256xf32>
    %101 = arith.mulf %85, %93 : vector<8x256xf32>
    %102 = arith.addf %100, %101 : vector<8x256xf32>
    %103 = math.tanh %102 : vector<8x256xf32>
    %104 = arith.mulf %99, %103 : vector<8x256xf32>
    %c3_i32 = arith.constant 3 : i32
    %c8_i32_32 = arith.constant 8 : i32
    %105 = arith.muli %c3_i32, %c8_i32_32 : i32
    %106 = tpu.assume_multiple %105, 8 : i32
    %107 = arith.index_cast %106 : i32 to index
    %c0_33 = arith.constant 0 : index
    %108 = vector.load %arg8[%107, %c0_33] : memref<64x1024xf32, #tpu.memory_space<vmem>>, vector<8x1024xf32>
    %c0_34 = arith.constant 0 : index
    %c0_35 = arith.constant 0 : index
    %109 = vector.load %arg3[%c0_34, %c0_35] : memref<256x1024xf32, #tpu.memory_space<vmem>>, vector<256x1024xf32>
    %cst_36 = arith.constant dense<0.000000e+00> : vector<8x1024xf32>
    %110 = tpu.matmul %104, %109, %cst_36 {dimension_numbers = #tpu.dot_dimension_numbers<[1], [0], [0], [1], [0, 0, 1, 1], [], []>} : vector<8x256xf32>, vector<256x1024xf32>, vector<8x1024xf32> -> vector<8x1024xf32>
    %111 = arith.addf %108, %110 : vector<8x1024xf32>
    %112 = vector.extract_strided_slice %111 {offsets = [0, 0], sizes = [8, 256], strides = [1, 1]} : vector<8x1024xf32> to vector<8x256xf32>
    %113 = arith.negf %112 : vector<8x256xf32>
    %114 = math.exp %113 : vector<8x256xf32>
    %cst_37 = arith.constant 1.000000e+00 : f32
    %115 = vector.broadcast %cst_37 : f32 to vector<8x256xf32>
    %116 = arith.addf %115, %114 : vector<8x256xf32>
    %117 = arith.divf %115, %116 : vector<8x256xf32>
    %118 = vector.extract_strided_slice %111 {offsets = [0, 256], sizes = [8, 256], strides = [1, 1]} : vector<8x1024xf32> to vector<8x256xf32>
    %119 = arith.negf %118 : vector<8x256xf32>
    %120 = math.exp %119 : vector<8x256xf32>
    %cst_38 = arith.constant 1.000000e+00 : f32
    %121 = vector.broadcast %cst_38 : f32 to vector<8x256xf32>
    %122 = arith.addf %121, %120 : vector<8x256xf32>
    %123 = arith.divf %121, %122 : vector<8x256xf32>
    %124 = vector.extract_strided_slice %111 {offsets = [0, 512], sizes = [8, 256], strides = [1, 1]} : vector<8x1024xf32> to vector<8x256xf32>
    %125 = math.tanh %124 : vector<8x256xf32>
    %126 = vector.extract_strided_slice %111 {offsets = [0, 768], sizes = [8, 256], strides = [1, 1]} : vector<8x1024xf32> to vector<8x256xf32>
    %127 = arith.negf %126 : vector<8x256xf32>
    %128 = math.exp %127 : vector<8x256xf32>
    %cst_39 = arith.constant 1.000000e+00 : f32
    %129 = vector.broadcast %cst_39 : f32 to vector<8x256xf32>
    %130 = arith.addf %129, %128 : vector<8x256xf32>
    %131 = arith.divf %129, %130 : vector<8x256xf32>
    %132 = arith.mulf %123, %102 : vector<8x256xf32>
    %133 = arith.mulf %117, %125 : vector<8x256xf32>
    %134 = arith.addf %132, %133 : vector<8x256xf32>
    %135 = math.tanh %134 : vector<8x256xf32>
    %136 = arith.mulf %131, %135 : vector<8x256xf32>
    %c4_i32 = arith.constant 4 : i32
    %c8_i32_40 = arith.constant 8 : i32
    %137 = arith.muli %c4_i32, %c8_i32_40 : i32
    %138 = tpu.assume_multiple %137, 8 : i32
    %139 = arith.index_cast %138 : i32 to index
    %c0_41 = arith.constant 0 : index
    %140 = vector.load %arg8[%139, %c0_41] : memref<64x1024xf32, #tpu.memory_space<vmem>>, vector<8x1024xf32>
    %c0_42 = arith.constant 0 : index
    %c0_43 = arith.constant 0 : index
    %141 = vector.load %arg3[%c0_42, %c0_43] : memref<256x1024xf32, #tpu.memory_space<vmem>>, vector<256x1024xf32>
    %cst_44 = arith.constant dense<0.000000e+00> : vector<8x1024xf32>
    %142 = tpu.matmul %136, %141, %cst_44 {dimension_numbers = #tpu.dot_dimension_numbers<[1], [0], [0], [1], [0, 0, 1, 1], [], []>} : vector<8x256xf32>, vector<256x1024xf32>, vector<8x1024xf32> -> vector<8x1024xf32>
    %143 = arith.addf %140, %142 : vector<8x1024xf32>
    %144 = vector.extract_strided_slice %143 {offsets = [0, 0], sizes = [8, 256], strides = [1, 1]} : vector<8x1024xf32> to vector<8x256xf32>
    %145 = arith.negf %144 : vector<8x256xf32>
    %146 = math.exp %145 : vector<8x256xf32>
    %cst_45 = arith.constant 1.000000e+00 : f32
    %147 = vector.broadcast %cst_45 : f32 to vector<8x256xf32>
    %148 = arith.addf %147, %146 : vector<8x256xf32>
    %149 = arith.divf %147, %148 : vector<8x256xf32>
    %150 = vector.extract_strided_slice %143 {offsets = [0, 256], sizes = [8, 256], strides = [1, 1]} : vector<8x1024xf32> to vector<8x256xf32>
    %151 = arith.negf %150 : vector<8x256xf32>
    %152 = math.exp %151 : vector<8x256xf32>
    %cst_46 = arith.constant 1.000000e+00 : f32
    %153 = vector.broadcast %cst_46 : f32 to vector<8x256xf32>
    %154 = arith.addf %153, %152 : vector<8x256xf32>
    %155 = arith.divf %153, %154 : vector<8x256xf32>
    %156 = vector.extract_strided_slice %143 {offsets = [0, 512], sizes = [8, 256], strides = [1, 1]} : vector<8x1024xf32> to vector<8x256xf32>
    %157 = math.tanh %156 : vector<8x256xf32>
    %158 = vector.extract_strided_slice %143 {offsets = [0, 768], sizes = [8, 256], strides = [1, 1]} : vector<8x1024xf32> to vector<8x256xf32>
    %159 = arith.negf %158 : vector<8x256xf32>
    %160 = math.exp %159 : vector<8x256xf32>
    %cst_47 = arith.constant 1.000000e+00 : f32
    %161 = vector.broadcast %cst_47 : f32 to vector<8x256xf32>
    %162 = arith.addf %161, %160 : vector<8x256xf32>
    %163 = arith.divf %161, %162 : vector<8x256xf32>
    %164 = arith.mulf %155, %134 : vector<8x256xf32>
    %165 = arith.mulf %149, %157 : vector<8x256xf32>
    %166 = arith.addf %164, %165 : vector<8x256xf32>
    %167 = math.tanh %166 : vector<8x256xf32>
    %168 = arith.mulf %163, %167 : vector<8x256xf32>
    %c5_i32 = arith.constant 5 : i32
    %c8_i32_48 = arith.constant 8 : i32
    %169 = arith.muli %c5_i32, %c8_i32_48 : i32
    %170 = tpu.assume_multiple %169, 8 : i32
    %171 = arith.index_cast %170 : i32 to index
    %c0_49 = arith.constant 0 : index
    %172 = vector.load %arg8[%171, %c0_49] : memref<64x1024xf32, #tpu.memory_space<vmem>>, vector<8x1024xf32>
    %c0_50 = arith.constant 0 : index
    %c0_51 = arith.constant 0 : index
    %173 = vector.load %arg3[%c0_50, %c0_51] : memref<256x1024xf32, #tpu.memory_space<vmem>>, vector<256x1024xf32>
    %cst_52 = arith.constant dense<0.000000e+00> : vector<8x1024xf32>
    %174 = tpu.matmul %168, %173, %cst_52 {dimension_numbers = #tpu.dot_dimension_numbers<[1], [0], [0], [1], [0, 0, 1, 1], [], []>} : vector<8x256xf32>, vector<256x1024xf32>, vector<8x1024xf32> -> vector<8x1024xf32>
    %175 = arith.addf %172, %174 : vector<8x1024xf32>
    %176 = vector.extract_strided_slice %175 {offsets = [0, 0], sizes = [8, 256], strides = [1, 1]} : vector<8x1024xf32> to vector<8x256xf32>
    %177 = arith.negf %176 : vector<8x256xf32>
    %178 = math.exp %177 : vector<8x256xf32>
    %cst_53 = arith.constant 1.000000e+00 : f32
    %179 = vector.broadcast %cst_53 : f32 to vector<8x256xf32>
    %180 = arith.addf %179, %178 : vector<8x256xf32>
    %181 = arith.divf %179, %180 : vector<8x256xf32>
    %182 = vector.extract_strided_slice %175 {offsets = [0, 256], sizes = [8, 256], strides = [1, 1]} : vector<8x1024xf32> to vector<8x256xf32>
    %183 = arith.negf %182 : vector<8x256xf32>
    %184 = math.exp %183 : vector<8x256xf32>
    %cst_54 = arith.constant 1.000000e+00 : f32
    %185 = vector.broadcast %cst_54 : f32 to vector<8x256xf32>
    %186 = arith.addf %185, %184 : vector<8x256xf32>
    %187 = arith.divf %185, %186 : vector<8x256xf32>
    %188 = vector.extract_strided_slice %175 {offsets = [0, 512], sizes = [8, 256], strides = [1, 1]} : vector<8x1024xf32> to vector<8x256xf32>
    %189 = math.tanh %188 : vector<8x256xf32>
    %190 = vector.extract_strided_slice %175 {offsets = [0, 768], sizes = [8, 256], strides = [1, 1]} : vector<8x1024xf32> to vector<8x256xf32>
    %191 = arith.negf %190 : vector<8x256xf32>
    %192 = math.exp %191 : vector<8x256xf32>
    %cst_55 = arith.constant 1.000000e+00 : f32
    %193 = vector.broadcast %cst_55 : f32 to vector<8x256xf32>
    %194 = arith.addf %193, %192 : vector<8x256xf32>
    %195 = arith.divf %193, %194 : vector<8x256xf32>
    %196 = arith.mulf %187, %166 : vector<8x256xf32>
    %197 = arith.mulf %181, %189 : vector<8x256xf32>
    %198 = arith.addf %196, %197 : vector<8x256xf32>
    %199 = math.tanh %198 : vector<8x256xf32>
    %200 = arith.mulf %195, %199 : vector<8x256xf32>
    %c6_i32 = arith.constant 6 : i32
    %c8_i32_56 = arith.constant 8 : i32
    %201 = arith.muli %c6_i32, %c8_i32_56 : i32
    %202 = tpu.assume_multiple %201, 8 : i32
    %203 = arith.index_cast %202 : i32 to index
    %c0_57 = arith.constant 0 : index
    %204 = vector.load %arg8[%203, %c0_57] : memref<64x1024xf32, #tpu.memory_space<vmem>>, vector<8x1024xf32>
    %c0_58 = arith.constant 0 : index
    %c0_59 = arith.constant 0 : index
    %205 = vector.load %arg3[%c0_58, %c0_59] : memref<256x1024xf32, #tpu.memory_space<vmem>>, vector<256x1024xf32>
    %cst_60 = arith.constant dense<0.000000e+00> : vector<8x1024xf32>
    %206 = tpu.matmul %200, %205, %cst_60 {dimension_numbers = #tpu.dot_dimension_numbers<[1], [0], [0], [1], [0, 0, 1, 1], [], []>} : vector<8x256xf32>, vector<256x1024xf32>, vector<8x1024xf32> -> vector<8x1024xf32>
    %207 = arith.addf %204, %206 : vector<8x1024xf32>
    %208 = vector.extract_strided_slice %207 {offsets = [0, 0], sizes = [8, 256], strides = [1, 1]} : vector<8x1024xf32> to vector<8x256xf32>
    %209 = arith.negf %208 : vector<8x256xf32>
    %210 = math.exp %209 : vector<8x256xf32>
    %cst_61 = arith.constant 1.000000e+00 : f32
    %211 = vector.broadcast %cst_61 : f32 to vector<8x256xf32>
    %212 = arith.addf %211, %210 : vector<8x256xf32>
    %213 = arith.divf %211, %212 : vector<8x256xf32>
    %214 = vector.extract_strided_slice %207 {offsets = [0, 256], sizes = [8, 256], strides = [1, 1]} : vector<8x1024xf32> to vector<8x256xf32>
    %215 = arith.negf %214 : vector<8x256xf32>
    %216 = math.exp %215 : vector<8x256xf32>
    %cst_62 = arith.constant 1.000000e+00 : f32
    %217 = vector.broadcast %cst_62 : f32 to vector<8x256xf32>
    %218 = arith.addf %217, %216 : vector<8x256xf32>
    %219 = arith.divf %217, %218 : vector<8x256xf32>
    %220 = vector.extract_strided_slice %207 {offsets = [0, 512], sizes = [8, 256], strides = [1, 1]} : vector<8x1024xf32> to vector<8x256xf32>
    %221 = math.tanh %220 : vector<8x256xf32>
    %222 = vector.extract_strided_slice %207 {offsets = [0, 768], sizes = [8, 256], strides = [1, 1]} : vector<8x1024xf32> to vector<8x256xf32>
    %223 = arith.negf %222 : vector<8x256xf32>
    %224 = math.exp %223 : vector<8x256xf32>
    %cst_63 = arith.constant 1.000000e+00 : f32
    %225 = vector.broadcast %cst_63 : f32 to vector<8x256xf32>
    %226 = arith.addf %225, %224 : vector<8x256xf32>
    %227 = arith.divf %225, %226 : vector<8x256xf32>
    %228 = arith.mulf %219, %198 : vector<8x256xf32>
    %229 = arith.mulf %213, %221 : vector<8x256xf32>
    %230 = arith.addf %228, %229 : vector<8x256xf32>
    %231 = math.tanh %230 : vector<8x256xf32>
    %232 = arith.mulf %227, %231 : vector<8x256xf32>
    %c7_i32 = arith.constant 7 : i32
    %c8_i32_64 = arith.constant 8 : i32
    %233 = arith.muli %c7_i32, %c8_i32_64 : i32
    %234 = tpu.assume_multiple %233, 8 : i32
    %235 = arith.index_cast %234 : i32 to index
    %c0_65 = arith.constant 0 : index
    %236 = vector.load %arg8[%235, %c0_65] : memref<64x1024xf32, #tpu.memory_space<vmem>>, vector<8x1024xf32>
    %c0_66 = arith.constant 0 : index
    %c0_67 = arith.constant 0 : index
    %237 = vector.load %arg3[%c0_66, %c0_67] : memref<256x1024xf32, #tpu.memory_space<vmem>>, vector<256x1024xf32>
    %cst_68 = arith.constant dense<0.000000e+00> : vector<8x1024xf32>
    %238 = tpu.matmul %232, %237, %cst_68 {dimension_numbers = #tpu.dot_dimension_numbers<[1], [0], [0], [1], [0, 0, 1, 1], [], []>} : vector<8x256xf32>, vector<256x1024xf32>, vector<8x1024xf32> -> vector<8x1024xf32>
    %239 = arith.addf %236, %238 : vector<8x1024xf32>
    %240 = vector.extract_strided_slice %239 {offsets = [0, 0], sizes = [8, 256], strides = [1, 1]} : vector<8x1024xf32> to vector<8x256xf32>
    %241 = arith.negf %240 : vector<8x256xf32>
    %242 = math.exp %241 : vector<8x256xf32>
    %cst_69 = arith.constant 1.000000e+00 : f32
    %243 = vector.broadcast %cst_69 : f32 to vector<8x256xf32>
    %244 = arith.addf %243, %242 : vector<8x256xf32>
    %245 = arith.divf %243, %244 : vector<8x256xf32>
    %246 = vector.extract_strided_slice %239 {offsets = [0, 256], sizes = [8, 256], strides = [1, 1]} : vector<8x1024xf32> to vector<8x256xf32>
    %247 = arith.negf %246 : vector<8x256xf32>
    %248 = math.exp %247 : vector<8x256xf32>
    %cst_70 = arith.constant 1.000000e+00 : f32
    %249 = vector.broadcast %cst_70 : f32 to vector<8x256xf32>
    %250 = arith.addf %249, %248 : vector<8x256xf32>
    %251 = arith.divf %249, %250 : vector<8x256xf32>
    %252 = vector.extract_strided_slice %239 {offsets = [0, 512], sizes = [8, 256], strides = [1, 1]} : vector<8x1024xf32> to vector<8x256xf32>
    %253 = math.tanh %252 : vector<8x256xf32>
    %254 = vector.extract_strided_slice %239 {offsets = [0, 768], sizes = [8, 256], strides = [1, 1]} : vector<8x1024xf32> to vector<8x256xf32>
    %255 = arith.negf %254 : vector<8x256xf32>
    %256 = math.exp %255 : vector<8x256xf32>
    %cst_71 = arith.constant 1.000000e+00 : f32
    %257 = vector.broadcast %cst_71 : f32 to vector<8x256xf32>
    %258 = arith.addf %257, %256 : vector<8x256xf32>
    %259 = arith.divf %257, %258 : vector<8x256xf32>
    %260 = arith.mulf %251, %230 : vector<8x256xf32>
    %261 = arith.mulf %245, %253 : vector<8x256xf32>
    %262 = arith.addf %260, %261 : vector<8x256xf32>
    %263 = math.tanh %262 : vector<8x256xf32>
    %264 = arith.mulf %259, %263 : vector<8x256xf32>
    %c8_i32_72 = arith.constant 8 : i32
    %c0_73 = arith.constant 0 : index
    %c0_74 = arith.constant 0 : index
    %265 = vector.load %arg5[%c0_73, %c0_74] : memref<256x128xf32, #tpu.memory_space<vmem>>, vector<256x128xf32>
    %cst_75 = arith.constant dense<0.000000e+00> : vector<8x128xf32>
    %266 = tpu.matmul %262, %265, %cst_75 {dimension_numbers = #tpu.dot_dimension_numbers<[1], [0], [0], [1], [0, 0, 1, 1], [], []>} : vector<8x256xf32>, vector<256x128xf32>, vector<8x128xf32> -> vector<8x128xf32>
    %c0_76 = arith.constant 0 : index
    %c0_77 = arith.constant 0 : index
    %267 = vector.load %arg6[%c0_76, %c0_77] : memref<1x128xf32, #tpu.memory_space<vmem>>, vector<1x128xf32>
    %268 = vector.broadcast %267 : vector<1x128xf32> to vector<8x128xf32>
    %269 = arith.addf %266, %268 : vector<8x128xf32>
    %c0_78 = arith.constant 0 : index
    %c0_79 = arith.constant 0 : index
    %270 = vector.load %arg7[%c0_78, %c0_79] : memref<8x128xf32, #tpu.memory_space<vmem>>, vector<8x128xf32>
    tpu.vector_store %arg7[%c0_78, %c0_79], %269 {strides = array<i32>} : memref<8x128xf32, #tpu.memory_space<vmem>>, vector<8x128xf32>,
    return
  }
  func.func @transform_0(%arg0: i32) -> (i32, i32) {
    %c0_i32 = arith.constant 0 : i32
    %c0_i32_0 = arith.constant 0 : i32
    %c0_i32_1 = arith.constant 0 : i32
    return %c0_i32, %c0_i32_0 : i32, i32
  }
  func.func @transform_1(%arg0: i32) -> (i32, i32) {
    %c0_i32 = arith.constant 0 : i32
    %c0_i32_0 = arith.constant 0 : i32
    %c0_i32_1 = arith.constant 0 : i32
    return %c0_i32, %c0_i32_0 : i32, i32
  }
  func.func @transform_2(%arg0: i32) -> (i32, i32) {
    %c0_i32 = arith.constant 0 : i32
    %c0_i32_0 = arith.constant 0 : i32
    %c0_i32_1 = arith.constant 0 : i32
    return %c0_i32, %c0_i32_0 : i32, i32
  }
  func.func @transform_3(%arg0: i32) -> (i32, i32) {
    %c0_i32 = arith.constant 0 : i32
    %c0_i32_0 = arith.constant 0 : i32
    %c0_i32_1 = arith.constant 0 : i32
    return %c0_i32, %c0_i32_0 : i32, i32
  }
  func.func @transform_4(%arg0: i32) -> (i32, i32) {
    %c0_i32 = arith.constant 0 : i32
    %c0_i32_0 = arith.constant 0 : i32
    %c0_i32_1 = arith.constant 0 : i32
    return %c0_i32, %c0_i32_0 : i32, i32
  }
  func.func @transform_5(%arg0: i32) -> (i32, i32) {
    %c0_i32 = arith.constant 0 : i32
    %c0_i32_0 = arith.constant 0 : i32
    %c0_i32_1 = arith.constant 0 : i32
    return %c0_i32, %c0_i32_0 : i32, i32
  }
  func.func @transform_6(%arg0: i32) -> (i32, i32) {
    %c0_i32 = arith.constant 0 : i32
    %c0_i32_0 = arith.constant 0 : i32
    %c0_i32_1 = arith.constant 0 : i32
    return %c0_i32, %c0_i32_0 : i32, i32
  }
}

</mosaic_0001>

<llo_original>
// kernel: lstm_language_module_forward.1
$region0: #{lstm_language_module_forward.1}
  #allocation0 [shape = 'u32[]', space=smem, size = 0x4, offset = 0x4, fixed_abs, tag = 'smem constant byte address 0x4 - core index']
  #allocation1 [shape = 'u32[144,128]{1,0:T(1,128)}', space=vmem, size = 0x12000, scoped, tag = 'internal scratch']
  #allocation2 [shape = 'f32[64,1024]{1,0:T(8,128)}', space=vmem, size = 0x40000, scoped, tag = 'scratch operand']
  %s0 = inlined_call_operand.vmem [shape: f32[64,128], index: 0, kind: input, shape index: {}]
  %s1 = inlined_call_operand.vmem [shape: f32[128,1024], index: 1, kind: input, shape index: {}]
  %s2 = inlined_call_operand.vmem [shape: f32[256,1024], index: 2, kind: input, shape index: {}]
  %s3 = inlined_call_operand.vmem [shape: f32[1,1024], index: 3, kind: input, shape index: {}]
  %s4 = inlined_call_operand.vmem [shape: f32[256,128], index: 4, kind: input, shape index: {}]
  %s5 = inlined_call_operand.vmem [shape: f32[1,128], index: 5, kind: input, shape index: {}]
  %s6 = inlined_call_operand.vmem [shape: f32[8,128], index: 6, kind: output, shape index: {}]
  %s7 = sld [smem:[#allocation0]]
  $region34: #{lstm_language_module_forward.1} parent=0
    _
  %s9 = ssub.s32 1, %s7
  %s10 = scalar_select 0, %s9, %s7
  // Predicated region
  $region2: #{lstm_language_module_forward.1} parent=0 // pred_check
    _
  $region3: #{lstm_language_module_forward.1} parent=0 // pred_check_branch
    %12 = sbr.rel (0) target = $region5
  $region4: #{lstm_language_module_forward.1} parent=0 // pred_region
    _
  $region5: #{lstm_language_module_forward.1} parent=0 // pred_fallthru
    _
  // Predicated region
  $region6: #{lstm_language_module_forward.1} parent=0 // pred_check
    _
  $region7: #{lstm_language_module_forward.1} parent=0 // pred_check_branch
    %14 = sbr.rel (0) target = $region9
  $region8: #{lstm_language_module_forward.1} parent=0 // pred_region
    _
  $region9: #{lstm_language_module_forward.1} parent=0 // pred_fallthru
    _
  // Predicated region
  $region10: #{lstm_language_module_forward.1} parent=0 // pred_check
    _
  $region11: #{lstm_language_module_forward.1} parent=0 // pred_check_branch
    %16 = sbr.rel (0) target = $region13
  $region12: #{lstm_language_module_forward.1} parent=0 // pred_region
    _
  $region13: #{lstm_language_module_forward.1} parent=0 // pred_fallthru
    _
  // Predicated region
  $region14: #{lstm_language_module_forward.1} parent=0 // pred_check
    _
  $region15: #{lstm_language_module_forward.1} parent=0 // pred_check_branch
    %18 = sbr.rel (0) target = $region17
  $region16: #{lstm_language_module_forward.1} parent=0 // pred_region
    _
  $region17: #{lstm_language_module_forward.1} parent=0 // pred_fallthru
    _
  // Predicated region
  $region18: #{lstm_language_module_forward.1} parent=0 // pred_check
    _
  $region19: #{lstm_language_module_forward.1} parent=0 // pred_check_branch
    %20 = sbr.rel (0) target = $region21
  $region20: #{lstm_language_module_forward.1} parent=0 // pred_region
    _
  $region21: #{lstm_language_module_forward.1} parent=0 // pred_fallthru
    _
  // Predicated region
  $region22: #{lstm_language_module_forward.1} parent=0 // pred_check
    _
  $region23: #{lstm_language_module_forward.1} parent=0 // pred_check_branch
    %22 = sbr.rel (0) target = $region25
  $region24: #{lstm_language_module_forward.1} parent=0 // pred_region
    _
  $region25: #{lstm_language_module_forward.1} parent=0 // pred_fallthru
    _
  %v23 = vld [vmem:[%s0] sm:$0xff]
  %v24 = vld [vmem:[%s0 + $0x8] sm:$0xff]
  %v25 = vld [vmem:[%s0 + $0x10] sm:$0xff]
  %v26 = vld [vmem:[%s0 + $0x18] sm:$0xff]
  %v27 = vld [vmem:[%s0 + $0x20] sm:$0xff]
  %v28 = vld [vmem:[%s0 + $0x28] sm:$0xff]
  %v29 = vld [vmem:[%s0 + $0x30] sm:$0xff]
  %v30 = vld [vmem:[%s0 + $0x38] sm:$0xff]
  %v31 = vld [vmem:[%s1] sm:$0xff]
  %v32 = vld [vmem:[%s1 + $0x8] sm:$0xff]
  %v33 = vld [vmem:[%s1 + $0x10] sm:$0xff]
  %v34 = vld [vmem:[%s1 + $0x18] sm:$0xff]
  %v35 = vld [vmem:[%s1 + $0x20] sm:$0xff]
  %v36 = vld [vmem:[%s1 + $0x28] sm:$0xff]
  %v37 = vld [vmem:[%s1 + $0x30] sm:$0xff]
  %v38 = vld [vmem:[%s1 + $0x38] sm:$0xff]
  %v39 = vld [vmem:[%s1 + $0x40] sm:$0xff]
  %v40 = vld [vmem:[%s1 + $0x48] sm:$0xff]
  %v41 = vld [vmem:[%s1 + $0x50] sm:$0xff]
  %v42 = vld [vmem:[%s1 + $0x58] sm:$0xff]
  %v43 = vld [vmem:[%s1 + $0x60] sm:$0xff]
  %v44 = vld [vmem:[%s1 + $0x68] sm:$0xff]
  %v45 = vld [vmem:[%s1 + $0x70] sm:$0xff]
  %v46 = vld [vmem:[%s1 + $0x78] sm:$0xff]
  %v47 = vld [vmem:[%s1 + $0x80] sm:$0xff]
  %v48 = vld [vmem:[%s1 + $0x88] sm:$0xff]
  %v49 = vld [vmem:[%s1 + $0x90] sm:$0xff]
  %v50 = vld [vmem:[%s1 + $0x98] sm:$0xff]
  %v51 = vld [vmem:[%s1 + $0xa0] sm:$0xff]
  %v52 = vld [vmem:[%s1 + $0xa8] sm:$0xff]
  %v53 = vld [vmem:[%s1 + $0xb0] sm:$0xff]
  %v54 = vld [vmem:[%s1 + $0xb8] sm:$0xff]
  %v55 = vld [vmem:[%s1 + $0xc0] sm:$0xff]
  %v56 = vld [vmem:[%s1 + $0xc8] sm:$0xff]
  %v57 = vld [vmem:[%s1 + $0xd0] sm:$0xff]
  %v58 = vld [vmem:[%s1 + $0xd8] sm:$0xff]
  %v59 = vld [vmem:[%s1 + $0xe0] sm:$0xff]
  %v60 = vld [vmem:[%s1 + $0xe8] sm:$0xff]
  %v61 = vld [vmem:[%s1 + $0xf0] sm:$0xff]
  %v62 = vld [vmem:[%s1 + $0xf8] sm:$0xff]
  %v63 = vld [vmem:[%s1 + $0x100] sm:$0xff]
  %v64 = vld [vmem:[%s1 + $0x108] sm:$0xff]
  %v65 = vld [vmem:[%s1 + $0x110] sm:$0xff]
  %v66 = vld [vmem:[%s1 + $0x118] sm:$0xff]
  %v67 = vld [vmem:[%s1 + $0x120] sm:$0xff]
  %v68 = vld [vmem:[%s1 + $0x128] sm:$0xff]
  %v69 = vld [vmem:[%s1 + $0x130] sm:$0xff]
  %v70 = vld [vmem:[%s1 + $0x138] sm:$0xff]
  %v71 = vld [vmem:[%s1 + $0x140] sm:$0xff]
  %v72 = vld [vmem:[%s1 + $0x148] sm:$0xff]
  %v73 = vld [vmem:[%s1 + $0x150] sm:$0xff]
  %v74 = vld [vmem:[%s1 + $0x158] sm:$0xff]
  %v75 = vld [vmem:[%s1 + $0x160] sm:$0xff]
  %v76 = vld [vmem:[%s1 + $0x168] sm:$0xff]
  %v77 = vld [vmem:[%s1 + $0x170] sm:$0xff]
  %v78 = vld [vmem:[%s1 + $0x178] sm:$0xff]
  %v79 = vld [vmem:[%s1 + $0x180] sm:$0xff]
  %v80 = vld [vmem:[%s1 + $0x188] sm:$0xff]
  %v81 = vld [vmem:[%s1 + $0x190] sm:$0xff]
  %v82 = vld [vmem:[%s1 + $0x198] sm:$0xff]
  %v83 = vld [vmem:[%s1 + $0x1a0] sm:$0xff]
  %v84 = vld [vmem:[%s1 + $0x1a8] sm:$0xff]
  %v85 = vld [vmem:[%s1 + $0x1b0] sm:$0xff]
  %v86 = vld [vmem:[%s1 + $0x1b8] sm:$0xff]
  %v87 = vld [vmem:[%s1 + $0x1c0] sm:$0xff]
  %v88 = vld [vmem:[%s1 + $0x1c8] sm:$0xff]
  %v89 = vld [vmem:[%s1 + $0x1d0] sm:$0xff]
  %v90 = vld [vmem:[%s1 + $0x1d8] sm:$0xff]
  %v91 = vld [vmem:[%s1 + $0x1e0] sm:$0xff]
  %v92 = vld [vmem:[%s1 + $0x1e8] sm:$0xff]
  %v93 = vld [vmem:[%s1 + $0x1f0] sm:$0xff]
  %v94 = vld [vmem:[%s1 + $0x1f8] sm:$0xff]
  %v95 = vld [vmem:[%s1 + $0x200] sm:$0xff]
  %v96 = vld [vmem:[%s1 + $0x208] sm:$0xff]
  %v97 = vld [vmem:[%s1 + $0x210] sm:$0xff]
  %v98 = vld [vmem:[%s1 + $0x218] sm:$0xff]
  %v99 = vld [vmem:[%s1 + $0x220] sm:$0xff]
  %v100 = vld [vmem:[%s1 + $0x228] sm:$0xff]
  %v101 = vld [vmem:[%s1 + $0x230] sm:$0xff]
  %v102 = vld [vmem:[%s1 + $0x238] sm:$0xff]
  %v103 = vld [vmem:[%s1 + $0x240] sm:$0xff]
  %v104 = vld [vmem:[%s1 + $0x248] sm:$0xff]
  %v105 = vld [vmem:[%s1 + $0x250] sm:$0xff]
  %v106 = vld [vmem:[%s1 + $0x258] sm:$0xff]
  %v107 = vld [vmem:[%s1 + $0x260] sm:$0xff]
  %v108 = vld [vmem:[%s1 + $0x268] sm:$0xff]
  %v109 = vld [vmem:[%s1 + $0x270] sm:$0xff]
  %v110 = vld [vmem:[%s1 + $0x278] sm:$0xff]
  %v111 = vld [vmem:[%s1 + $0x280] sm:$0xff]
  %v112 = vld [vmem:[%s1 + $0x288] sm:$0xff]
  %v113 = vld [vmem:[%s1 + $0x290] sm:$0xff]
  %v114 = vld [vmem:[%s1 + $0x298] sm:$0xff]
  %v115 = vld [vmem:[%s1 + $0x2a0] sm:$0xff]
  %v116 = vld [vmem:[%s1 + $0x2a8] sm:$0xff]
  %v117 = vld [vmem:[%s1 + $0x2b0] sm:$0xff]
  %v118 = vld [vmem:[%s1 + $0x2b8] sm:$0xff]
  %v119 = vld [vmem:[%s1 + $0x2c0] sm:$0xff]
  %v120 = vld [vmem:[%s1 + $0x2c8] sm:$0xff]
  %v121 = vld [vmem:[%s1 + $0x2d0] sm:$0xff]
  %v122 = vld [vmem:[%s1 + $0x2d8] sm:$0xff]
  %v123 = vld [vmem:[%s1 + $0x2e0] sm:$0xff]
  %v124 = vld [vmem:[%s1 + $0x2e8] sm:$0xff]
  %v125 = vld [vmem:[%s1 + $0x2f0] sm:$0xff]
  %v126 = vld [vmem:[%s1 + $0x2f8] sm:$0xff]
  %v127 = vld [vmem:[%s1 + $0x300] sm:$0xff]
  %v128 = vld [vmem:[%s1 + $0x308] sm:$0xff]
  %v129 = vld [vmem:[%s1 + $0x310] sm:$0xff]
  %v130 = vld [vmem:[%s1 + $0x318] sm:$0xff]
  %v131 = vld [vmem:[%s1 + $0x320] sm:$0xff]
  %v132 = vld [vmem:[%s1 + $0x328] sm:$0xff]
  %v133 = vld [vmem:[%s1 + $0x330] sm:$0xff]
  %v134 = vld [vmem:[%s1 + $0x338] sm:$0xff]
  %v135 = vld [vmem:[%s1 + $0x340] sm:$0xff]
  %v136 = vld [vmem:[%s1 + $0x348] sm:$0xff]
  %v137 = vld [vmem:[%s1 + $0x350] sm:$0xff]
  %v138 = vld [vmem:[%s1 + $0x358] sm:$0xff]
  %v139 = vld [vmem:[%s1 + $0x360] sm:$0xff]
  %v140 = vld [vmem:[%s1 + $0x368] sm:$0xff]
  %v141 = vld [vmem:[%s1 + $0x370] sm:$0xff]
  %v142 = vld [vmem:[%s1 + $0x378] sm:$0xff]
  %v143 = vld [vmem:[%s1 + $0x380] sm:$0xff]
  %v144 = vld [vmem:[%s1 + $0x388] sm:$0xff]
  %v145 = vld [vmem:[%s1 + $0x390] sm:$0xff]
  %v146 = vld [vmem:[%s1 + $0x398] sm:$0xff]
  %v147 = vld [vmem:[%s1 + $0x3a0] sm:$0xff]
  %v148 = vld [vmem:[%s1 + $0x3a8] sm:$0xff]
  %v149 = vld [vmem:[%s1 + $0x3b0] sm:$0xff]
  %v150 = vld [vmem:[%s1 + $0x3b8] sm:$0xff]
  %v151 = vld [vmem:[%s1 + $0x3c0] sm:$0xff]
  %v152 = vld [vmem:[%s1 + $0x3c8] sm:$0xff]
  %v153 = vld [vmem:[%s1 + $0x3d0] sm:$0xff]
  %v154 = vld [vmem:[%s1 + $0x3d8] sm:$0xff]
  %v155 = vld [vmem:[%s1 + $0x3e0] sm:$0xff]
  %v156 = vld [vmem:[%s1 + $0x3e8] sm:$0xff]
  %v157 = vld [vmem:[%s1 + $0x3f0] sm:$0xff]
  %v158 = vld [vmem:[%s1 + $0x3f8] sm:$0xff]
  %v159 = vld [vmem:[%s3] sm:$0xff]
  %v161 = vlaneseq
  %v162 = vshrl.u32 %v161, 7
  %v163 = vsub.s32 0, %v162
  %v164 = vrot.slane %v159, %v163
  %v165 = vlaneseq
  %v166 = vshrl.u32 %v165, 7
  %v167 = vsub.s32 1, %v166
  %v168 = vrot.slane %v159, %v167
  %v169 = vlaneseq
  %v170 = vshrl.u32 %v169, 7
  %v171 = vsub.s32 2, %v170
  %v172 = vrot.slane %v159, %v171
  %v173 = vlaneseq
  %v174 = vshrl.u32 %v173, 7
  %v175 = vsub.s32 3, %v174
  %v176 = vrot.slane %v159, %v175
  %v177 = vlaneseq
  %v178 = vshrl.u32 %v177, 7
  %v179 = vsub.s32 4, %v178
  %v180 = vrot.slane %v159, %v179
  %v181 = vlaneseq
  %v182 = vshrl.u32 %v181, 7
  %v183 = vsub.s32 5, %v182
  %v184 = vrot.slane %v159, %v183
  %v185 = vlaneseq
  %v186 = vshrl.u32 %v185, 7
  %v187 = vsub.s32 6, %v186
  %v188 = vrot.slane %v159, %v187
  %v189 = vlaneseq
  %v190 = vshrl.u32 %v189, 7
  %v191 = vsub.s32 7, %v190
  %v192 = vrot.slane %v159, %v191
  %201 = vmatprep.subr.mxu0 %v32
  %202 = vmatpush1.msra.mxu0 %v31
  %203 = vmatprep.subr.mxu0 %v40
  %204 = vmatpush1.msra.mxu0 %v39
  %205 = vmatprep.subr.mxu0 %v48
  %206 = vmatpush1.msra.mxu0 %v47
  %207 = vmatprep.subr.mxu0 %v56
  %208 = vmatpush1.msra.mxu0 %v55
  %209 = vmatprep.subr.mxu0 %v64
  %210 = vmatpush1.msra.mxu0 %v63
  %211 = vmatprep.subr.mxu0 %v72
  %212 = vmatpush1.msra.mxu0 %v71
  %213 = vmatprep.subr.mxu0 %v80
  %214 = vmatpush1.msra.mxu0 %v79
  %215 = vmatprep.subr.mxu0 %v88
  %216 = vmatpush1.msra.mxu0 %v87
  %217 = vmatprep.subr.mxu0 %v96
  %218 = vmatpush1.msra.mxu0 %v95
  %219 = vmatprep.subr.mxu0 %v104
  %220 = vmatpush1.msra.mxu0 %v103
  %221 = vmatprep.subr.mxu0 %v112
  %222 = vmatpush1.msra.mxu0 %v111
  %223 = vmatprep.subr.mxu0 %v120
  %224 = vmatpush1.msra.mxu0 %v119
  %225 = vmatprep.subr.mxu0 %v128
  %226 = vmatpush1.msra.mxu0 %v127
  %227 = vmatprep.subr.mxu0 %v136
  %228 = vmatpush1.msra.mxu0 %v135
  %229 = vmatprep.subr.mxu0 %v144
  %230 = vmatpush1.msra.mxu0 %v143
  %231 = vmatprep.subr.mxu0 %v152
  %232 = vmatpush1.msra.mxu0 %v151
  %233 = vmatprep.subr.mxu0 0.0
  %234 = vmatpush1.msra.mxu0 0.0
  %235 = vmatprep.subr.mxu0 0.0
  %236 = vmatpush1.msra.mxu0 0.0
  %237 = vmatprep.subr.mxu0 0.0
  %238 = vmatpush1.msra.mxu0 0.0
  %239 = vmatprep.subr.mxu0 0.0
  %240 = vmatpush1.msra.mxu0 0.0
  %241 = vmatprep.subr.mxu0 0.0
  %242 = vmatpush1.msra.mxu0 0.0
  %243 = vmatprep.subr.mxu0 0.0
  %244 = vmatpush1.msra.mxu0 0.0
  %245 = vmatprep.subr.mxu0 0.0
  %246 = vmatpush1.msra.mxu0 0.0
  %247 = vmatprep.subr.mxu0 0.0
  %248 = vmatpush1.msra.mxu0 0.0
  %249 = vmatprep.subr.mxu0 0.0
  %250 = vmatpush1.msra.mxu0 0.0
  %251 = vmatprep.subr.mxu0 0.0
  %252 = vmatpush1.msra.mxu0 0.0
  %253 = vmatprep.subr.mxu0 0.0
  %254 = vmatpush1.msra.mxu0 0.0
  %255 = vmatprep.subr.mxu0 0.0
  %256 = vmatpush1.msra.mxu0 0.0
  %257 = vmatprep.subr.mxu0 0.0
  %258 = vmatpush1.msra.mxu0 0.0
  %259 = vmatprep.subr.mxu0 0.0
  %260 = vmatpush1.msra.mxu0 0.0
  %261 = vmatprep.subr.mxu0 0.0
  %262 = vmatpush1.msra.mxu0 0.0
  %263 = vmatprep.subr.mxu0 0.0
  %264 = vmatpush1.msra.mxu0 0.0
  %265 = vmatprep.mubr.f32.mxu0 0.0
  %266 = vmatmul.mubr.f32.gmra.mrb[0].mxu0 %v23
  %v267 = vpop.f32.mrb[0].mxu0
  %v268 = vadd.f32 %v164, %v267
  %v269 = vpop.f32.mrb[0].mxu0
  %v270 = vadd.f32 %v168, %v269
  %271 = vmatprep.mubr.f32.mxu0 0.0
  %272 = vmatmul.mubr.f32.gmra.mrb[0].mxu0 %v24
  %v273 = vpop.f32.mrb[0].mxu0
  %v274 = vadd.f32 %v164, %v273
  %v275 = vpop.f32.mrb[0].mxu0
  %v276 = vadd.f32 %v168, %v275
  %277 = vmatprep.mubr.f32.mxu0 0.0
  %278 = vmatmul.mubr.f32.gmra.mrb[0].mxu0 %v25
  %v279 = vpop.f32.mrb[0].mxu0
  %v280 = vadd.f32 %v164, %v279
  %v281 = vpop.f32.mrb[0].mxu0
  %v282 = vadd.f32 %v168, %v281
  %283 = vmatprep.mubr.f32.mxu0 0.0
  %284 = vmatmul.mubr.f32.gmra.mrb[0].mxu0 %v26
  %v285 = vpop.f32.mrb[0].mxu0
  %v286 = vadd.f32 %v164, %v285
  %v287 = vpop.f32.mrb[0].mxu0
  %v288 = vadd.f32 %v168, %v287
  %289 = vmatprep.mubr.f32.mxu0 0.0
  %290 = vmatmul.mubr.f32.gmra.mrb[0].mxu0 %v27
  %v291 = vpop.f32.mrb[0].mxu0
  %v292 = vadd.f32 %v164, %v291
  %v293 = vpop.f32.mrb[0].mxu0
  %v294 = vadd.f32 %v168, %v293
  %295 = vmatprep.mubr.f32.mxu0 0.0
  %296 = vmatmul.mubr.f32.gmra.mrb[0].mxu0 %v28
  %v297 = vpop.f32.mrb[0].mxu0
  %v298 = vadd.f32 %v164, %v297
  %v299 = vpop.f32.mrb[0].mxu0
  %v300 = vadd.f32 %v168, %v299
  %301 = vmatprep.mubr.f32.mxu0 0.0
  %302 = vmatmul.mubr.f32.gmra.mrb[0].mxu0 %v29
  %v303 = vpop.f32.mrb[0].mxu0
  %v304 = vadd.f32 %v164, %v303
  %v305 = vpop.f32.mrb[0].mxu0
  %v306 = vadd.f32 %v168, %v305
  %307 = vmatprep.mubr.f32.mxu0 0.0
  %308 = vmatmul.mubr.f32.gmra.mrb[0].mxu0 %v30
  %v309 = vpop.f32.mrb[0].mxu0
  %v310 = vadd.f32 %v164, %v309
  %v311 = vpop.f32.mrb[0].mxu0
  %v312 = vadd.f32 %v168, %v311
  %313 = vdwg.mxu0
  %314 = vmatprep.subr.mxu0 %v34
  %315 = vmatpush1.msra.mxu0 %v33
  %316 = vmatprep.subr.mxu0 %v42
  %317 = vmatpush1.msra.mxu0 %v41
  %318 = vmatprep.subr.mxu0 %v50
  %319 = vmatpush1.msra.mxu0 %v49
  %320 = vmatprep.subr.mxu0 %v58
  %321 = vmatpush1.msra.mxu0 %v57
  %322 = vmatprep.subr.mxu0 %v66
  %323 = vmatpush1.msra.mxu0 %v65
  %324 = vmatprep.subr.mxu0 %v74
  %325 = vmatpush1.msra.mxu0 %v73
  %326 = vmatprep.subr.mxu0 %v82
  %327 = vmatpush1.msra.mxu0 %v81
  %328 = vmatprep.subr.mxu0 %v90
  %329 = vmatpush1.msra.mxu0 %v89
  %330 = vmatprep.subr.mxu0 %v98
  %331 = vmatpush1.msra.mxu0 %v97
  %332 = vmatprep.subr.mxu0 %v106
  %333 = vmatpush1.msra.mxu0 %v105
  %334 = vmatprep.subr.mxu0 %v114
  %335 = vmatpush1.msra.mxu0 %v113
  %336 = vmatprep.subr.mxu0 %v122
  %337 = vmatpush1.msra.mxu0 %v121
  %338 = vmatprep.subr.mxu0 %v130
  %339 = vmatpush1.msra.mxu0 %v129
  %340 = vmatprep.subr.mxu0 %v138
  %341 = vmatpush1.msra.mxu0 %v137
  %342 = vmatprep.subr.mxu0 %v146
  %343 = vmatpush1.msra.mxu0 %v145
  %344 = vmatprep.subr.mxu0 %v154
  %345 = vmatpush1.msra.mxu0 %v153
  %346 = vmatprep.subr.mxu0 0.0
  %347 = vmatpush1.msra.mxu0 0.0
  %348 = vmatprep.subr.mxu0 0.0
  %349 = vmatpush1.msra.mxu0 0.0
  %350 = vmatprep.subr.mxu0 0.0
  %351 = vmatpush1.msra.mxu0 0.0
  %352 = vmatprep.subr.mxu0 0.0
  %353 = vmatpush1.msra.mxu0 0.0
  %354 = vmatprep.subr.mxu0 0.0
  %355 = vmatpush1.msra.mxu0 0.0
  %356 = vmatprep.subr.mxu0 0.0
  %357 = vmatpush1.msra.mxu0 0.0
  %358 = vmatprep.subr.mxu0 0.0
  %359 = vmatpush1.msra.mxu0 0.0
  %360 = vmatprep.subr.mxu0 0.0
  %361 = vmatpush1.msra.mxu0 0.0
  %362 = vmatprep.subr.mxu0 0.0
  %363 = vmatpush1.msra.mxu0 0.0
  %364 = vmatprep.subr.mxu0 0.0
  %365 = vmatpush1.msra.mxu0 0.0
  %366 = vmatprep.subr.mxu0 0.0
  %367 = vmatpush1.msra.mxu0 0.0
  %368 = vmatprep.subr.mxu0 0.0
  %369 = vmatpush1.msra.mxu0 0.0
  %370 = vmatprep.subr.mxu0 0.0
  %371 = vmatpush1.msra.mxu0 0.0
  %372 = vmatprep.subr.mxu0 0.0
  %373 = vmatpush1.msra.mxu0 0.0
  %374 = vmatprep.subr.mxu0 0.0
  %375 = vmatpush1.msra.mxu0 0.0
  %376 = vmatprep.subr.mxu0 0.0
  %377 = vmatpush1.msra.mxu0 0.0
  %378 = vmatprep.mubr.f32.mxu0 0.0
  %379 = vmatmul.mubr.f32.gmra.mrb[0].mxu0 %v23
  %v380 = vpop.f32.mrb[0].mxu0
  %v381 = vadd.f32 %v172, %v380
  %v382 = vpop.f32.mrb[0].mxu0
  %v383 = vadd.f32 %v176, %v382
  %384 = vmatprep.mubr.f32.mxu0 0.0
  %385 = vmatmul.mubr.f32.gmra.mrb[0].mxu0 %v24
  %v386 = vpop.f32.mrb[0].mxu0
  %v387 = vadd.f32 %v172, %v386
  %v388 = vpop.f32.mrb[0].mxu0
  %v389 = vadd.f32 %v176, %v388
  %390 = vmatprep.mubr.f32.mxu0 0.0
  %391 = vmatmul.mubr.f32.gmra.mrb[0].mxu0 %v25
  %v392 = vpop.f32.mrb[0].mxu0
  %v393 = vadd.f32 %v172, %v392
  %v394 = vpop.f32.mrb[0].mxu0
  %v395 = vadd.f32 %v176, %v394
  %396 = vmatprep.mubr.f32.mxu0 0.0
  %397 = vmatmul.mubr.f32.gmra.mrb[0].mxu0 %v26
  %v398 = vpop.f32.mrb[0].mxu0
  %v399 = vadd.f32 %v172, %v398
  %v400 = vpop.f32.mrb[0].mxu0
  %v401 = vadd.f32 %v176, %v400
  %402 = vmatprep.mubr.f32.mxu0 0.0
  %403 = vmatmul.mubr.f32.gmra.mrb[0].mxu0 %v27
  %v404 = vpop.f32.mrb[0].mxu0
  %v405 = vadd.f32 %v172, %v404
  %v406 = vpop.f32.mrb[0].mxu0
  %v407 = vadd.f32 %v176, %v406
  %408 = vmatprep.mubr.f32.mxu0 0.0
  %409 = vmatmul.mubr.f32.gmra.mrb[0].mxu0 %v28
  %v410 = vpop.f32.mrb[0].mxu0
  %v411 = vadd.f32 %v172, %v410
  %v412 = vpop.f32.mrb[0].mxu0
  %v413 = vadd.f32 %v176, %v412
  %414 = vmatprep.mubr.f32.mxu0 0.0
  %415 = vmatmul.mubr.f32.gmra.mrb[0].mxu0 %v29
  %v416 = vpop.f32.mrb[0].mxu0
  %v417 = vadd.f32 %v172, %v416
  %v418 = vpop.f32.mrb[0].mxu0
  %v419 = vadd.f32 %v176, %v418
  %420 = vmatprep.mubr.f32.mxu0 0.0
  %421 = vmatmul.mubr.f32.gmra.mrb[0].mxu0 %v30
  %v422 = vpop.f32.mrb[0].mxu0
  %v423 = vadd.f32 %v172, %v422
  %v424 = vpop.f32.mrb[0].mxu0
  %v425 = vadd.f32 %v176, %v424
  %426 = vdwg.mxu0
  %427 = vmatprep.subr.mxu0 %v36
  %428 = vmatpush1.msra.mxu0 %v35
  %429 = vmatprep.subr.mxu0 %v44
  %430 = vmatpush1.msra.mxu0 %v43
  %431 = vmatprep.subr.mxu0 %v52
  %432 = vmatpush1.msra.mxu0 %v51
  %433 = vmatprep.subr.mxu0 %v60
  %434 = vmatpush1.msra.mxu0 %v59
  %435 = vmatprep.subr.mxu0 %v68
  %436 = vmatpush1.msra.mxu0 %v67
  %437 = vmatprep.subr.mxu0 %v76
  %438 = vmatpush1.msra.mxu0 %v75
  %439 = vmatprep.subr.mxu0 %v84
  %440 = vmatpush1.msra.mxu0 %v83
  %441 = vmatprep.subr.mxu0 %v92
  %442 = vmatpush1.msra.mxu0 %v91
  %443 = vmatprep.subr.mxu0 %v100
  %444 = vmatpush1.msra.mxu0 %v99
  %445 = vmatprep.subr.mxu0 %v108
  %446 = vmatpush1.msra.mxu0 %v107
  %447 = vmatprep.subr.mxu0 %v116
  %448 = vmatpush1.msra.mxu0 %v115
  %449 = vmatprep.subr.mxu0 %v124
  %450 = vmatpush1.msra.mxu0 %v123
  %451 = vmatprep.subr.mxu0 %v132
  %452 = vmatpush1.msra.mxu0 %v131
  %453 = vmatprep.subr.mxu0 %v140
  %454 = vmatpush1.msra.mxu0 %v139
  %455 = vmatprep.subr.mxu0 %v148
  %456 = vmatpush1.msra.mxu0 %v147
  %457 = vmatprep.subr.mxu0 %v156
  %458 = vmatpush1.msra.mxu0 %v155
  %459 = vmatprep.subr.mxu0 0.0
  %460 = vmatpush1.msra.mxu0 0.0
  %461 = vmatprep.subr.mxu0 0.0
  %462 = vmatpush1.msra.mxu0 0.0
  %463 = vmatprep.subr.mxu0 0.0
  %464 = vmatpush1.msra.mxu0 0.0
  %465 = vmatprep.subr.mxu0 0.0
  %466 = vmatpush1.msra.mxu0 0.0
  %467 = vmatprep.subr.mxu0 0.0
  %468 = vmatpush1.msra.mxu0 0.0
  %469 = vmatprep.subr.mxu0 0.0
  %470 = vmatpush1.msra.mxu0 0.0
  %471 = vmatprep.subr.mxu0 0.0
  %472 = vmatpush1.msra.mxu0 0.0
  %473 = vmatprep.subr.mxu0 0.0
  %474 = vmatpush1.msra.mxu0 0.0
  %475 = vmatprep.subr.mxu0 0.0
  %476 = vmatpush1.msra.mxu0 0.0
  %477 = vmatprep.subr.mxu0 0.0
  %478 = vmatpush1.msra.mxu0 0.0
  %479 = vmatprep.subr.mxu0 0.0
  %480 = vmatpush1.msra.mxu0 0.0
  %481 = vmatprep.subr.mxu0 0.0
  %482 = vmatpush1.msra.mxu0 0.0
  %483 = vmatprep.subr.mxu0 0.0
  %484 = vmatpush1.msra.mxu0 0.0
  %485 = vmatprep.subr.mxu0 0.0
  %486 = vmatpush1.msra.mxu0 0.0
  %487 = vmatprep.subr.mxu0 0.0
  %488 = vmatpush1.msra.mxu0 0.0
  %489 = vmatprep.subr.mxu0 0.0
  %490 = vmatpush1.msra.mxu0 0.0
  %491 = vmatprep.mubr.f32.mxu0 0.0
  %492 = vmatmul.mubr.f32.gmra.mrb[0].mxu0 %v23
  %v493 = vpop.f32.mrb[0].mxu0
  %v494 = vadd.f32 %v180, %v493
  %v495 = vpop.f32.mrb[0].mxu0
  %v496 = vadd.f32 %v184, %v495
  %497 = vmatprep.mubr.f32.mxu0 0.0
  %498 = vmatmul.mubr.f32.gmra.mrb[0].mxu0 %v24
  %v499 = vpop.f32.mrb[0].mxu0
  %v500 = vadd.f32 %v180, %v499
  %v501 = vpop.f32.mrb[0].mxu0
  %v502 = vadd.f32 %v184, %v501
  %503 = vmatprep.mubr.f32.mxu0 0.0
  %504 = vmatmul.mubr.f32.gmra.mrb[0].mxu0 %v25
  %v505 = vpop.f32.mrb[0].mxu0
  %v506 = vadd.f32 %v180, %v505
  %v507 = vpop.f32.mrb[0].mxu0
  %v508 = vadd.f32 %v184, %v507
  %509 = vmatprep.mubr.f32.mxu0 0.0
  %510 = vmatmul.mubr.f32.gmra.mrb[0].mxu0 %v26
  %v511 = vpop.f32.mrb[0].mxu0
  %v512 = vadd.f32 %v180, %v511
  %v513 = vpop.f32.mrb[0].mxu0
  %v514 = vadd.f32 %v184, %v513
  %515 = vmatprep.mubr.f32.mxu0 0.0
  %516 = vmatmul.mubr.f32.gmra.mrb[0].mxu0 %v27
  %v517 = vpop.f32.mrb[0].mxu0
  %v518 = vadd.f32 %v180, %v517
  %v519 = vpop.f32.mrb[0].mxu0
  %v520 = vadd.f32 %v184, %v519
  %521 = vmatprep.mubr.f32.mxu0 0.0
  %522 = vmatmul.mubr.f32.gmra.mrb[0].mxu0 %v28
  %v523 = vpop.f32.mrb[0].mxu0
  %v524 = vadd.f32 %v180, %v523
  %v525 = vpop.f32.mrb[0].mxu0
  %v526 = vadd.f32 %v184, %v525
  %527 = vmatprep.mubr.f32.mxu0 0.0
  %528 = vmatmul.mubr.f32.gmra.mrb[0].mxu0 %v29
  %v529 = vpop.f32.mrb[0].mxu0
  %v530 = vadd.f32 %v180, %v529
  %v531 = vpop.f32.mrb[0].mxu0
  %v532 = vadd.f32 %v184, %v531
  %533 = vmatprep.mubr.f32.mxu0 0.0
  %534 = vmatmul.mubr.f32.gmra.mrb[0].mxu0 %v30
  %v535 = vpop.f32.mrb[0].mxu0
  %v536 = vadd.f32 %v180, %v535
  %v537 = vpop.f32.mrb[0].mxu0
  %v538 = vadd.f32 %v184, %v537
  %539 = vdwg.mxu0
  %540 = vmatprep.subr.mxu0 %v38
  %541 = vmatpush1.msra.mxu0 %v37
  %542 = vmatprep.subr.mxu0 %v46
  %543 = vmatpush1.msra.mxu0 %v45
  %544 = vmatprep.subr.mxu0 %v54
  %545 = vmatpush1.msra.mxu0 %v53
  %546 = vmatprep.subr.mxu0 %v62
  %547 = vmatpush1.msra.mxu0 %v61
  %548 = vmatprep.subr.mxu0 %v70
  %549 = vmatpush1.msra.mxu0 %v69
  %550 = vmatprep.subr.mxu0 %v78
  %551 = vmatpush1.msra.mxu0 %v77
  %552 = vmatprep.subr.mxu0 %v86
  %553 = vmatpush1.msra.mxu0 %v85
  %554 = vmatprep.subr.mxu0 %v94
  %555 = vmatpush1.msra.mxu0 %v93
  %556 = vmatprep.subr.mxu0 %v102
  %557 = vmatpush1.msra.mxu0 %v101
  %558 = vmatprep.subr.mxu0 %v110
  %559 = vmatpush1.msra.mxu0 %v109
  %560 = vmatprep.subr.mxu0 %v118
  %561 = vmatpush1.msra.mxu0 %v117
  %562 = vmatprep.subr.mxu0 %v126
  %563 = vmatpush1.msra.mxu0 %v125
  %564 = vmatprep.subr.mxu0 %v134
  %565 = vmatpush1.msra.mxu0 %v133
  %566 = vmatprep.subr.mxu0 %v142
  %567 = vmatpush1.msra.mxu0 %v141
  %568 = vmatprep.subr.mxu0 %v150
  %569 = vmatpush1.msra.mxu0 %v149
  %570 = vmatprep.subr.mxu0 %v158
  %571 = vmatpush1.msra.mxu0 %v157
  %572 = vmatprep.subr.mxu0 0.0
  %573 = vmatpush1.msra.mxu0 0.0
  %574 = vmatprep.subr.mxu0 0.0
  %575 = vmatpush1.msra.mxu0 0.0
  %576 = vmatprep.subr.mxu0 0.0
  %577 = vmatpush1.msra.mxu0 0.0
  %578 = vmatprep.subr.mxu0 0.0
  %579 = vmatpush1.msra.mxu0 0.0
  %580 = vmatprep.subr.mxu0 0.0
  %581 = vmatpush1.msra.mxu0 0.0
  %582 = vmatprep.subr.mxu0 0.0
  %583 = vmatpush1.msra.mxu0 0.0
  %584 = vmatprep.subr.mxu0 0.0
  %585 = vmatpush1.msra.mxu0 0.0
  %586 = vmatprep.subr.mxu0 0.0
  %587 = vmatpush1.msra.mxu0 0.0
  %588 = vmatprep.subr.mxu0 0.0
  %589 = vmatpush1.msra.mxu0 0.0
  %590 = vmatprep.subr.mxu0 0.0
  %591 = vmatpush1.msra.mxu0 0.0
  %592 = vmatprep.subr.mxu0 0.0
  %593 = vmatpush1.msra.mxu0 0.0
  %594 = vmatprep.subr.mxu0 0.0
  %595 = vmatpush1.msra.mxu0 0.0
  %596 = vmatprep.subr.mxu0 0.0
  %597 = vmatpush1.msra.mxu0 0.0
  %598 = vmatprep.subr.mxu0 0.0
  %599 = vmatpush1.msra.mxu0 0.0
  %600 = vmatprep.subr.mxu0 0.0
  %601 = vmatpush1.msra.mxu0 0.0
  %602 = vmatprep.subr.mxu0 0.0
  %603 = vmatpush1.msra.mxu0 0.0
  %604 = vmatprep.mubr.f32.mxu0 0.0
  %605 = vmatmul.mubr.f32.gmra.mrb[0].mxu0 %v23
  %v606 = vpop.f32.mrb[0].mxu0
  %v607 = vadd.f32 %v188, %v606
  %v608 = vpop.f32.mrb[0].mxu0
  %v609 = vadd.f32 %v192, %v608
  %610 = vmatprep.mubr.f32.mxu0 0.0
  %611 = vmatmul.mubr.f32.gmra.mrb[0].mxu0 %v24
  %v612 = vpop.f32.mrb[0].mxu0
  %v613 = vadd.f32 %v188, %v612
  %v614 = vpop.f32.mrb[0].mxu0
  %v615 = vadd.f32 %v192, %v614
  %616 = vmatprep.mubr.f32.mxu0 0.0
  %617 = vmatmul.mubr.f32.gmra.mrb[0].mxu0 %v25
  %v618 = vpop.f32.mrb[0].mxu0
  %v619 = vadd.f32 %v188, %v618
  %v620 = vpop.f32.mrb[0].mxu0
  %v621 = vadd.f32 %v192, %v620
  %622 = vmatprep.mubr.f32.mxu0 0.0
  %623 = vmatmul.mubr.f32.gmra.mrb[0].mxu0 %v26
  %v624 = vpop.f32.mrb[0].mxu0
  %v625 = vadd.f32 %v188, %v624
  %v626 = vpop.f32.mrb[0].mxu0
  %v627 = vadd.f32 %v192, %v626
  %628 = vmatprep.mubr.f32.mxu0 0.0
  %629 = vmatmul.mubr.f32.gmra.mrb[0].mxu0 %v27
  %v630 = vpop.f32.mrb[0].mxu0
  %v631 = vadd.f32 %v188, %v630
  %v632 = vpop.f32.mrb[0].mxu0
  %v633 = vadd.f32 %v192, %v632
  %634 = vmatprep.mubr.f32.mxu0 0.0
  %635 = vmatmul.mubr.f32.gmra.mrb[0].mxu0 %v28
  %v636 = vpop.f32.mrb[0].mxu0
  %v637 = vadd.f32 %v188, %v636
  %v638 = vpop.f32.mrb[0].mxu0
  %v639 = vadd.f32 %v192, %v638
  %640 = vmatprep.mubr.f32.mxu0 0.0
  %641 = vmatmul.mubr.f32.gmra.mrb[0].mxu0 %v29
  %v642 = vpop.f32.mrb[0].mxu0
  %v643 = vadd.f32 %v188, %v642
  %v644 = vpop.f32.mrb[0].mxu0
  %v645 = vadd.f32 %v192, %v644
  %646 = vmatprep.mubr.f32.mxu0 0.0
  %647 = vmatmul.mubr.f32.gmra.mrb[0].mxu0 %v30
  %v648 = vpop.f32.mrb[0].mxu0
  %v649 = vadd.f32 %v188, %v648
  %v650 = vpop.f32.mrb[0].mxu0
  %v651 = vadd.f32 %v192, %v650
  %652 = vdwg.mxu0
  %653 = vst [vmem:[#allocation2] sm:$0xff] %v268
  %654 = vst [vmem:[#allocation2 + $0x8] sm:$0xff] %v270
  %655 = vst [vmem:[#allocation2 + $0x10] sm:$0xff] %v381
  %656 = vst [vmem:[#allocation2 + $0x18] sm:$0xff] %v383
  %657 = vst [vmem:[#allocation2 + $0x20] sm:$0xff] %v494
  %658 = vst [vmem:[#allocation2 + $0x28] sm:$0xff] %v496
  %659 = vst [vmem:[#allocation2 + $0x30] sm:$0xff] %v607
  %660 = vst [vmem:[#allocation2 + $0x38] sm:$0xff] %v609
  %661 = vst [vmem:[#allocation2 + $0x40] sm:$0xff] %v274
  %662 = vst [vmem:[#allocation2 + $0x48] sm:$0xff] %v276
  %663 = vst [vmem:[#allocation2 + $0x50] sm:$0xff] %v387
  %664 = vst [vmem:[#allocation2 + $0x58] sm:$0xff] %v389
  %665 = vst [vmem:[#allocation2 + $0x60] sm:$0xff] %v500
  %666 = vst [vmem:[#allocation2 + $0x68] sm:$0xff] %v502
  %667 = vst [vmem:[#allocation2 + $0x70] sm:$0xff] %v613
  %668 = vst [vmem:[#allocation2 + $0x78] sm:$0xff] %v615
  %669 = vst [vmem:[#allocation2 + $0x80] sm:$0xff] %v280
  %670 = vst [vmem:[#allocation2 + $0x88] sm:$0xff] %v282
  %671 = vst [vmem:[#allocation2 + $0x90] sm:$0xff] %v393
  %672 = vst [vmem:[#allocation2 + $0x98] sm:$0xff] %v395
  %673 = vst [vmem:[#allocation2 + $0xa0] sm:$0xff] %v506
  %674 = vst [vmem:[#allocation2 + $0xa8] sm:$0xff] %v508
  %675 = vst [vmem:[#allocation2 + $0xb0] sm:$0xff] %v619
  %676 = vst [vmem:[#allocation2 + $0xb8] sm:$0xff] %v621
  %677 = vst [vmem:[#allocation2 + $0xc0] sm:$0xff] %v286
  %678 = vst [vmem:[#allocation2 + $0xc8] sm:$0xff] %v288
  %679 = vst [vmem:[#allocation2 + $0xd0] sm:$0xff] %v399
  %680 = vst [vmem:[#allocation2 + $0xd8] sm:$0xff] %v401
  %681 = vst [vmem:[#allocation2 + $0xe0] sm:$0xff] %v512
  %682 = vst [vmem:[#allocation2 + $0xe8] sm:$0xff] %v514
  %683 = vst [vmem:[#allocation2 + $0xf0] sm:$0xff] %v625
  %684 = vst [vmem:[#allocation2 + $0xf8] sm:$0xff] %v627
  %685 = vst [vmem:[#allocation2 + $0x100] sm:$0xff] %v292
  %686 = vst [vmem:[#allocation2 + $0x108] sm:$0xff] %v294
  %687 = vst [vmem:[#allocation2 + $0x110] sm:$0xff] %v405
  %688 = vst [vmem:[#allocation2 + $0x118] sm:$0xff] %v407
  %689 = vst [vmem:[#allocation2 + $0x120] sm:$0xff] %v518
  %690 = vst [vmem:[#allocation2 + $0x128] sm:$0xff] %v520
  %691 = vst [vmem:[#allocation2 + $0x130] sm:$0xff] %v631
  %692 = vst [vmem:[#allocation2 + $0x138] sm:$0xff] %v633
  %693 = vst [vmem:[#allocation2 + $0x140] sm:$0xff] %v298
  %694 = vst [vmem:[#allocation2 + $0x148] sm:$0xff] %v300
  %695 = vst [vmem:[#allocation2 + $0x150] sm:$0xff] %v411
  %696 = vst [vmem:[#allocation2 + $0x158] sm:$0xff] %v413
  %697 = vst [vmem:[#allocation2 + $0x160] sm:$0xff] %v524
  %698 = vst [vmem:[#allocation2 + $0x168] sm:$0xff] %v526
  %699 = vst [vmem:[#allocation2 + $0x170] sm:$0xff] %v637
  %700 = vst [vmem:[#allocation2 + $0x178] sm:$0xff] %v639
  %701 = vst [vmem:[#allocation2 + $0x180] sm:$0xff] %v304
  %702 = vst [vmem:[#allocation2 + $0x188] sm:$0xff] %v306
  %703 = vst [vmem:[#allocation2 + $0x190] sm:$0xff] %v417
  %704 = vst [vmem:[#allocation2 + $0x198] sm:$0xff] %v419
  %705 = vst [vmem:[#allocation2 + $0x1a0] sm:$0xff] %v530
  %706 = vst [vmem:[#allocation2 + $0x1a8] sm:$0xff] %v532
  %707 = vst [vmem:[#allocation2 + $0x1b0] sm:$0xff] %v643
  %708 = vst [vmem:[#allocation2 + $0x1b8] sm:$0xff] %v645
  %709 = vst [vmem:[#allocation2 + $0x1c0] sm:$0xff] %v310
  %710 = vst [vmem:[#allocation2 + $0x1c8] sm:$0xff] %v312
  %711 = vst [vmem:[#allocation2 + $0x1d0] sm:$0xff] %v423
  %712 = vst [vmem:[#allocation2 + $0x1d8] sm:$0xff] %v425
  %713 = vst [vmem:[#allocation2 + $0x1e0] sm:$0xff] %v536
  %714 = vst [vmem:[#allocation2 + $0x1e8] sm:$0xff] %v538
  %715 = vst [vmem:[#allocation2 + $0x1f0] sm:$0xff] %v649
  %716 = vst [vmem:[#allocation2 + $0x1f8] sm:$0xff] %v651
  %s717 = smul.u32 0, 8
  %s718 = smul.addr %s717, 8
  %s719 = scalar_lea.vmem [#allocation2], %s718
  %v720 = vld [vmem:[%s719] sm:$0xff]
  %v721 = vld [vmem:[%s719 + $0x8] sm:$0xff]
  %v722 = vld [vmem:[%s719 + $0x10] sm:$0xff]
  %v723 = vld [vmem:[%s719 + $0x18] sm:$0xff]
  %v724 = vld [vmem:[%s719 + $0x20] sm:$0xff]
  %v725 = vld [vmem:[%s719 + $0x28] sm:$0xff]
  %v726 = vld [vmem:[%s719 + $0x30] sm:$0xff]
  %v727 = vld [vmem:[%s719 + $0x38] sm:$0xff]
  %v728 = vld [vmem:[%s2] sm:$0xff]
  %v729 = vld [vmem:[%s2 + $0x8] sm:$0xff]
  %v730 = vld [vmem:[%s2 + $0x10] sm:$0xff]
  %v731 = vld [vmem:[%s2 + $0x18] sm:$0xff]
  %v732 = vld [vmem:[%s2 + $0x20] sm:$0xff]
  %v733 = vld [vmem:[%s2 + $0x28] sm:$0xff]
  %v734 = vld [vmem:[%s2 + $0x30] sm:$0xff]
  %v735 = vld [vmem:[%s2 + $0x38] sm:$0xff]
  %v736 = vld [vmem:[%s2 + $0x40] sm:$0xff]
  %v737 = vld [vmem:[%s2 + $0x48] sm:$0xff]
  %v738 = vld [vmem:[%s2 + $0x50] sm:$0xff]
  %v739 = vld [vmem:[%s2 + $0x58] sm:$0xff]
  %v740 = vld [vmem:[%s2 + $0x60] sm:$0xff]
  %v741 = vld [vmem:[%s2 + $0x68] sm:$0xff]
  %v742 = vld [vmem:[%s2 + $0x70] sm:$0xff]
  %v743 = vld [vmem:[%s2 + $0x78] sm:$0xff]
  %v744 = vld [vmem:[%s2 + $0x80] sm:$0xff]
  %v745 = vld [vmem:[%s2 + $0x88] sm:$0xff]
  %v746 = vld [vmem:[%s2 + $0x90] sm:$0xff]
  %v747 = vld [vmem:[%s2 + $0x98] sm:$0xff]
  %v748 = vld [vmem:[%s2 + $0xa0] sm:$0xff]
  %v749 = vld [vmem:[%s2 + $0xa8] sm:$0xff]
  %v750 = vld [vmem:[%s2 + $0xb0] sm:$0xff]
  %v751 = vld [vmem:[%s2 + $0xb8] sm:$0xff]
  %v752 = vld [vmem:[%s2 + $0xc0] sm:$0xff]
  %v753 = vld [vmem:[%s2 + $0xc8] sm:$0xff]
  %v754 = vld [vmem:[%s2 + $0xd0] sm:$0xff]
  %v755 = vld [vmem:[%s2 + $0xd8] sm:$0xff]
  %v756 = vld [vmem:[%s2 + $0xe0] sm:$0xff]
  %v757 = vld [vmem:[%s2 + $0xe8] sm:$0xff]
  %v758 = vld [vmem:[%s2 + $0xf0] sm:$0xff]
  %v759 = vld [vmem:[%s2 + $0xf8] sm:$0xff]
  %v760 = vld [vmem:[%s2 + $0x100] sm:$0xff]
  %v761 = vld [vmem:[%s2 + $0x108] sm:$0xff]
  %v762 = vld [vmem:[%s2 + $0x110] sm:$0xff]
  %v763 = vld [vmem:[%s2 + $0x118] sm:$0xff]
  %v764 = vld [vmem:[%s2 + $0x120] sm:$0xff]
  %v765 = vld [vmem:[%s2 + $0x128] sm:$0xff]
  %v766 = vld [vmem:[%s2 + $0x130] sm:$0xff]
  %v767 = vld [vmem:[%s2 + $0x138] sm:$0xff]
  %v768 = vld [vmem:[%s2 + $0x140] sm:$0xff]
  %v769 = vld [vmem:[%s2 + $0x148] sm:$0xff]
  %v770 = vld [vmem:[%s2 + $0x150] sm:$0xff]
  %v771 = vld [vmem:[%s2 + $0x158] sm:$0xff]
  %v772 = vld [vmem:[%s2 + $0x160] sm:$0xff]
  %v773 = vld [vmem:[%s2 + $0x168] sm:$0xff]
  %v774 = vld [vmem:[%s2 + $0x170] sm:$0xff]
  %v775 = vld [vmem:[%s2 + $0x178] sm:$0xff]
  %v776 = vld [vmem:[%s2 + $0x180] sm:$0xff]
  %v777 = vld [vmem:[%s2 + $0x188] sm:$0xff]
  %v778 = vld [vmem:[%s2 + $0x190] sm:$0xff]
  %v779 = vld [vmem:[%s2 + $0x198] sm:$0xff]
  %v780 = vld [vmem:[%s2 + $0x1a0] sm:$0xff]
  %v781 = vld [vmem:[%s2 + $0x1a8] sm:$0xff]
  %v782 = vld [vmem:[%s2 + $0x1b0] sm:$0xff]
  %v783 = vld [vmem:[%s2 + $0x1b8] sm:$0xff]
  %v784 = vld [vmem:[%s2 + $0x1c0] sm:$0xff]
  %v785 = vld [vmem:[%s2 + $0x1c8] sm:$0xff]
  %v786 = vld [vmem:[%s2 + $0x1d0] sm:$0xff]
  %v787 = vld [vmem:[%s2 + $0x1d8] sm:$0xff]
  %v788 = vld [vmem:[%s2 + $0x1e0] sm:$0xff]
  %v789 = vld [vmem:[%s2 + $0x1e8] sm:$0xff]
  %v790 = vld [vmem:[%s2 + $0x1f0] sm:$0xff]
  %v791 = vld [vmem:[%s2 + $0x1f8] sm:$0xff]
  %v792 = vld [vmem:[%s2 + $0x200] sm:$0xff]
  %v793 = vld [vmem:[%s2 + $0x208] sm:$0xff]
  %v794 = vld [vmem:[%s2 + $0x210] sm:$0xff]
  %v795 = vld [vmem:[%s2 + $0x218] sm:$0xff]
  %v796 = vld [vmem:[%s2 + $0x220] sm:$0xff]
  %v797 = vld [vmem:[%s2 + $0x228] sm:$0xff]
  %v798 = vld [vmem:[%s2 + $0x230] sm:$0xff]
  %v799 = vld [vmem:[%s2 + $0x238] sm:$0xff]
  %v800 = vld [vmem:[%s2 + $0x240] sm:$0xff]
  %v801 = vld [vmem:[%s2 + $0x248] sm:$0xff]
  %v802 = vld [vmem:[%s2 + $0x250] sm:$0xff]
  %v803 = vld [vmem:[%s2 + $0x258] sm:$0xff]
  %v804 = vld [vmem:[%s2 + $0x260] sm:$0xff]
  %v805 = vld [vmem:[%s2 + $0x268] sm:$0xff]
  %v806 = vld [vmem:[%s2 + $0x270] sm:$0xff]
  %v807 = vld [vmem:[%s2 + $0x278] sm:$0xff]
  %v808 = vld [vmem:[%s2 + $0x280] sm:$0xff]
  %v809 = vld [vmem:[%s2 + $0x288] sm:$0xff]
  %v810 = vld [vmem:[%s2 + $0x290] sm:$0xff]
  %v811 = vld [vmem:[%s2 + $0x298] sm:$0xff]
  %v812 = vld [vmem:[%s2 + $0x2a0] sm:$0xff]
  %v813 = vld [vmem:[%s2 + $0x2a8] sm:$0xff]
  %v814 = vld [vmem:[%s2 + $0x2b0] sm:$0xff]
  %v815 = vld [vmem:[%s2 + $0x2b8] sm:$0xff]
  %v816 = vld [vmem:[%s2 + $0x2c0] sm:$0xff]
  %v817 = vld [vmem:[%s2 + $0x2c8] sm:$0xff]
  %v818 = vld [vmem:[%s2 + $0x2d0] sm:$0xff]
  %v819 = vld [vmem:[%s2 + $0x2d8] sm:$0xff]
  %v820 = vld [vmem:[%s2 + $0x2e0] sm:$0xff]
  %v821 = vld [vmem:[%s2 + $0x2e8] sm:$0xff]
  %v822 = vld [vmem:[%s2 + $0x2f0] sm:$0xff]
  %v823 = vld [vmem:[%s2 + $0x2f8] sm:$0xff]
  %v824 = vld [vmem:[%s2 + $0x300] sm:$0xff]
  %v825 = vld [vmem:[%s2 + $0x308] sm:$0xff]
  %v826 = vld [vmem:[%s2 + $0x310] sm:$0xff]
  %v827 = vld [vmem:[%s2 + $0x318] sm:$0xff]
  %v828 = vld [vmem:[%s2 + $0x320] sm:$0xff]
  %v829 = vld [vmem:[%s2 + $0x328] sm:$0xff]
  %v830 = vld [vmem:[%s2 + $0x330] sm:$0xff]
  %v831 = vld [vmem:[%s2 + $0x338] sm:$0xff]
  %v832 = vld [vmem:[%s2 + $0x340] sm:$0xff]
  %v833 = vld [vmem:[%s2 + $0x348] sm:$0xff]
  %v834 = vld [vmem:[%s2 + $0x350] sm:$0xff]
  %v835 = vld [vmem:[%s2 + $0x358] sm:$0xff]
  %v836 = vld [vmem:[%s2 + $0x360] sm:$0xff]
  %v837 = vld [vmem:[%s2 + $0x368] sm:$0xff]
  %v838 = vld [vmem:[%s2 + $0x370] sm:$0xff]
  %v839 = vld [vmem:[%s2 + $0x378] sm:$0xff]
  %v840 = vld [vmem:[%s2 + $0x380] sm:$0xff]
  %v841 = vld [vmem:[%s2 + $0x388] sm:$0xff]
  %v842 = vld [vmem:[%s2 + $0x390] sm:$0xff]
  %v843 = vld [vmem:[%s2 + $0x398] sm:$0xff]
  %v844 = vld [vmem:[%s2 + $0x3a0] sm:$0xff]
  %v845 = vld [vmem:[%s2 + $0x3a8] sm:$0xff]
  %v846 = vld [vmem:[%s2 + $0x3b0] sm:$0xff]
  %v847 = vld [vmem:[%s2 + $0x3b8] sm:$0xff]
  %v848 = vld [vmem:[%s2 + $0x3c0] sm:$0xff]
  %v849 = vld [vmem:[%s2 + $0x3c8] sm:$0xff]
  %v850 = vld [vmem:[%s2 + $0x3d0] sm:$0xff]
  %v851 = vld [vmem:[%s2 + $0x3d8] sm:$0xff]
  %v852 = vld [vmem:[%s2 + $0x3e0] sm:$0xff]
  %v853 = vld [vmem:[%s2 + $0x3e8] sm:$0xff]
  %v854 = vld [vmem:[%s2 + $0x3f0] sm:$0xff]
  %v855 = vld [vmem:[%s2 + $0x3f8] sm:$0xff]
  %v856 = vld [vmem:[%s2 + $0x400] sm:$0xff]
  %v857 = vld [vmem:[%s2 + $0x408] sm:$0xff]
  %v858 = vld [vmem:[%s2 + $0x410] sm:$0xff]
  %v859 = vld [vmem:[%s2 + $0x418] sm:$0xff]
  %v860 = vld [vmem:[%s2 + $0x420] sm:$0xff]
  %v861 = vld [vmem:[%s2 + $0x428] sm:$0xff]
  %v862 = vld [vmem:[%s2 + $0x430] sm:$0xff]
  %v863 = vld [vmem:[%s2 + $0x438] sm:$0xff]
  %v864 = vld [vmem:[%s2 + $0x440] sm:$0xff]
  %v865 = vld [vmem:[%s2 + $0x448] sm:$0xff]
  %v866 = vld [vmem:[%s2 + $0x450] sm:$0xff]
  %v867 = vld [vmem:[%s2 + $0x458] sm:$0xff]
  %v868 = vld [vmem:[%s2 + $0x460] sm:$0xff]
  %v869 = vld [vmem:[%s2 + $0x468] sm:$0xff]
  %v870 = vld [vmem:[%s2 + $0x470] sm:$0xff]
  %v871 = vld [vmem:[%s2 + $0x478] sm:$0xff]
  %v872 = vld [vmem:[%s2 + $0x480] sm:$0xff]
  %v873 = vld [vmem:[%s2 + $0x488] sm:$0xff]
  %v874 = vld [vmem:[%s2 + $0x490] sm:$0xff]
  %v875 = vld [vmem:[%s2 + $0x498] sm:$0xff]
  %v876 = vld [vmem:[%s2 + $0x4a0] sm:$0xff]
  %v877 = vld [vmem:[%s2 + $0x4a8] sm:$0xff]
  %v878 = vld [vmem:[%s2 + $0x4b0] sm:$0xff]
  %v879 = vld [vmem:[%s2 + $0x4b8] sm:$0xff]
  %v880 = vld [vmem:[%s2 + $0x4c0] sm:$0xff]
  %v881 = vld [vmem:[%s2 + $0x4c8] sm:$0xff]
  %v882 = vld [vmem:[%s2 + $0x4d0] sm:$0xff]
  %v883 = vld [vmem:[%s2 + $0x4d8] sm:$0xff]
  %v884 = vld [vmem:[%s2 + $0x4e0] sm:$0xff]
  %v885 = vld [vmem:[%s2 + $0x4e8] sm:$0xff]
  %v886 = vld [vmem:[%s2 + $0x4f0] sm:$0xff]
  %v887 = vld [vmem:[%s2 + $0x4f8] sm:$0xff]
  %v888 = vld [vmem:[%s2 + $0x500] sm:$0xff]
  %v889 = vld [vmem:[%s2 + $0x508] sm:$0xff]
  %v890 = vld [vmem:[%s2 + $0x510] sm:$0xff]
  %v891 = vld [vmem:[%s2 + $0x518] sm:$0xff]
  %v892 = vld [vmem:[%s2 + $0x520] sm:$0xff]
  %v893 = vld [vmem:[%s2 + $0x528] sm:$0xff]
  %v894 = vld [vmem:[%s2 + $0x530] sm:$0xff]
  %v895 = vld [vmem:[%s2 + $0x538] sm:$0xff]
  %v896 = vld [vmem:[%s2 + $0x540] sm:$0xff]
  %v897 = vld [vmem:[%s2 + $0x548] sm:$0xff]
  %v898 = vld [vmem:[%s2 + $0x550] sm:$0xff]
  %v899 = vld [vmem:[%s2 + $0x558] sm:$0xff]
  %v900 = vld [vmem:[%s2 + $0x560] sm:$0xff]
  %v901 = vld [vmem:[%s2 + $0x568] sm:$0xff]
  %v902 = vld [vmem:[%s2 + $0x570] sm:$0xff]
  %v903 = vld [vmem:[%s2 + $0x578] sm:$0xff]
  %v904 = vld [vmem:[%s2 + $0x580] sm:$0xff]
  %v905 = vld [vmem:[%s2 + $0x588] sm:$0xff]
  %v906 = vld [vmem:[%s2 + $0x590] sm:$0xff]
  %v907 = vld [vmem:[%s2 + $0x598] sm:$0xff]
  %v908 = vld [vmem:[%s2 + $0x5a0] sm:$0xff]
  %v909 = vld [vmem:[%s2 + $0x5a8] sm:$0xff]
  %v910 = vld [vmem:[%s2 + $0x5b0] sm:$0xff]
  %v911 = vld [vmem:[%s2 + $0x5b8] sm:$0xff]
  %v912 = vld [vmem:[%s2 + $0x5c0] sm:$0xff]
  %v913 = vld [vmem:[%s2 + $0x5c8] sm:$0xff]
  %v914 = vld [vmem:[%s2 + $0x5d0] sm:$0xff]
  %v915 = vld [vmem:[%s2 + $0x5d8] sm:$0xff]
  %v916 = vld [vmem:[%s2 + $0x5e0] sm:$0xff]
  %v917 = vld [vmem:[%s2 + $0x5e8] sm:$0xff]
  %v918 = vld [vmem:[%s2 + $0x5f0] sm:$0xff]
  %v919 = vld [vmem:[%s2 + $0x5f8] sm:$0xff]
  %v920 = vld [vmem:[%s2 + $0x600] sm:$0xff]
  %v921 = vld [vmem:[%s2 + $0x608] sm:$0xff]
  %v922 = vld [vmem:[%s2 + $0x610] sm:$0xff]
  %v923 = vld [vmem:[%s2 + $0x618] sm:$0xff]
  %v924 = vld [vmem:[%s2 + $0x620] sm:$0xff]
  %v925 = vld [vmem:[%s2 + $0x628] sm:$0xff]
  %v926 = vld [vmem:[%s2 + $0x630] sm:$0xff]
  %v927 = vld [vmem:[%s2 + $0x638] sm:$0xff]
  %v928 = vld [vmem:[%s2 + $0x640] sm:$0xff]
  %v929 = vld [vmem:[%s2 + $0x648] sm:$0xff]
  %v930 = vld [vmem:[%s2 + $0x650] sm:$0xff]
  %v931 = vld [vmem:[%s2 + $0x658] sm:$0xff]
  %v932 = vld [vmem:[%s2 + $0x660] sm:$0xff]
  %v933 = vld [vmem:[%s2 + $0x668] sm:$0xff]
  %v934 = vld [vmem:[%s2 + $0x670] sm:$0xff]
  %v935 = vld [vmem:[%s2 + $0x678] sm:$0xff]
  %v936 = vld [vmem:[%s2 + $0x680] sm:$0xff]
  %v937 = vld [vmem:[%s2 + $0x688] sm:$0xff]
  %v938 = vld [vmem:[%s2 + $0x690] sm:$0xff]
  %v939 = vld [vmem:[%s2 + $0x698] sm:$0xff]
  %v940 = vld [vmem:[%s2 + $0x6a0] sm:$0xff]
  %v941 = vld [vmem:[%s2 + $0x6a8] sm:$0xff]
  %v942 = vld [vmem:[%s2 + $0x6b0] sm:$0xff]
  %v943 = vld [vmem:[%s2 + $0x6b8] sm:$0xff]
  %v944 = vld [vmem:[%s2 + $0x6c0] sm:$0xff]
  %v945 = vld [vmem:[%s2 + $0x6c8] sm:$0xff]
  %v946 = vld [vmem:[%s2 + $0x6d0] sm:$0xff]
  %v947 = vld [vmem:[%s2 + $0x6d8] sm:$0xff]
  %v948 = vld [vmem:[%s2 + $0x6e0] sm:$0xff]
  %v949 = vld [vmem:[%s2 + $0x6e8] sm:$0xff]
  %v950 = vld [vmem:[%s2 + $0x6f0] sm:$0xff]
  %v951 = vld [vmem:[%s2 + $0x6f8] sm:$0xff]
  %v952 = vld [vmem:[%s2 + $0x700] sm:$0xff]
  %v953 = vld [vmem:[%s2 + $0x708] sm:$0xff]
  %v954 = vld [vmem:[%s2 + $0x710] sm:$0xff]
  %v955 = vld [vmem:[%s2 + $0x718] sm:$0xff]
  %v956 = vld [vmem:[%s2 + $0x720] sm:$0xff]
  %v957 = vld [vmem:[%s2 + $0x728] sm:$0xff]
  %v958 = vld [vmem:[%s2 + $0x730] sm:$0xff]
  %v959 = vld [vmem:[%s2 + $0x738] sm:$0xff]
  %v960 = vld [vmem:[%s2 + $0x740] sm:$0xff]
  %v961 = vld [vmem:[%s2 + $0x748] sm:$0xff]
  %v962 = vld [vmem:[%s2 + $0x750] sm:$0xff]
  %v963 = vld [vmem:[%s2 + $0x758] sm:$0xff]
  %v964 = vld [vmem:[%s2 + $0x760] sm:$0xff]
  %v965 = vld [vmem:[%s2 + $0x768] sm:$0xff]
  %v966 = vld [vmem:[%s2 + $0x770] sm:$0xff]
  %v967 = vld [vmem:[%s2 + $0x778] sm:$0xff]
  %v968 = vld [vmem:[%s2 + $0x780] sm:$0xff]
  %v969 = vld [vmem:[%s2 + $0x788] sm:$0xff]
  %v970 = vld [vmem:[%s2 + $0x790] sm:$0xff]
  %v971 = vld [vmem:[%s2 + $0x798] sm:$0xff]
  %v972 = vld [vmem:[%s2 + $0x7a0] sm:$0xff]
  %v973 = vld [vmem:[%s2 + $0x7a8] sm:$0xff]
  %v974 = vld [vmem:[%s2 + $0x7b0] sm:$0xff]
  %v975 = vld [vmem:[%s2 + $0x7b8] sm:$0xff]
  %v976 = vld [vmem:[%s2 + $0x7c0] sm:$0xff]
  %v977 = vld [vmem:[%s2 + $0x7c8] sm:$0xff]
  %v978 = vld [vmem:[%s2 + $0x7d0] sm:$0xff]
  %v979 = vld [vmem:[%s2 + $0x7d8] sm:$0xff]
  %v980 = vld [vmem:[%s2 + $0x7e0] sm:$0xff]
  %v981 = vld [vmem:[%s2 + $0x7e8] sm:$0xff]
  %v982 = vld [vmem:[%s2 + $0x7f0] sm:$0xff]
  %v983 = vld [vmem:[%s2 + $0x7f8] sm:$0xff]
  %984 = vmatprep.subr.mxu0 %v729
  %985 = vmatpush1.msra.mxu0 %v728
  %986 = vmatprep.subr.mxu0 %v737
  %987 = vmatpush1.msra.mxu0 %v736
  %988 = vmatprep.subr.mxu0 %v745
  %989 = vmatpush1.msra.mxu0 %v744
  %990 = vmatprep.subr.mxu0 %v753
  %991 = vmatpush1.msra.mxu0 %v752
  %992 = vmatprep.subr.mxu0 %v761
  %993 = vmatpush1.msra.mxu0 %v760
  %994 = vmatprep.subr.mxu0 %v769
  %995 = vmatpush1.msra.mxu0 %v768
  %996 = vmatprep.subr.mxu0 %v777
  %997 = vmatpush1.msra.mxu0 %v776
  %998 = vmatprep.subr.mxu0 %v785
  %999 = vmatpush1.msra.mxu0 %v784
  %1000 = vmatprep.subr.mxu0 %v793
  %1001 = vmatpush1.msra.mxu0 %v792
  %1002 = vmatprep.subr.mxu0 %v801
  %1003 = vmatpush1.msra.mxu0 %v800
  %1004 = vmatprep.subr.mxu0 %v809
  %1005 = vmatpush1.msra.mxu0 %v808
  %1006 = vmatprep.subr.mxu0 %v817
  %1007 = vmatpush1.msra.mxu0 %v816
  %1008 = vmatprep.subr.mxu0 %v825
  %1009 = vmatpush1.msra.mxu0 %v824
  %1010 = vmatprep.subr.mxu0 %v833
  %1011 = vmatpush1.msra.mxu0 %v832
  %1012 = vmatprep.subr.mxu0 %v841
  %1013 = vmatpush1.msra.mxu0 %v840
  %1014 = vmatprep.subr.mxu0 %v849
  %1015 = vmatpush1.msra.mxu0 %v848
  %1016 = vmatprep.subr.mxu0 %v857
  %1017 = vmatpush1.msra.mxu0 %v856
  %1018 = vmatprep.subr.mxu0 %v865
  %1019 = vmatpush1.msra.mxu0 %v864
  %1020 = vmatprep.subr.mxu0 %v873
  %1021 = vmatpush1.msra.mxu0 %v872
  %1022 = vmatprep.subr.mxu0 %v881
  %1023 = vmatpush1.msra.mxu0 %v880
  %1024 = vmatprep.subr.mxu0 %v889
  %1025 = vmatpush1.msra.mxu0 %v888
  %1026 = vmatprep.subr.mxu0 %v897
  %1027 = vmatpush1.msra.mxu0 %v896
  %1028 = vmatprep.subr.mxu0 %v905
  %1029 = vmatpush1.msra.mxu0 %v904
  %1030 = vmatprep.subr.mxu0 %v913
  %1031 = vmatpush1.msra.mxu0 %v912
  %1032 = vmatprep.subr.mxu0 %v921
  %1033 = vmatpush1.msra.mxu0 %v920
  %1034 = vmatprep.subr.mxu0 %v929
  %1035 = vmatpush1.msra.mxu0 %v928
  %1036 = vmatprep.subr.mxu0 %v937
  %1037 = vmatpush1.msra.mxu0 %v936
  %1038 = vmatprep.subr.mxu0 %v945
  %1039 = vmatpush1.msra.mxu0 %v944
  %1040 = vmatprep.subr.mxu0 %v953
  %1041 = vmatpush1.msra.mxu0 %v952
  %1042 = vmatprep.subr.mxu0 %v961
  %1043 = vmatpush1.msra.mxu0 %v960
  %1044 = vmatprep.subr.mxu0 %v969
  %1045 = vmatpush1.msra.mxu0 %v968
  %1046 = vmatprep.subr.mxu0 %v977
  %1047 = vmatpush1.msra.mxu0 %v976
  %1048 = vmatprep.mubr.f32.mxu0 0.0
  %1049 = vmatmul.mubr.f32.gmra.mrb[0].mxu0 0.0
  %v1050 = vpop.f32.mrb[0].mxu0
  %v1051 = vadd.f32 0.0, %v1050
  %v1052 = vpop.f32.mrb[0].mxu0
  %v1053 = vadd.f32 0.0, %v1052
  %1054 = vdwg.mxu0
  %1055 = vmatprep.subr.mxu0 %v731
  %1056 = vmatpush1.msra.mxu0 %v730
  %1057 = vmatprep.subr.mxu0 %v739
  %1058 = vmatpush1.msra.mxu0 %v738
  %1059 = vmatprep.subr.mxu0 %v747
  %1060 = vmatpush1.msra.mxu0 %v746
  %1061 = vmatprep.subr.mxu0 %v755
  %1062 = vmatpush1.msra.mxu0 %v754
  %1063 = vmatprep.subr.mxu0 %v763
  %1064 = vmatpush1.msra.mxu0 %v762
  %1065 = vmatprep.subr.mxu0 %v771
  %1066 = vmatpush1.msra.mxu0 %v770
  %1067 = vmatprep.subr.mxu0 %v779
  %1068 = vmatpush1.msra.mxu0 %v778
  %1069 = vmatprep.subr.mxu0 %v787
  %1070 = vmatpush1.msra.mxu0 %v786
  %1071 = vmatprep.subr.mxu0 %v795
  %1072 = vmatpush1.msra.mxu0 %v794
  %1073 = vmatprep.subr.mxu0 %v803
  %1074 = vmatpush1.msra.mxu0 %v802
  %1075 = vmatprep.subr.mxu0 %v811
  %1076 = vmatpush1.msra.mxu0 %v810
  %1077 = vmatprep.subr.mxu0 %v819
  %1078 = vmatpush1.msra.mxu0 %v818
  %1079 = vmatprep.subr.mxu0 %v827
  %1080 = vmatpush1.msra.mxu0 %v826
  %1081 = vmatprep.subr.mxu0 %v835
  %1082 = vmatpush1.msra.mxu0 %v834
  %1083 = vmatprep.subr.mxu0 %v843
  %1084 = vmatpush1.msra.mxu0 %v842
  %1085 = vmatprep.subr.mxu0 %v851
  %1086 = vmatpush1.msra.mxu0 %v850
  %1087 = vmatprep.subr.mxu0 %v859
  %1088 = vmatpush1.msra.mxu0 %v858
  %1089 = vmatprep.subr.mxu0 %v867
  %1090 = vmatpush1.msra.mxu0 %v866
  %1091 = vmatprep.subr.mxu0 %v875
  %1092 = vmatpush1.msra.mxu0 %v874
  %1093 = vmatprep.subr.mxu0 %v883
  %1094 = vmatpush1.msra.mxu0 %v882
  %1095 = vmatprep.subr.mxu0 %v891
  %1096 = vmatpush1.msra.mxu0 %v890
  %1097 = vmatprep.subr.mxu0 %v899
  %1098 = vmatpush1.msra.mxu0 %v898
  %1099 = vmatprep.subr.mxu0 %v907
  %1100 = vmatpush1.msra.mxu0 %v906
  %1101 = vmatprep.subr.mxu0 %v915
  %1102 = vmatpush1.msra.mxu0 %v914
  %1103 = vmatprep.subr.mxu0 %v923
  %1104 = vmatpush1.msra.mxu0 %v922
  %1105 = vmatprep.subr.mxu0 %v931
  %1106 = vmatpush1.msra.mxu0 %v930
  %1107 = vmatprep.subr.mxu0 %v939
  %1108 = vmatpush1.msra.mxu0 %v938
  %1109 = vmatprep.subr.mxu0 %v947
  %1110 = vmatpush1.msra.mxu0 %v946
  %1111 = vmatprep.subr.mxu0 %v955
  %1112 = vmatpush1.msra.mxu0 %v954
  %1113 = vmatprep.subr.mxu0 %v963
  %1114 = vmatpush1.msra.mxu0 %v962
  %1115 = vmatprep.subr.mxu0 %v971
  %1116 = vmatpush1.msra.mxu0 %v970
  %1117 = vmatprep.subr.mxu0 %v979
  %1118 = vmatpush1.msra.mxu0 %v978
  %1119 = vmatprep.mubr.f32.mxu0 0.0
  %1120 = vmatmul.mubr.f32.gmra.mrb[0].mxu0 0.0
  %v1121 = vpop.f32.mrb[0].mxu0
  %v1122 = vadd.f32 0.0, %v1121
  %v1123 = vpop.f32.mrb[0].mxu0
  %v1124 = vadd.f32 0.0, %v1123
  %1125 = vdwg.mxu0
  %1126 = vmatprep.subr.mxu0 %v733
  %1127 = vmatpush1.msra.mxu0 %v732
  %1128 = vmatprep.subr.mxu0 %v741
  %1129 = vmatpush1.msra.mxu0 %v740
  %1130 = vmatprep.subr.mxu0 %v749
  %1131 = vmatpush1.msra.mxu0 %v748
  %1132 = vmatprep.subr.mxu0 %v757
  %1133 = vmatpush1.msra.mxu0 %v756
  %1134 = vmatprep.subr.mxu0 %v765
  %1135 = vmatpush1.msra.mxu0 %v764
  %1136 = vmatprep.subr.mxu0 %v773
  %1137 = vmatpush1.msra.mxu0 %v772
  %1138 = vmatprep.subr.mxu0 %v781
  %1139 = vmatpush1.msra.mxu0 %v780
  %1140 = vmatprep.subr.mxu0 %v789
  %1141 = vmatpush1.msra.mxu0 %v788
  %1142 = vmatprep.subr.mxu0 %v797
  %1143 = vmatpush1.msra.mxu0 %v796
  %1144 = vmatprep.subr.mxu0 %v805
  %1145 = vmatpush1.msra.mxu0 %v804
  %1146 = vmatprep.subr.mxu0 %v813
  %1147 = vmatpush1.msra.mxu0 %v812
  %1148 = vmatprep.subr.mxu0 %v821
  %1149 = vmatpush1.msra.mxu0 %v820
  %1150 = vmatprep.subr.mxu0 %v829
  %1151 = vmatpush1.msra.mxu0 %v828
  %1152 = vmatprep.subr.mxu0 %v837
  %1153 = vmatpush1.msra.mxu0 %v836
  %1154 = vmatprep.subr.mxu0 %v845
  %1155 = vmatpush1.msra.mxu0 %v844
  %1156 = vmatprep.subr.mxu0 %v853
  %1157 = vmatpush1.msra.mxu0 %v852
  %1158 = vmatprep.subr.mxu0 %v861
  %1159 = vmatpush1.msra.mxu0 %v860
  %1160 = vmatprep.subr.mxu0 %v869
  %1161 = vmatpush1.msra.mxu0 %v868
  %1162 = vmatprep.subr.mxu0 %v877
  %1163 = vmatpush1.msra.mxu0 %v876
  %1164 = vmatprep.subr.mxu0 %v885
  %1165 = vmatpush1.msra.mxu0 %v884
  %1166 = vmatprep.subr.mxu0 %v893
  %1167 = vmatpush1.msra.mxu0 %v892
  %1168 = vmatprep.subr.mxu0 %v901
  %1169 = vmatpush1.msra.mxu0 %v900
  %1170 = vmatprep.subr.mxu0 %v909
  %1171 = vmatpush1.msra.mxu0 %v908
  %1172 = vmatprep.subr.mxu0 %v917
  %1173 = vmatpush1.msra.mxu0 %v916
  %1174 = vmatprep.subr.mxu0 %v925
  %1175 = vmatpush1.msra.mxu0 %v924
  %1176 = vmatprep.subr.mxu0 %v933
  %1177 = vmatpush1.msra.mxu0 %v932
  %1178 = vmatprep.subr.mxu0 %v941
  %1179 = vmatpush1.msra.mxu0 %v940
  %1180 = vmatprep.subr.mxu0 %v949
  %1181 = vmatpush1.msra.mxu0 %v948
  %1182 = vmatprep.subr.mxu0 %v957
  %1183 = vmatpush1.msra.mxu0 %v956
  %1184 = vmatprep.subr.mxu0 %v965
  %1185 = vmatpush1.msra.mxu0 %v964
  %1186 = vmatprep.subr.mxu0 %v973
  %1187 = vmatpush1.msra.mxu0 %v972
  %1188 = vmatprep.subr.mxu0 %v981
  %1189 = vmatpush1.msra.mxu0 %v980
  %1190 = vmatprep.mubr.f32.mxu0 0.0
  %1191 = vmatmul.mubr.f32.gmra.mrb[0].mxu0 0.0
  %v1192 = vpop.f32.mrb[0].mxu0
  %v1193 = vadd.f32 0.0, %v1192
  %v1194 = vpop.f32.mrb[0].mxu0
  %v1195 = vadd.f32 0.0, %v1194
  %1196 = vdwg.mxu0
  %1197 = vmatprep.subr.mxu0 %v735
  %1198 = vmatpush1.msra.mxu0 %v734
  %1199 = vmatprep.subr.mxu0 %v743
  %1200 = vmatpush1.msra.mxu0 %v742
  %1201 = vmatprep.subr.mxu0 %v751
  %1202 = vmatpush1.msra.mxu0 %v750
  %1203 = vmatprep.subr.mxu0 %v759
  %1204 = vmatpush1.msra.mxu0 %v758
  %1205 = vmatprep.subr.mxu0 %v767
  %1206 = vmatpush1.msra.mxu0 %v766
  %1207 = vmatprep.subr.mxu0 %v775
  %1208 = vmatpush1.msra.mxu0 %v774
  %1209 = vmatprep.subr.mxu0 %v783
  %1210 = vmatpush1.msra.mxu0 %v782
  %1211 = vmatprep.subr.mxu0 %v791
  %1212 = vmatpush1.msra.mxu0 %v790
  %1213 = vmatprep.subr.mxu0 %v799
  %1214 = vmatpush1.msra.mxu0 %v798
  %1215 = vmatprep.subr.mxu0 %v807
  %1216 = vmatpush1.msra.mxu0 %v806
  %1217 = vmatprep.subr.mxu0 %v815
  %1218 = vmatpush1.msra.mxu0 %v814
  %1219 = vmatprep.subr.mxu0 %v823
  %1220 = vmatpush1.msra.mxu0 %v822
  %1221 = vmatprep.subr.mxu0 %v831
  %1222 = vmatpush1.msra.mxu0 %v830
  %1223 = vmatprep.subr.mxu0 %v839
  %1224 = vmatpush1.msra.mxu0 %v838
  %1225 = vmatprep.subr.mxu0 %v847
  %1226 = vmatpush1.msra.mxu0 %v846
  %1227 = vmatprep.subr.mxu0 %v855
  %1228 = vmatpush1.msra.mxu0 %v854
  %1229 = vmatprep.subr.mxu0 %v863
  %1230 = vmatpush1.msra.mxu0 %v862
  %1231 = vmatprep.subr.mxu0 %v871
  %1232 = vmatpush1.msra.mxu0 %v870
  %1233 = vmatprep.subr.mxu0 %v879
  %1234 = vmatpush1.msra.mxu0 %v878
  %1235 = vmatprep.subr.mxu0 %v887
  %1236 = vmatpush1.msra.mxu0 %v886
  %1237 = vmatprep.subr.mxu0 %v895
  %1238 = vmatpush1.msra.mxu0 %v894
  %1239 = vmatprep.subr.mxu0 %v903
  %1240 = vmatpush1.msra.mxu0 %v902
  %1241 = vmatprep.subr.mxu0 %v911
  %1242 = vmatpush1.msra.mxu0 %v910
  %1243 = vmatprep.subr.mxu0 %v919
  %1244 = vmatpush1.msra.mxu0 %v918
  %1245 = vmatprep.subr.mxu0 %v927
  %1246 = vmatpush1.msra.mxu0 %v926
  %1247 = vmatprep.subr.mxu0 %v935
  %1248 = vmatpush1.msra.mxu0 %v934
  %1249 = vmatprep.subr.mxu0 %v943
  %1250 = vmatpush1.msra.mxu0 %v942
  %1251 = vmatprep.subr.mxu0 %v951
  %1252 = vmatpush1.msra.mxu0 %v950
  %1253 = vmatprep.subr.mxu0 %v959
  %1254 = vmatpush1.msra.mxu0 %v958
  %1255 = vmatprep.subr.mxu0 %v967
  %1256 = vmatpush1.msra.mxu0 %v966
  %1257 = vmatprep.subr.mxu0 %v975
  %1258 = vmatpush1.msra.mxu0 %v974
  %1259 = vmatprep.subr.mxu0 %v983
  %1260 = vmatpush1.msra.mxu0 %v982
  %1261 = vmatprep.mubr.f32.mxu0 0.0
  %1262 = vmatmul.mubr.f32.gmra.mrb[0].mxu0 0.0
  %v1263 = vpop.f32.mrb[0].mxu0
  %v1264 = vadd.f32 0.0, %v1263
  %v1265 = vpop.f32.mrb[0].mxu0
  %v1266 = vadd.f32 0.0, %v1265
  %1267 = vdwg.mxu0
  %v1268 = vadd.f32 %v720, %v1051
  %v1269 = vadd.f32 %v721, %v1053
  %v1270 = vadd.f32 %v722, %v1122
  %v1271 = vadd.f32 %v723, %v1124
  %v1272 = vadd.f32 %v724, %v1193
  %v1273 = vadd.f32 %v725, %v1195
  %v1274 = vadd.f32 %v726, %v1264
  %v1275 = vadd.f32 %v727, %v1266
  %v1276 = vxor.u32 %v1268, 2147483648
  %v1277 = vxor.u32 %v1269, 2147483648
  %v1278 = vmul.f32 %v1276, 1.442695
  %v1279 = vpow.pop %v1278
  %v1280 = vmul.f32 %v1277, 1.442695
  %v1281 = vpow.pop %v1280
  %v1282 = vadd.f32 %v1279, 1.0
  %v1283 = vadd.f32 %v1281, 1.0
  %v1284 = vrcp.pop %v1282
  %v1285 = vmul.f32 1.0, %v1284
  %v1286 = vrcp.pop %v1283
  %v1287 = vmul.f32 1.0, %v1286
  %v1288 = vxor.u32 %v1270, 2147483648
  %v1289 = vxor.u32 %v1271, 2147483648
  %v1290 = vmul.f32 %v1288, 1.442695
  %v1291 = vpow.pop %v1290
  %v1292 = vmul.f32 %v1289, 1.442695
  %v1293 = vpow.pop %v1292
  %v1294 = vadd.f32 %v1291, 1.0
  %v1295 = vadd.f32 %v1293, 1.0
  %v1296 = vrcp.pop %v1294
  %v1297 = vmul.f32 1.0, %v1296
  %v1298 = vrcp.pop %v1295
  %v1299 = vmul.f32 1.0, %v1298
  %v1300 = vtanh.pop %v1272
  %v1301 = vtanh.pop %v1273
  %v1302 = vxor.u32 %v1274, 2147483648
  %v1303 = vxor.u32 %v1275, 2147483648
  %v1304 = vmul.f32 %v1302, 1.442695
  %v1305 = vpow.pop %v1304
  %v1306 = vmul.f32 %v1303, 1.442695
  %v1307 = vpow.pop %v1306
  %v1308 = vadd.f32 %v1305, 1.0
  %v1309 = vadd.f32 %v1307, 1.0
  %v1310 = vrcp.pop %v1308
  %v1311 = vmul.f32 1.0, %v1310
  %v1312 = vrcp.pop %v1309
  %v1313 = vmul.f32 1.0, %v1312
  %v1314 = vmul.f32 %v1297, 0.0
  %v1315 = vmul.f32 %v1299, 0.0
  %v1316 = vmul.f32 %v1285, %v1300
  %v1317 = vmul.f32 %v1287, %v1301
  %v1318 = vadd.f32 %v1314, %v1316
  %v1319 = vadd.f32 %v1315, %v1317
  %v1320 = vtanh.pop %v1318
  %v1321 = vtanh.pop %v1319
  %v1322 = vmul.f32 %v1311, %v1320
  %v1323 = vmul.f32 %v1313, %v1321
  %s1324 = smul.u32 1, 8
  %s1325 = smul.addr %s1324, 8
  %s1326 = scalar_lea.vmem [#allocation2], %s1325
  %v1327 = vld [vmem:[%s1326] sm:$0xff]
  %v1328 = vld [vmem:[%s1326 + $0x8] sm:$0xff]
  %v1329 = vld [vmem:[%s1326 + $0x10] sm:$0xff]
  %v1330 = vld [vmem:[%s1326 + $0x18] sm:$0xff]
  %v1331 = vld [vmem:[%s1326 + $0x20] sm:$0xff]
  %v1332 = vld [vmem:[%s1326 + $0x28] sm:$0xff]
  %v1333 = vld [vmem:[%s1326 + $0x30] sm:$0xff]
  %v1334 = vld [vmem:[%s1326 + $0x38] sm:$0xff]
  %1335 = vmatprep.subr.mxu0 %v729
  %1336 = vmatpush1.msra.mxu0 %v728
  %1337 = vmatprep.subr.mxu0 %v737
  %1338 = vmatpush1.msra.mxu0 %v736
  %1339 = vmatprep.subr.mxu0 %v745
  %1340 = vmatpush1.msra.mxu0 %v744
  %1341 = vmatprep.subr.mxu0 %v753
  %1342 = vmatpush1.msra.mxu0 %v752
  %1343 = vmatprep.subr.mxu0 %v761
  %1344 = vmatpush1.msra.mxu0 %v760
  %1345 = vmatprep.subr.mxu0 %v769
  %1346 = vmatpush1.msra.mxu0 %v768
  %1347 = vmatprep.subr.mxu0 %v777
  %1348 = vmatpush1.msra.mxu0 %v776
  %1349 = vmatprep.subr.mxu0 %v785
  %1350 = vmatpush1.msra.mxu0 %v784
  %1351 = vmatprep.subr.mxu0 %v793
  %1352 = vmatpush1.msra.mxu0 %v792
  %1353 = vmatprep.subr.mxu0 %v801
  %1354 = vmatpush1.msra.mxu0 %v800
  %1355 = vmatprep.subr.mxu0 %v809
  %1356 = vmatpush1.msra.mxu0 %v808
  %1357 = vmatprep.subr.mxu0 %v817
  %1358 = vmatpush1.msra.mxu0 %v816
  %1359 = vmatprep.subr.mxu0 %v825
  %1360 = vmatpush1.msra.mxu0 %v824
  %1361 = vmatprep.subr.mxu0 %v833
  %1362 = vmatpush1.msra.mxu0 %v832
  %1363 = vmatprep.subr.mxu0 %v841
  %1364 = vmatpush1.msra.mxu0 %v840
  %1365 = vmatprep.subr.mxu0 %v849
  %1366 = vmatpush1.msra.mxu0 %v848
  %1367 = vmatprep.subr.mxu0 %v857
  %1368 = vmatpush1.msra.mxu0 %v856
  %1369 = vmatprep.subr.mxu0 %v865
  %1370 = vmatpush1.msra.mxu0 %v864
  %1371 = vmatprep.subr.mxu0 %v873
  %1372 = vmatpush1.msra.mxu0 %v872
  %1373 = vmatprep.subr.mxu0 %v881
  %1374 = vmatpush1.msra.mxu0 %v880
  %1375 = vmatprep.subr.mxu0 %v889
  %1376 = vmatpush1.msra.mxu0 %v888
  %1377 = vmatprep.subr.mxu0 %v897
  %1378 = vmatpush1.msra.mxu0 %v896
  %1379 = vmatprep.subr.mxu0 %v905
  %1380 = vmatpush1.msra.mxu0 %v904
  %1381 = vmatprep.subr.mxu0 %v913
  %1382 = vmatpush1.msra.mxu0 %v912
  %1383 = vmatprep.subr.mxu0 %v921
  %1384 = vmatpush1.msra.mxu0 %v920
  %1385 = vmatprep.subr.mxu0 %v929
  %1386 = vmatpush1.msra.mxu0 %v928
  %1387 = vmatprep.subr.mxu0 %v937
  %1388 = vmatpush1.msra.mxu0 %v936
  %1389 = vmatprep.subr.mxu0 %v945
  %1390 = vmatpush1.msra.mxu0 %v944
  %1391 = vmatprep.subr.mxu0 %v953
  %1392 = vmatpush1.msra.mxu0 %v952
  %1393 = vmatprep.subr.mxu0 %v961
  %1394 = vmatpush1.msra.mxu0 %v960
  %1395 = vmatprep.subr.mxu0 %v969
  %1396 = vmatpush1.msra.mxu0 %v968
  %1397 = vmatprep.subr.mxu0 %v977
  %1398 = vmatpush1.msra.mxu0 %v976
  %1399 = vmatprep.mubr.f32.mxu0 %v1323
  %1400 = vmatmul.mubr.f32.gmra.mrb[0].mxu0 %v1322
  %v1401 = vpop.f32.mrb[0].mxu0
  %v1402 = vadd.f32 0.0, %v1401
  %v1403 = vpop.f32.mrb[0].mxu0
  %v1404 = vadd.f32 0.0, %v1403
  %1405 = vdwg.mxu0
  %1406 = vmatprep.subr.mxu0 %v731
  %1407 = vmatpush1.msra.mxu0 %v730
  %1408 = vmatprep.subr.mxu0 %v739
  %1409 = vmatpush1.msra.mxu0 %v738
  %1410 = vmatprep.subr.mxu0 %v747
  %1411 = vmatpush1.msra.mxu0 %v746
  %1412 = vmatprep.subr.mxu0 %v755
  %1413 = vmatpush1.msra.mxu0 %v754
  %1414 = vmatprep.subr.mxu0 %v763
  %1415 = vmatpush1.msra.mxu0 %v762
  %1416 = vmatprep.subr.mxu0 %v771
  %1417 = vmatpush1.msra.mxu0 %v770
  %1418 = vmatprep.subr.mxu0 %v779
  %1419 = vmatpush1.msra.mxu0 %v778
  %1420 = vmatprep.subr.mxu0 %v787
  %1421 = vmatpush1.msra.mxu0 %v786
  %1422 = vmatprep.subr.mxu0 %v795
  %1423 = vmatpush1.msra.mxu0 %v794
  %1424 = vmatprep.subr.mxu0 %v803
  %1425 = vmatpush1.msra.mxu0 %v802
  %1426 = vmatprep.subr.mxu0 %v811
  %1427 = vmatpush1.msra.mxu0 %v810
  %1428 = vmatprep.subr.mxu0 %v819
  %1429 = vmatpush1.msra.mxu0 %v818
  %1430 = vmatprep.subr.mxu0 %v827
  %1431 = vmatpush1.msra.mxu0 %v826
  %1432 = vmatprep.subr.mxu0 %v835
  %1433 = vmatpush1.msra.mxu0 %v834
  %1434 = vmatprep.subr.mxu0 %v843
  %1435 = vmatpush1.msra.mxu0 %v842
  %1436 = vmatprep.subr.mxu0 %v851
  %1437 = vmatpush1.msra.mxu0 %v850
  %1438 = vmatprep.subr.mxu0 %v859
  %1439 = vmatpush1.msra.mxu0 %v858
  %1440 = vmatprep.subr.mxu0 %v867
  %1441 = vmatpush1.msra.mxu0 %v866
  %1442 = vmatprep.subr.mxu0 %v875
  %1443 = vmatpush1.msra.mxu0 %v874
  %1444 = vmatprep.subr.mxu0 %v883
  %1445 = vmatpush1.msra.mxu0 %v882
  %1446 = vmatprep.subr.mxu0 %v891
  %1447 = vmatpush1.msra.mxu0 %v890
  %1448 = vmatprep.subr.mxu0 %v899
  %1449 = vmatpush1.msra.mxu0 %v898
  %1450 = vmatprep.subr.mxu0 %v907
  %1451 = vmatpush1.msra.mxu0 %v906
  %1452 = vmatprep.subr.mxu0 %v915
  %1453 = vmatpush1.msra.mxu0 %v914
  %1454 = vmatprep.subr.mxu0 %v923
  %1455 = vmatpush1.msra.mxu0 %v922
  %1456 = vmatprep.subr.mxu0 %v931
  %1457 = vmatpush1.msra.mxu0 %v930
  %1458 = vmatprep.subr.mxu0 %v939
  %1459 = vmatpush1.msra.mxu0 %v938
  %1460 = vmatprep.subr.mxu0 %v947
  %1461 = vmatpush1.msra.mxu0 %v946
  %1462 = vmatprep.subr.mxu0 %v955
  %1463 = vmatpush1.msra.mxu0 %v954
  %1464 = vmatprep.subr.mxu0 %v963
  %1465 = vmatpush1.msra.mxu0 %v962
  %1466 = vmatprep.subr.mxu0 %v971
  %1467 = vmatpush1.msra.mxu0 %v970
  %1468 = vmatprep.subr.mxu0 %v979
  %1469 = vmatpush1.msra.mxu0 %v978
  %1470 = vmatprep.mubr.f32.mxu0 %v1323
  %1471 = vmatmul.mubr.f32.gmra.mrb[0].mxu0 %v1322
  %v1472 = vpop.f32.mrb[0].mxu0
  %v1473 = vadd.f32 0.0, %v1472
  %v1474 = vpop.f32.mrb[0].mxu0
  %v1475 = vadd.f32 0.0, %v1474
  %1476 = vdwg.mxu0
  %1477 = vmatprep.subr.mxu0 %v733
  %1478 = vmatpush1.msra.mxu0 %v732
  %1479 = vmatprep.subr.mxu0 %v741
  %1480 = vmatpush1.msra.mxu0 %v740
  %1481 = vmatprep.subr.mxu0 %v749
  %1482 = vmatpush1.msra.mxu0 %v748
  %1483 = vmatprep.subr.mxu0 %v757
  %1484 = vmatpush1.msra.mxu0 %v756
  %1485 = vmatprep.subr.mxu0 %v765
  %1486 = vmatpush1.msra.mxu0 %v764
  %1487 = vmatprep.subr.mxu0 %v773
  %1488 = vmatpush1.msra.mxu0 %v772
  %1489 = vmatprep.subr.mxu0 %v781
  %1490 = vmatpush1.msra.mxu0 %v780
  %1491 = vmatprep.subr.mxu0 %v789
  %1492 = vmatpush1.msra.mxu0 %v788
  %1493 = vmatprep.subr.mxu0 %v797
  %1494 = vmatpush1.msra.mxu0 %v796
  %1495 = vmatprep.subr.mxu0 %v805
  %1496 = vmatpush1.msra.mxu0 %v804
  %1497 = vmatprep.subr.mxu0 %v813
  %1498 = vmatpush1.msra.mxu0 %v812
  %1499 = vmatprep.subr.mxu0 %v821
  %1500 = vmatpush1.msra.mxu0 %v820
  %1501 = vmatprep.subr.mxu0 %v829
  %1502 = vmatpush1.msra.mxu0 %v828
  %1503 = vmatprep.subr.mxu0 %v837
  %1504 = vmatpush1.msra.mxu0 %v836
  %1505 = vmatprep.subr.mxu0 %v845
  %1506 = vmatpush1.msra.mxu0 %v844
  %1507 = vmatprep.subr.mxu0 %v853
  %1508 = vmatpush1.msra.mxu0 %v852
  %1509 = vmatprep.subr.mxu0 %v861
  %1510 = vmatpush1.msra.mxu0 %v860
  %1511 = vmatprep.subr.mxu0 %v869
  %1512 = vmatpush1.msra.mxu0 %v868
  %1513 = vmatprep.subr.mxu0 %v877
  %1514 = vmatpush1.msra.mxu0 %v876
  %1515 = vmatprep.subr.mxu0 %v885
  %1516 = vmatpush1.msra.mxu0 %v884
  %1517 = vmatprep.subr.mxu0 %v893
  %1518 = vmatpush1.msra.mxu0 %v892
  %1519 = vmatprep.subr.mxu0 %v901
  %1520 = vmatpush1.msra.mxu0 %v900
  %1521 = vmatprep.subr.mxu0 %v909
  %1522 = vmatpush1.msra.mxu0 %v908
  %1523 = vmatprep.subr.mxu0 %v917
  %1524 = vmatpush1.msra.mxu0 %v916
  %1525 = vmatprep.subr.mxu0 %v925
  %1526 = vmatpush1.msra.mxu0 %v924
  %1527 = vmatprep.subr.mxu0 %v933
  %1528 = vmatpush1.msra.mxu0 %v932
  %1529 = vmatprep.subr.mxu0 %v941
  %1530 = vmatpush1.msra.mxu0 %v940
  %1531 = vmatprep.subr.mxu0 %v949
  %1532 = vmatpush1.msra.mxu0 %v948
  %1533 = vmatprep.subr.mxu0 %v957
  %1534 = vmatpush1.msra.mxu0 %v956
  %1535 = vmatprep.subr.mxu0 %v965
  %1536 = vmatpush1.msra.mxu0 %v964
  %1537 = vmatprep.subr.mxu0 %v973
  %1538 = vmatpush1.msra.mxu0 %v972
  %1539 = vmatprep.subr.mxu0 %v981
  %1540 = vmatpush1.msra.mxu0 %v980
  %1541 = vmatprep.mubr.f32.mxu0 %v1323
  %1542 = vmatmul.mubr.f32.gmra.mrb[0].mxu0 %v1322
  %v1543 = vpop.f32.mrb[0].mxu0
  %v1544 = vadd.f32 0.0, %v1543
  %v1545 = vpop.f32.mrb[0].mxu0
  %v1546 = vadd.f32 0.0, %v1545
  %1547 = vdwg.mxu0
  %1548 = vmatprep.subr.mxu0 %v735
  %1549 = vmatpush1.msra.mxu0 %v734
  %1550 = vmatprep.subr.mxu0 %v743
  %1551 = vmatpush1.msra.mxu0 %v742
  %1552 = vmatprep.subr.mxu0 %v751
  %1553 = vmatpush1.msra.mxu0 %v750
  %1554 = vmatprep.subr.mxu0 %v759
  %1555 = vmatpush1.msra.mxu0 %v758
  %1556 = vmatprep.subr.mxu0 %v767
  %1557 = vmatpush1.msra.mxu0 %v766
  %1558 = vmatprep.subr.mxu0 %v775
  %1559 = vmatpush1.msra.mxu0 %v774
  %1560 = vmatprep.subr.mxu0 %v783
  %1561 = vmatpush1.msra.mxu0 %v782
  %1562 = vmatprep.subr.mxu0 %v791
  %1563 = vmatpush1.msra.mxu0 %v790
  %1564 = vmatprep.subr.mxu0 %v799
  %1565 = vmatpush1.msra.mxu0 %v798
  %1566 = vmatprep.subr.mxu0 %v807
  %1567 = vmatpush1.msra.mxu0 %v806
  %1568 = vmatprep.subr.mxu0 %v815
  %1569 = vmatpush1.msra.mxu0 %v814
  %1570 = vmatprep.subr.mxu0 %v823
  %1571 = vmatpush1.msra.mxu0 %v822
  %1572 = vmatprep.subr.mxu0 %v831
  %1573 = vmatpush1.msra.mxu0 %v830
  %1574 = vmatprep.subr.mxu0 %v839
  %1575 = vmatpush1.msra.mxu0 %v838
  %1576 = vmatprep.subr.mxu0 %v847
  %1577 = vmatpush1.msra.mxu0 %v846
  %1578 = vmatprep.subr.mxu0 %v855
  %1579 = vmatpush1.msra.mxu0 %v854
  %1580 = vmatprep.subr.mxu0 %v863
  %1581 = vmatpush1.msra.mxu0 %v862
  %1582 = vmatprep.subr.mxu0 %v871
  %1583 = vmatpush1.msra.mxu0 %v870
  %1584 = vmatprep.subr.mxu0 %v879
  %1585 = vmatpush1.msra.mxu0 %v878
  %1586 = vmatprep.subr.mxu0 %v887
  %1587 = vmatpush1.msra.mxu0 %v886
  %1588 = vmatprep.subr.mxu0 %v895
  %1589 = vmatpush1.msra.mxu0 %v894
  %1590 = vmatprep.subr.mxu0 %v903
  %1591 = vmatpush1.msra.mxu0 %v902
  %1592 = vmatprep.subr.mxu0 %v911
  %1593 = vmatpush1.msra.mxu0 %v910
  %1594 = vmatprep.subr.mxu0 %v919
  %1595 = vmatpush1.msra.mxu0 %v918
  %1596 = vmatprep.subr.mxu0 %v927
  %1597 = vmatpush1.msra.mxu0 %v926
  %1598 = vmatprep.subr.mxu0 %v935
  %1599 = vmatpush1.msra.mxu0 %v934
  %1600 = vmatprep.subr.mxu0 %v943
  %1601 = vmatpush1.msra.mxu0 %v942
  %1602 = vmatprep.subr.mxu0 %v951
  %1603 = vmatpush1.msra.mxu0 %v950
  %1604 = vmatprep.subr.mxu0 %v959
  %1605 = vmatpush1.msra.mxu0 %v958
  %1606 = vmatprep.subr.mxu0 %v967
  %1607 = vmatpush1.msra.mxu0 %v966
  %1608 = vmatprep.subr.mxu0 %v975
  %1609 = vmatpush1.msra.mxu0 %v974
  %1610 = vmatprep.subr.mxu0 %v983
  %1611 = vmatpush1.msra.mxu0 %v982
  %1612 = vmatprep.mubr.f32.mxu0 %v1323
  %1613 = vmatmul.mubr.f32.gmra.mrb[0].mxu0 %v1322
  %v1614 = vpop.f32.mrb[0].mxu0
  %v1615 = vadd.f32 0.0, %v1614
  %v1616 = vpop.f32.mrb[0].mxu0
  %v1617 = vadd.f32 0.0, %v1616
  %1618 = vdwg.mxu0
  %v1619 = vadd.f32 %v1327, %v1402
  %v1620 = vadd.f32 %v1328, %v1404
  %v1621 = vadd.f32 %v1329, %v1473
  %v1622 = vadd.f32 %v1330, %v1475
  %v1623 = vadd.f32 %v1331, %v1544
  %v1624 = vadd.f32 %v1332, %v1546
  %v1625 = vadd.f32 %v1333, %v1615
  %v1626 = vadd.f32 %v1334, %v1617
  %v1627 = vxor.u32 %v1619, 2147483648
  %v1628 = vxor.u32 %v1620, 2147483648
  %v1629 = vmul.f32 %v1627, 1.442695
  %v1630 = vpow.pop %v1629
  %v1631 = vmul.f32 %v1628, 1.442695
  %v1632 = vpow.pop %v1631
  %v1633 = vadd.f32 %v1630, 1.0
  %v1634 = vadd.f32 %v1632, 1.0
  %v1635 = vrcp.pop %v1633
  %v1636 = vmul.f32 1.0, %v1635
  %v1637 = vrcp.pop %v1634
  %v1638 = vmul.f32 1.0, %v1637
  %v1639 = vxor.u32 %v1621, 2147483648
  %v1640 = vxor.u32 %v1622, 2147483648
  %v1641 = vmul.f32 %v1639, 1.442695
  %v1642 = vpow.pop %v1641
  %v1643 = vmul.f32 %v1640, 1.442695
  %v1644 = vpow.pop %v1643
  %v1645 = vadd.f32 %v1642, 1.0
  %v1646 = vadd.f32 %v1644, 1.0
  %v1647 = vrcp.pop %v1645
  %v1648 = vmul.f32 1.0, %v1647
  %v1649 = vrcp.pop %v1646
  %v1650 = vmul.f32 1.0, %v1649
  %v1651 = vtanh.pop %v1623
  %v1652 = vtanh.pop %v1624
  %v1653 = vxor.u32 %v1625, 2147483648
  %v1654 = vxor.u32 %v1626, 2147483648
  %v1655 = vmul.f32 %v1653, 1.442695
  %v1656 = vpow.pop %v1655
  %v1657 = vmul.f32 %v1654, 1.442695
  %v1658 = vpow.pop %v1657
  %v1659 = vadd.f32 %v1656, 1.0
  %v1660 = vadd.f32 %v1658, 1.0
  %v1661 = vrcp.pop %v1659
  %v1662 = vmul.f32 1.0, %v1661
  %v1663 = vrcp.pop %v1660
  %v1664 = vmul.f32 1.0, %v1663
  %v1665 = vmul.f32 %v1648, %v1318
  %v1666 = vmul.f32 %v1650, %v1319
  %v1667 = vmul.f32 %v1636, %v1651
  %v1668 = vmul.f32 %v1638, %v1652
  %v1669 = vadd.f32 %v1665, %v1667
  %v1670 = vadd.f32 %v1666, %v1668
  %v1671 = vtanh.pop %v1669
  %v1672 = vtanh.pop %v1670
  %v1673 = vmul.f32 %v1662, %v1671
  %v1674 = vmul.f32 %v1664, %v1672
  %s1675 = smul.u32 2, 8
  %s1676 = smul.addr %s1675, 8
  %s1677 = scalar_lea.vmem [#allocation2], %s1676
  %v1678 = vld [vmem:[%s1677] sm:$0xff]
  %v1679 = vld [vmem:[%s1677 + $0x8] sm:$0xff]
  %v1680 = vld [vmem:[%s1677 + $0x10] sm:$0xff]
  %v1681 = vld [vmem:[%s1677 + $0x18] sm:$0xff]
  %v1682 = vld [vmem:[%s1677 + $0x20] sm:$0xff]
  %v1683 = vld [vmem:[%s1677 + $0x28] sm:$0xff]
  %v1684 = vld [vmem:[%s1677 + $0x30] sm:$0xff]
  %v1685 = vld [vmem:[%s1677 + $0x38] sm:$0xff]
  %1686 = vmatprep.subr.mxu0 %v729
  %1687 = vmatpush1.msra.mxu0 %v728
  %1688 = vmatprep.subr.mxu0 %v737
  %1689 = vmatpush1.msra.mxu0 %v736
  %1690 = vmatprep.subr.mxu0 %v745
  %1691 = vmatpush1.msra.mxu0 %v744
  %1692 = vmatprep.subr.mxu0 %v753
  %1693 = vmatpush1.msra.mxu0 %v752
  %1694 = vmatprep.subr.mxu0 %v761
  %1695 = vmatpush1.msra.mxu0 %v760
  %1696 = vmatprep.subr.mxu0 %v769
  %1697 = vmatpush1.msra.mxu0 %v768
  %1698 = vmatprep.subr.mxu0 %v777
  %1699 = vmatpush1.msra.mxu0 %v776
  %1700 = vmatprep.subr.mxu0 %v785
  %1701 = vmatpush1.msra.mxu0 %v784
  %1702 = vmatprep.subr.mxu0 %v793
  %1703 = vmatpush1.msra.mxu0 %v792
  %1704 = vmatprep.subr.mxu0 %v801
  %1705 = vmatpush1.msra.mxu0 %v800
  %1706 = vmatprep.subr.mxu0 %v809
  %1707 = vmatpush1.msra.mxu0 %v808
  %1708 = vmatprep.subr.mxu0 %v817
  %1709 = vmatpush1.msra.mxu0 %v816
  %1710 = vmatprep.subr.mxu0 %v825
  %1711 = vmatpush1.msra.mxu0 %v824
  %1712 = vmatprep.subr.mxu0 %v833
  %1713 = vmatpush1.msra.mxu0 %v832
  %1714 = vmatprep.subr.mxu0 %v841
  %1715 = vmatpush1.msra.mxu0 %v840
  %1716 = vmatprep.subr.mxu0 %v849
  %1717 = vmatpush1.msra.mxu0 %v848
  %1718 = vmatprep.subr.mxu0 %v857
  %1719 = vmatpush1.msra.mxu0 %v856
  %1720 = vmatprep.subr.mxu0 %v865
  %1721 = vmatpush1.msra.mxu0 %v864
  %1722 = vmatprep.subr.mxu0 %v873
  %1723 = vmatpush1.msra.mxu0 %v872
  %1724 = vmatprep.subr.mxu0 %v881
  %1725 = vmatpush1.msra.mxu0 %v880
  %1726 = vmatprep.subr.mxu0 %v889
  %1727 = vmatpush1.msra.mxu0 %v888
  %1728 = vmatprep.subr.mxu0 %v897
  %1729 = vmatpush1.msra.mxu0 %v896
  %1730 = vmatprep.subr.mxu0 %v905
  %1731 = vmatpush1.msra.mxu0 %v904
  %1732 = vmatprep.subr.mxu0 %v913
  %1733 = vmatpush1.msra.mxu0 %v912
  %1734 = vmatprep.subr.mxu0 %v921
  %1735 = vmatpush1.msra.mxu0 %v920
  %1736 = vmatprep.subr.mxu0 %v929
  %1737 = vmatpush1.msra.mxu0 %v928
  %1738 = vmatprep.subr.mxu0 %v937
  %1739 = vmatpush1.msra.mxu0 %v936
  %1740 = vmatprep.subr.mxu0 %v945
  %1741 = vmatpush1.msra.mxu0 %v944
  %1742 = vmatprep.subr.mxu0 %v953
  %1743 = vmatpush1.msra.mxu0 %v952
  %1744 = vmatprep.subr.mxu0 %v961
  %1745 = vmatpush1.msra.mxu0 %v960
  %1746 = vmatprep.subr.mxu0 %v969
  %1747 = vmatpush1.msra.mxu0 %v968
  %1748 = vmatprep.subr.mxu0 %v977
  %1749 = vmatpush1.msra.mxu0 %v976
  %1750 = vmatprep.mubr.f32.mxu0 %v1674
  %1751 = vmatmul.mubr.f32.gmra.mrb[0].mxu0 %v1673
  %v1752 = vpop.f32.mrb[0].mxu0
  %v1753 = vadd.f32 0.0, %v1752
  %v1754 = vpop.f32.mrb[0].mxu0
  %v1755 = vadd.f32 0.0, %v1754
  %1756 = vdwg.mxu0
  %1757 = vmatprep.subr.mxu0 %v731
  %1758 = vmatpush1.msra.mxu0 %v730
  %1759 = vmatprep.subr.mxu0 %v739
  %1760 = vmatpush1.msra.mxu0 %v738
  %1761 = vmatprep.subr.mxu0 %v747
  %1762 = vmatpush1.msra.mxu0 %v746
  %1763 = vmatprep.subr.mxu0 %v755
  %1764 = vmatpush1.msra.mxu0 %v754
  %1765 = vmatprep.subr.mxu0 %v763
  %1766 = vmatpush1.msra.mxu0 %v762
  %1767 = vmatprep.subr.mxu0 %v771
  %1768 = vmatpush1.msra.mxu0 %v770
  %1769 = vmatprep.subr.mxu0 %v779
  %1770 = vmatpush1.msra.mxu0 %v778
  %1771 = vmatprep.subr.mxu0 %v787
  %1772 = vmatpush1.msra.mxu0 %v786
  %1773 = vmatprep.subr.mxu0 %v795
  %1774 = vmatpush1.msra.mxu0 %v794
  %1775 = vmatprep.subr.mxu0 %v803
  %1776 = vmatpush1.msra.mxu0 %v802
  %1777 = vmatprep.subr.mxu0 %v811
  %1778 = vmatpush1.msra.mxu0 %v810
  %1779 = vmatprep.subr.mxu0 %v819
  %1780 = vmatpush1.msra.mxu0 %v818
  %1781 = vmatprep.subr.mxu0 %v827
  %1782 = vmatpush1.msra.mxu0 %v826
  %1783 = vmatprep.subr.mxu0 %v835
  %1784 = vmatpush1.msra.mxu0 %v834
  %1785 = vmatprep.subr.mxu0 %v843
  %1786 = vmatpush1.msra.mxu0 %v842
  %1787 = vmatprep.subr.mxu0 %v851
  %1788 = vmatpush1.msra.mxu0 %v850
  %1789 = vmatprep.subr.mxu0 %v859
  %1790 = vmatpush1.msra.mxu0 %v858
  %1791 = vmatprep.subr.mxu0 %v867
  %1792 = vmatpush1.msra.mxu0 %v866
  %1793 = vmatprep.subr.mxu0 %v875
  %1794 = vmatpush1.msra.mxu0 %v874
  %1795 = vmatprep.subr.mxu0 %v883
  %1796 = vmatpush1.msra.mxu0 %v882
  %1797 = vmatprep.subr.mxu0 %v891
  %1798 = vmatpush1.msra.mxu0 %v890
  %1799 = vmatprep.subr.mxu0 %v899
  %1800 = vmatpush1.msra.mxu0 %v898
  %1801 = vmatprep.subr.mxu0 %v907
  %1802 = vmatpush1.msra.mxu0 %v906
  %1803 = vmatprep.subr.mxu0 %v915
  %1804 = vmatpush1.msra.mxu0 %v914
  %1805 = vmatprep.subr.mxu0 %v923
  %1806 = vmatpush1.msra.mxu0 %v922
  %1807 = vmatprep.subr.mxu0 %v931
  %1808 = vmatpush1.msra.mxu0 %v930
  %1809 = vmatprep.subr.mxu0 %v939
  %1810 = vmatpush1.msra.mxu0 %v938
  %1811 = vmatprep.subr.mxu0 %v947
  %1812 = vmatpush1.msra.mxu0 %v946
  %1813 = vmatprep.subr.mxu0 %v955
  %1814 = vmatpush1.msra.mxu0 %v954
  %1815 = vmatprep.subr.mxu0 %v963
  %1816 = vmatpush1.msra.mxu0 %v962
  %1817 = vmatprep.subr.mxu0 %v971
  %1818 = vmatpush1.msra.mxu0 %v970
  %1819 = vmatprep.subr.mxu0 %v979
  %1820 = vmatpush1.msra.mxu0 %v978
  %1821 = vmatprep.mubr.f32.mxu0 %v1674
  %1822 = vmatmul.mubr.f32.gmra.mrb[0].mxu0 %v1673
  %v1823 = vpop.f32.mrb[0].mxu0
  %v1824 = vadd.f32 0.0, %v1823
  %v1825 = vpop.f32.mrb[0].mxu0
  %v1826 = vadd.f32 0.0, %v1825
  %1827 = vdwg.mxu0
  %1828 = vmatprep.subr.mxu0 %v733
  %1829 = vmatpush1.msra.mxu0 %v732
  %1830 = vmatprep.subr.mxu0 %v741
  %1831 = vmatpush1.msra.mxu0 %v740
  %1832 = vmatprep.subr.mxu0 %v749
  %1833 = vmatpush1.msra.mxu0 %v748
  %1834 = vmatprep.subr.mxu0 %v757
  %1835 = vmatpush1.msra.mxu0 %v756
  %1836 = vmatprep.subr.mxu0 %v765
  %1837 = vmatpush1.msra.mxu0 %v764
  %1838 = vmatprep.subr.mxu0 %v773
  %1839 = vmatpush1.msra.mxu0 %v772
  %1840 = vmatprep.subr.mxu0 %v781
  %1841 = vmatpush1.msra.mxu0 %v780
  %1842 = vmatprep.subr.mxu0 %v789
  %1843 = vmatpush1.msra.mxu0 %v788
  %1844 = vmatprep.subr.mxu0 %v797
  %1845 = vmatpush1.msra.mxu0 %v796
  %1846 = vmatprep.subr.mxu0 %v805
  %1847 = vmatpush1.msra.mxu0 %v804
  %1848 = vmatprep.subr.mxu0 %v813
  %1849 = vmatpush1.msra.mxu0 %v812
  %1850 = vmatprep.subr.mxu0 %v821
  %1851 = vmatpush1.msra.mxu0 %v820
  %1852 = vmatprep.subr.mxu0 %v829
  %1853 = vmatpush1.msra.mxu0 %v828
  %1854 = vmatprep.subr.mxu0 %v837
  %1855 = vmatpush1.msra.mxu0 %v836
  %1856 = vmatprep.subr.mxu0 %v845
  %1857 = vmatpush1.msra.mxu0 %v844
  %1858 = vmatprep.subr.mxu0 %v853
  %1859 = vmatpush1.msra.mxu0 %v852
  %1860 = vmatprep.subr.mxu0 %v861
  %1861 = vmatpush1.msra.mxu0 %v860
  %1862 = vmatprep.subr.mxu0 %v869
  %1863 = vmatpush1.msra.mxu0 %v868
  %1864 = vmatprep.subr.mxu0 %v877
  %1865 = vmatpush1.msra.mxu0 %v876
  %1866 = vmatprep.subr.mxu0 %v885
  %1867 = vmatpush1.msra.mxu0 %v884
  %1868 = vmatprep.subr.mxu0 %v893
  %1869 = vmatpush1.msra.mxu0 %v892
  %1870 = vmatprep.subr.mxu0 %v901
  %1871 = vmatpush1.msra.mxu0 %v900
  %1872 = vmatprep.subr.mxu0 %v909
  %1873 = vmatpush1.msra.mxu0 %v908
  %1874 = vmatprep.subr.mxu0 %v917
  %1875 = vmatpush1.msra.mxu0 %v916
  %1876 = vmatprep.subr.mxu0 %v925
  %1877 = vmatpush1.msra.mxu0 %v924
  %1878 = vmatprep.subr.mxu0 %v933
  %1879 = vmatpush1.msra.mxu0 %v932
  %1880 = vmatprep.subr.mxu0 %v941
  %1881 = vmatpush1.msra.mxu0 %v940
  %1882 = vmatprep.subr.mxu0 %v949
  %1883 = vmatpush1.msra.mxu0 %v948
  %1884 = vmatprep.subr.mxu0 %v957
  %1885 = vmatpush1.msra.mxu0 %v956
  %1886 = vmatprep.subr.mxu0 %v965
  %1887 = vmatpush1.msra.mxu0 %v964
  %1888 = vmatprep.subr.mxu0 %v973
  %1889 = vmatpush1.msra.mxu0 %v972
  %1890 = vmatprep.subr.mxu0 %v981
  %1891 = vmatpush1.msra.mxu0 %v980
  %1892 = vmatprep.mubr.f32.mxu0 %v1674
  %1893 = vmatmul.mubr.f32.gmra.mrb[0].mxu0 %v1673
  %v1894 = vpop.f32.mrb[0].mxu0
  %v1895 = vadd.f32 0.0, %v1894
  %v1896 = vpop.f32.mrb[0].mxu0
  %v1897 = vadd.f32 0.0, %v1896
  %1898 = vdwg.mxu0
  %1899 = vmatprep.subr.mxu0 %v735
  %1900 = vmatpush1.msra.mxu0 %v734
  %1901 = vmatprep.subr.mxu0 %v743
  %1902 = vmatpush1.msra.mxu0 %v742
  %1903 = vmatprep.subr.mxu0 %v751
  %1904 = vmatpush1.msra.mxu0 %v750
  %1905 = vmatprep.subr.mxu0 %v759
  %1906 = vmatpush1.msra.mxu0 %v758
  %1907 = vmatprep.subr.mxu0 %v767
  %1908 = vmatpush1.msra.mxu0 %v766
  %1909 = vmatprep.subr.mxu0 %v775
  %1910 = vmatpush1.msra.mxu0 %v774
  %1911 = vmatprep.subr.mxu0 %v783
  %1912 = vmatpush1.msra.mxu0 %v782
  %1913 = vmatprep.subr.mxu0 %v791
  %1914 = vmatpush1.msra.mxu0 %v790
  %1915 = vmatprep.subr.mxu0 %v799
  %1916 = vmatpush1.msra.mxu0 %v798
  %1917 = vmatprep.subr.mxu0 %v807
  %1918 = vmatpush1.msra.mxu0 %v806
  %1919 = vmatprep.subr.mxu0 %v815
  %1920 = vmatpush1.msra.mxu0 %v814
  %1921 = vmatprep.subr.mxu0 %v823
  %1922 = vmatpush1.msra.mxu0 %v822
  %1923 = vmatprep.subr.mxu0 %v831
  %1924 = vmatpush1.msra.mxu0 %v830
  %1925 = vmatprep.subr.mxu0 %v839
  %1926 = vmatpush1.msra.mxu0 %v838
  %1927 = vmatprep.subr.mxu0 %v847
  %1928 = vmatpush1.msra.mxu0 %v846
  %1929 = vmatprep.subr.mxu0 %v855
  %1930 = vmatpush1.msra.mxu0 %v854
  %1931 = vmatprep.subr.mxu0 %v863
  %1932 = vmatpush1.msra.mxu0 %v862
  %1933 = vmatprep.subr.mxu0 %v871
  %1934 = vmatpush1.msra.mxu0 %v870
  %1935 = vmatprep.subr.mxu0 %v879
  %1936 = vmatpush1.msra.mxu0 %v878
  %1937 = vmatprep.subr.mxu0 %v887
  %1938 = vmatpush1.msra.mxu0 %v886
  %1939 = vmatprep.subr.mxu0 %v895
  %1940 = vmatpush1.msra.mxu0 %v894
  %1941 = vmatprep.subr.mxu0 %v903
  %1942 = vmatpush1.msra.mxu0 %v902
  %1943 = vmatprep.subr.mxu0 %v911
  %1944 = vmatpush1.msra.mxu0 %v910
  %1945 = vmatprep.subr.mxu0 %v919
  %1946 = vmatpush1.msra.mxu0 %v918
  %1947 = vmatprep.subr.mxu0 %v927
  %1948 = vmatpush1.msra.mxu0 %v926
  %1949 = vmatprep.subr.mxu0 %v935
  %1950 = vmatpush1.msra.mxu0 %v934
  %1951 = vmatprep.subr.mxu0 %v943
  %1952 = vmatpush1.msra.mxu0 %v942
  %1953 = vmatprep.subr.mxu0 %v951
  %1954 = vmatpush1.msra.mxu0 %v950
  %1955 = vmatprep.subr.mxu0 %v959
  %1956 = vmatpush1.msra.mxu0 %v958
  %1957 = vmatprep.subr.mxu0 %v967
  %1958 = vmatpush1.msra.mxu0 %v966
  %1959 = vmatprep.subr.mxu0 %v975
  %1960 = vmatpush1.msra.mxu0 %v974
  %1961 = vmatprep.subr.mxu0 %v983
  %1962 = vmatpush1.msra.mxu0 %v982
  %1963 = vmatprep.mubr.f32.mxu0 %v1674
  %1964 = vmatmul.mubr.f32.gmra.mrb[0].mxu0 %v1673
  %v1965 = vpop.f32.mrb[0].mxu0
  %v1966 = vadd.f32 0.0, %v1965
  %v1967 = vpop.f32.mrb[0].mxu0
  %v1968 = vadd.f32 0.0, %v1967
  %1969 = vdwg.mxu0
  %v1970 = vadd.f32 %v1678, %v1753
  %v1971 = vadd.f32 %v1679, %v1755
  %v1972 = vadd.f32 %v1680, %v1824
  %v1973 = vadd.f32 %v1681, %v1826
  %v1974 = vadd.f32 %v1682, %v1895
  %v1975 = vadd.f32 %v1683, %v1897
  %v1976 = vadd.f32 %v1684, %v1966
  %v1977 = vadd.f32 %v1685, %v1968
  %v1978 = vxor.u32 %v1970, 2147483648
  %v1979 = vxor.u32 %v1971, 2147483648
  %v1980 = vmul.f32 %v1978, 1.442695
  %v1981 = vpow.pop %v1980
  %v1982 = vmul.f32 %v1979, 1.442695
  %v1983 = vpow.pop %v1982
  %v1984 = vadd.f32 %v1981, 1.0
  %v1985 = vadd.f32 %v1983, 1.0
  %v1986 = vrcp.pop %v1984
  %v1987 = vmul.f32 1.0, %v1986
  %v1988 = vrcp.pop %v1985
  %v1989 = vmul.f32 1.0, %v1988
  %v1990 = vxor.u32 %v1972, 2147483648
  %v1991 = vxor.u32 %v1973, 2147483648
  %v1992 = vmul.f32 %v1990, 1.442695
  %v1993 = vpow.pop %v1992
  %v1994 = vmul.f32 %v1991, 1.442695
  %v1995 = vpow.pop %v1994
  %v1996 = vadd.f32 %v1993, 1.0
  %v1997 = vadd.f32 %v1995, 1.0
  %v1998 = vrcp.pop %v1996
  %v1999 = vmul.f32 1.0, %v1998
  %v2000 = vrcp.pop %v1997
  %v2001 = vmul.f32 1.0, %v2000
  %v2002 = vtanh.pop %v1974
  %v2003 = vtanh.pop %v1975
  %v2004 = vxor.u32 %v1976, 2147483648
  %v2005 = vxor.u32 %v1977, 2147483648
  %v2006 = vmul.f32 %v2004, 1.442695
  %v2007 = vpow.pop %v2006
  %v2008 = vmul.f32 %v2005, 1.442695
  %v2009 = vpow.pop %v2008
  %v2010 = vadd.f32 %v2007, 1.0
  %v2011 = vadd.f32 %v2009, 1.0
  %v2012 = vrcp.pop %v2010
  %v2013 = vmul.f32 1.0, %v2012
  %v2014 = vrcp.pop %v2011
  %v2015 = vmul.f32 1.0, %v2014
  %v2016 = vmul.f32 %v1999, %v1669
  %v2017 = vmul.f32 %v2001, %v1670
  %v2018 = vmul.f32 %v1987, %v2002
  %v2019 = vmul.f32 %v1989, %v2003
  %v2020 = vadd.f32 %v2016, %v2018
  %v2021 = vadd.f32 %v2017, %v2019
  %v2022 = vtanh.pop %v2020
  %v2023 = vtanh.pop %v2021
  %v2024 = vmul.f32 %v2013, %v2022
  %v2025 = vmul.f32 %v2015, %v2023
  %s2026 = smul.u32 3, 8
  %s2027 = smul.addr %s2026, 8
  %s2028 = scalar_lea.vmem [#allocation2], %s2027
  %v2029 = vld [vmem:[%s2028] sm:$0xff]
  %v2030 = vld [vmem:[%s2028 + $0x8] sm:$0xff]
  %v2031 = vld [vmem:[%s2028 + $0x10] sm:$0xff]
  %v2032 = vld [vmem:[%s2028 + $0x18] sm:$0xff]
  %v2033 = vld [vmem:[%s2028 + $0x20] sm:$0xff]
  %v2034 = vld [vmem:[%s2028 + $0x28] sm:$0xff]
  %v2035 = vld [vmem:[%s2028 + $0x30] sm:$0xff]
  %v2036 = vld [vmem:[%s2028 + $0x38] sm:$0xff]
  %2037 = vmatprep.subr.mxu0 %v729
  %2038 = vmatpush1.msra.mxu0 %v728
  %2039 = vmatprep.subr.mxu0 %v737
  %2040 = vmatpush1.msra.mxu0 %v736
  %2041 = vmatprep.subr.mxu0 %v745
  %2042 = vmatpush1.msra.mxu0 %v744
  %2043 = vmatprep.subr.mxu0 %v753
  %2044 = vmatpush1.msra.mxu0 %v752
  %2045 = vmatprep.subr.mxu0 %v761
  %2046 = vmatpush1.msra.mxu0 %v760
  %2047 = vmatprep.subr.mxu0 %v769
  %2048 = vmatpush1.msra.mxu0 %v768
  %2049 = vmatprep.subr.mxu0 %v777
  %2050 = vmatpush1.msra.mxu0 %v776
  %2051 = vmatprep.subr.mxu0 %v785
  %2052 = vmatpush1.msra.mxu0 %v784
  %2053 = vmatprep.subr.mxu0 %v793
  %2054 = vmatpush1.msra.mxu0 %v792
  %2055 = vmatprep.subr.mxu0 %v801
  %2056 = vmatpush1.msra.mxu0 %v800
  %2057 = vmatprep.subr.mxu0 %v809
  %2058 = vmatpush1.msra.mxu0 %v808
  %2059 = vmatprep.subr.mxu0 %v817
  %2060 = vmatpush1.msra.mxu0 %v816
  %2061 = vmatprep.subr.mxu0 %v825
  %2062 = vmatpush1.msra.mxu0 %v824
  %2063 = vmatprep.subr.mxu0 %v833
  %2064 = vmatpush1.msra.mxu0 %v832
  %2065 = vmatprep.subr.mxu0 %v841
  %2066 = vmatpush1.msra.mxu0 %v840
  %2067 = vmatprep.subr.mxu0 %v849
  %2068 = vmatpush1.msra.mxu0 %v848
  %2069 = vmatprep.subr.mxu0 %v857
  %2070 = vmatpush1.msra.mxu0 %v856
  %2071 = vmatprep.subr.mxu0 %v865
  %2072 = vmatpush1.msra.mxu0 %v864
  %2073 = vmatprep.subr.mxu0 %v873
  %2074 = vmatpush1.msra.mxu0 %v872
  %2075 = vmatprep.subr.mxu0 %v881
  %2076 = vmatpush1.msra.mxu0 %v880
  %2077 = vmatprep.subr.mxu0 %v889
  %2078 = vmatpush1.msra.mxu0 %v888
  %2079 = vmatprep.subr.mxu0 %v897
  %2080 = vmatpush1.msra.mxu0 %v896
  %2081 = vmatprep.subr.mxu0 %v905
  %2082 = vmatpush1.msra.mxu0 %v904
  %2083 = vmatprep.subr.mxu0 %v913
  %2084 = vmatpush1.msra.mxu0 %v912
  %2085 = vmatprep.subr.mxu0 %v921
  %2086 = vmatpush1.msra.mxu0 %v920
  %2087 = vmatprep.subr.mxu0 %v929
  %2088 = vmatpush1.msra.mxu0 %v928
  %2089 = vmatprep.subr.mxu0 %v937
  %2090 = vmatpush1.msra.mxu0 %v936
  %2091 = vmatprep.subr.mxu0 %v945
  %2092 = vmatpush1.msra.mxu0 %v944
  %2093 = vmatprep.subr.mxu0 %v953
  %2094 = vmatpush1.msra.mxu0 %v952
  %2095 = vmatprep.subr.mxu0 %v961
  %2096 = vmatpush1.msra.mxu0 %v960
  %2097 = vmatprep.subr.mxu0 %v969
  %2098 = vmatpush1.msra.mxu0 %v968
  %2099 = vmatprep.subr.mxu0 %v977
  %2100 = vmatpush1.msra.mxu0 %v976
  %2101 = vmatprep.mubr.f32.mxu0 %v2025
  %2102 = vmatmul.mubr.f32.gmra.mrb[0].mxu0 %v2024
  %v2103 = vpop.f32.mrb[0].mxu0
  %v2104 = vadd.f32 0.0, %v2103
  %v2105 = vpop.f32.mrb[0].mxu0
  %v2106 = vadd.f32 0.0, %v2105
  %2107 = vdwg.mxu0
  %2108 = vmatprep.subr.mxu0 %v731
  %2109 = vmatpush1.msra.mxu0 %v730
  %2110 = vmatprep.subr.mxu0 %v739
  %2111 = vmatpush1.msra.mxu0 %v738
  %2112 = vmatprep.subr.mxu0 %v747
  %2113 = vmatpush1.msra.mxu0 %v746
  %2114 = vmatprep.subr.mxu0 %v755
  %2115 = vmatpush1.msra.mxu0 %v754
  %2116 = vmatprep.subr.mxu0 %v763
  %2117 = vmatpush1.msra.mxu0 %v762
  %2118 = vmatprep.subr.mxu0 %v771
  %2119 = vmatpush1.msra.mxu0 %v770
  %2120 = vmatprep.subr.mxu0 %v779
  %2121 = vmatpush1.msra.mxu0 %v778
  %2122 = vmatprep.subr.mxu0 %v787
  %2123 = vmatpush1.msra.mxu0 %v786
  %2124 = vmatprep.subr.mxu0 %v795
  %2125 = vmatpush1.msra.mxu0 %v794
  %2126 = vmatprep.subr.mxu0 %v803
  %2127 = vmatpush1.msra.mxu0 %v802
  %2128 = vmatprep.subr.mxu0 %v811
  %2129 = vmatpush1.msra.mxu0 %v810
  %2130 = vmatprep.subr.mxu0 %v819
  %2131 = vmatpush1.msra.mxu0 %v818
  %2132 = vmatprep.subr.mxu0 %v827
  %2133 = vmatpush1.msra.mxu0 %v826
  %2134 = vmatprep.subr.mxu0 %v835
  %2135 = vmatpush1.msra.mxu0 %v834
  %2136 = vmatprep.subr.mxu0 %v843
  %2137 = vmatpush1.msra.mxu0 %v842
  %2138 = vmatprep.subr.mxu0 %v851
  %2139 = vmatpush1.msra.mxu0 %v850
  %2140 = vmatprep.subr.mxu0 %v859
  %2141 = vmatpush1.msra.mxu0 %v858
  %2142 = vmatprep.subr.mxu0 %v867
  %2143 = vmatpush1.msra.mxu0 %v866
  %2144 = vmatprep.subr.mxu0 %v875
  %2145 = vmatpush1.msra.mxu0 %v874
  %2146 = vmatprep.subr.mxu0 %v883
  %2147 = vmatpush1.msra.mxu0 %v882
  %2148 = vmatprep.subr.mxu0 %v891
  %2149 = vmatpush1.msra.mxu0 %v890
  %2150 = vmatprep.subr.mxu0 %v899
  %2151 = vmatpush1.msra.mxu0 %v898
  %2152 = vmatprep.subr.mxu0 %v907
  %2153 = vmatpush1.msra.mxu0 %v906
  %2154 = vmatprep.subr.mxu0 %v915
  %2155 = vmatpush1.msra.mxu0 %v914
  %2156 = vmatprep.subr.mxu0 %v923
  %2157 = vmatpush1.msra.mxu0 %v922
  %2158 = vmatprep.subr.mxu0 %v931
  %2159 = vmatpush1.msra.mxu0 %v930
  %2160 = vmatprep.subr.mxu0 %v939
  %2161 = vmatpush1.msra.mxu0 %v938
  %2162 = vmatprep.subr.mxu0 %v947
  %2163 = vmatpush1.msra.mxu0 %v946
  %2164 = vmatprep.subr.mxu0 %v955
  %2165 = vmatpush1.msra.mxu0 %v954
  %2166 = vmatprep.subr.mxu0 %v963
  %2167 = vmatpush1.msra.mxu0 %v962
  %2168 = vmatprep.subr.mxu0 %v971
  %2169 = vmatpush1.msra.mxu0 %v970
  %2170 = vmatprep.subr.mxu0 %v979
  %2171 = vmatpush1.msra.mxu0 %v978
  %2172 = vmatprep.mubr.f32.mxu0 %v2025
  %2173 = vmatmul.mubr.f32.gmra.mrb[0].mxu0 %v2024
  %v2174 = vpop.f32.mrb[0].mxu0
  %v2175 = vadd.f32 0.0, %v2174
  %v2176 = vpop.f32.mrb[0].mxu0
  %v2177 = vadd.f32 0.0, %v2176
  %2178 = vdwg.mxu0
  %2179 = vmatprep.subr.mxu0 %v733
  %2180 = vmatpush1.msra.mxu0 %v732
  %2181 = vmatprep.subr.mxu0 %v741
  %2182 = vmatpush1.msra.mxu0 %v740
  %2183 = vmatprep.subr.mxu0 %v749
  %2184 = vmatpush1.msra.mxu0 %v748
  %2185 = vmatprep.subr.mxu0 %v757
  %2186 = vmatpush1.msra.mxu0 %v756
  %2187 = vmatprep.subr.mxu0 %v765
  %2188 = vmatpush1.msra.mxu0 %v764
  %2189 = vmatprep.subr.mxu0 %v773
  %2190 = vmatpush1.msra.mxu0 %v772
  %2191 = vmatprep.subr.mxu0 %v781
  %2192 = vmatpush1.msra.mxu0 %v780
  %2193 = vmatprep.subr.mxu0 %v789
  %2194 = vmatpush1.msra.mxu0 %v788
  %2195 = vmatprep.subr.mxu0 %v797
  %2196 = vmatpush1.msra.mxu0 %v796
  %2197 = vmatprep.subr.mxu0 %v805
  %2198 = vmatpush1.msra.mxu0 %v804
  %2199 = vmatprep.subr.mxu0 %v813
  %2200 = vmatpush1.msra.mxu0 %v812
  %2201 = vmatprep.subr.mxu0 %v821
  %2202 = vmatpush1.msra.mxu0 %v820
  %2203 = vmatprep.subr.mxu0 %v829
  %2204 = vmatpush1.msra.mxu0 %v828
  %2205 = vmatprep.subr.mxu0 %v837
  %2206 = vmatpush1.msra.mxu0 %v836
  %2207 = vmatprep.subr.mxu0 %v845
  %2208 = vmatpush1.msra.mxu0 %v844
  %2209 = vmatprep.subr.mxu0 %v853
  %2210 = vmatpush1.msra.mxu0 %v852
  %2211 = vmatprep.subr.mxu0 %v861
  %2212 = vmatpush1.msra.mxu0 %v860
  %2213 = vmatprep.subr.mxu0 %v869
  %2214 = vmatpush1.msra.mxu0 %v868
  %2215 = vmatprep.subr.mxu0 %v877
  %2216 = vmatpush1.msra.mxu0 %v876
  %2217 = vmatprep.subr.mxu0 %v885
  %2218 = vmatpush1.msra.mxu0 %v884
  %2219 = vmatprep.subr.mxu0 %v893
  %2220 = vmatpush1.msra.mxu0 %v892
  %2221 = vmatprep.subr.mxu0 %v901
  %2222 = vmatpush1.msra.mxu0 %v900
  %2223 = vmatprep.subr.mxu0 %v909
  %2224 = vmatpush1.msra.mxu0 %v908
  %2225 = vmatprep.subr.mxu0 %v917
  %2226 = vmatpush1.msra.mxu0 %v916
  %2227 = vmatprep.subr.mxu0 %v925
  %2228 = vmatpush1.msra.mxu0 %v924
  %2229 = vmatprep.subr.mxu0 %v933
  %2230 = vmatpush1.msra.mxu0 %v932
  %2231 = vmatprep.subr.mxu0 %v941
  %2232 = vmatpush1.msra.mxu0 %v940
  %2233 = vmatprep.subr.mxu0 %v949
  %2234 = vmatpush1.msra.mxu0 %v948
  %2235 = vmatprep.subr.mxu0 %v957
  %2236 = vmatpush1.msra.mxu0 %v956
  %2237 = vmatprep.subr.mxu0 %v965
  %2238 = vmatpush1.msra.mxu0 %v964
  %2239 = vmatprep.subr.mxu0 %v973
  %2240 = vmatpush1.msra.mxu0 %v972
  %2241 = vmatprep.subr.mxu0 %v981
  %2242 = vmatpush1.msra.mxu0 %v980
  %2243 = vmatprep.mubr.f32.mxu0 %v2025
  %2244 = vmatmul.mubr.f32.gmra.mrb[0].mxu0 %v2024
  %v2245 = vpop.f32.mrb[0].mxu0
  %v2246 = vadd.f32 0.0, %v2245
  %v2247 = vpop.f32.mrb[0].mxu0
  %v2248 = vadd.f32 0.0, %v2247
  %2249 = vdwg.mxu0
  %2250 = vmatprep.subr.mxu0 %v735
  %2251 = vmatpush1.msra.mxu0 %v734
  %2252 = vmatprep.subr.mxu0 %v743
  %2253 = vmatpush1.msra.mxu0 %v742
  %2254 = vmatprep.subr.mxu0 %v751
  %2255 = vmatpush1.msra.mxu0 %v750
  %2256 = vmatprep.subr.mxu0 %v759
  %2257 = vmatpush1.msra.mxu0 %v758
  %2258 = vmatprep.subr.mxu0 %v767
  %2259 = vmatpush1.msra.mxu0 %v766
  %2260 = vmatprep.subr.mxu0 %v775
  %2261 = vmatpush1.msra.mxu0 %v774
  %2262 = vmatprep.subr.mxu0 %v783
  %2263 = vmatpush1.msra.mxu0 %v782
  %2264 = vmatprep.subr.mxu0 %v791
  %2265 = vmatpush1.msra.mxu0 %v790
  %2266 = vmatprep.subr.mxu0 %v799
  %2267 = vmatpush1.msra.mxu0 %v798
  %2268 = vmatprep.subr.mxu0 %v807
  %2269 = vmatpush1.msra.mxu0 %v806
  %2270 = vmatprep.subr.mxu0 %v815
  %2271 = vmatpush1.msra.mxu0 %v814
  %2272 = vmatprep.subr.mxu0 %v823
  %2273 = vmatpush1.msra.mxu0 %v822
  %2274 = vmatprep.subr.mxu0 %v831
  %2275 = vmatpush1.msra.mxu0 %v830
  %2276 = vmatprep.subr.mxu0 %v839
  %2277 = vmatpush1.msra.mxu0 %v838
  %2278 = vmatprep.subr.mxu0 %v847
  %2279 = vmatpush1.msra.mxu0 %v846
  %2280 = vmatprep.subr.mxu0 %v855
  %2281 = vmatpush1.msra.mxu0 %v854
  %2282 = vmatprep.subr.mxu0 %v863
  %2283 = vmatpush1.msra.mxu0 %v862
  %2284 = vmatprep.subr.mxu0 %v871
  %2285 = vmatpush1.msra.mxu0 %v870
  %2286 = vmatprep.subr.mxu0 %v879
  %2287 = vmatpush1.msra.mxu0 %v878
  %2288 = vmatprep.subr.mxu0 %v887
  %2289 = vmatpush1.msra.mxu0 %v886
  %2290 = vmatprep.subr.mxu0 %v895
  %2291 = vmatpush1.msra.mxu0 %v894
  %2292 = vmatprep.subr.mxu0 %v903
  %2293 = vmatpush1.msra.mxu0 %v902
  %2294 = vmatprep.subr.mxu0 %v911
  %2295 = vmatpush1.msra.mxu0 %v910
  %2296 = vmatprep.subr.mxu0 %v919
  %2297 = vmatpush1.msra.mxu0 %v918
  %2298 = vmatprep.subr.mxu0 %v927
  %2299 = vmatpush1.msra.mxu0 %v926
  %2300 = vmatprep.subr.mxu0 %v935
  %2301 = vmatpush1.msra.mxu0 %v934
  %2302 = vmatprep.subr.mxu0 %v943
  %2303 = vmatpush1.msra.mxu0 %v942
  %2304 = vmatprep.subr.mxu0 %v951
  %2305 = vmatpush1.msra.mxu0 %v950
  %2306 = vmatprep.subr.mxu0 %v959
  %2307 = vmatpush1.msra.mxu0 %v958
  %2308 = vmatprep.subr.mxu0 %v967
  %2309 = vmatpush1.msra.mxu0 %v966
  %2310 = vmatprep.subr.mxu0 %v975
  %2311 = vmatpush1.msra.mxu0 %v974
  %2312 = vmatprep.subr.mxu0 %v983
  %2313 = vmatpush1.msra.mxu0 %v982
  %2314 = vmatprep.mubr.f32.mxu0 %v2025
  %2315 = vmatmul.mubr.f32.gmra.mrb[0].mxu0 %v2024
  %v2316 = vpop.f32.mrb[0].mxu0
  %v2317 = vadd.f32 0.0, %v2316
  %v2318 = vpop.f32.mrb[0].mxu0
  %v2319 = vadd.f32 0.0, %v2318
  %2320 = vdwg.mxu0
  %v2321 = vadd.f32 %v2029, %v2104
  %v2322 = vadd.f32 %v2030, %v2106
  %v2323 = vadd.f32 %v2031, %v2175
  %v2324 = vadd.f32 %v2032, %v2177
  %v2325 = vadd.f32 %v2033, %v2246
  %v2326 = vadd.f32 %v2034, %v2248
  %v2327 = vadd.f32 %v2035, %v2317
  %v2328 = vadd.f32 %v2036, %v2319
  %v2329 = vxor.u32 %v2321, 2147483648
  %v2330 = vxor.u32 %v2322, 2147483648
  %v2331 = vmul.f32 %v2329, 1.442695
  %v2332 = vpow.pop %v2331
  %v2333 = vmul.f32 %v2330, 1.442695
  %v2334 = vpow.pop %v2333
  %v2335 = vadd.f32 %v2332, 1.0
  %v2336 = vadd.f32 %v2334, 1.0
  %v2337 = vrcp.pop %v2335
  %v2338 = vmul.f32 1.0, %v2337
  %v2339 = vrcp.pop %v2336
  %v2340 = vmul.f32 1.0, %v2339
  %v2341 = vxor.u32 %v2323, 2147483648
  %v2342 = vxor.u32 %v2324, 2147483648
  %v2343 = vmul.f32 %v2341, 1.442695
  %v2344 = vpow.pop %v2343
  %v2345 = vmul.f32 %v2342, 1.442695
  %v2346 = vpow.pop %v2345
  %v2347 = vadd.f32 %v2344, 1.0
  %v2348 = vadd.f32 %v2346, 1.0
  %v2349 = vrcp.pop %v2347
  %v2350 = vmul.f32 1.0, %v2349
  %v2351 = vrcp.pop %v2348
  %v2352 = vmul.f32 1.0, %v2351
  %v2353 = vtanh.pop %v2325
  %v2354 = vtanh.pop %v2326
  %v2355 = vxor.u32 %v2327, 2147483648
  %v2356 = vxor.u32 %v2328, 2147483648
  %v2357 = vmul.f32 %v2355, 1.442695
  %v2358 = vpow.pop %v2357
  %v2359 = vmul.f32 %v2356, 1.442695
  %v2360 = vpow.pop %v2359
  %v2361 = vadd.f32 %v2358, 1.0
  %v2362 = vadd.f32 %v2360, 1.0
  %v2363 = vrcp.pop %v2361
  %v2364 = vmul.f32 1.0, %v2363
  %v2365 = vrcp.pop %v2362
  %v2366 = vmul.f32 1.0, %v2365
  %v2367 = vmul.f32 %v2350, %v2020
  %v2368 = vmul.f32 %v2352, %v2021
  %v2369 = vmul.f32 %v2338, %v2353
  %v2370 = vmul.f32 %v2340, %v2354
  %v2371 = vadd.f32 %v2367, %v2369
  %v2372 = vadd.f32 %v2368, %v2370
  %v2373 = vtanh.pop %v2371
  %v2374 = vtanh.pop %v2372
  %v2375 = vmul.f32 %v2364, %v2373
  %v2376 = vmul.f32 %v2366, %v2374
  %s2377 = smul.u32 4, 8
  %s2378 = smul.addr %s2377, 8
  %s2379 = scalar_lea.vmem [#allocation2], %s2378
  %v2380 = vld [vmem:[%s2379] sm:$0xff]
  %v2381 = vld [vmem:[%s2379 + $0x8] sm:$0xff]
  %v2382 = vld [vmem:[%s2379 + $0x10] sm:$0xff]
  %v2383 = vld [vmem:[%s2379 + $0x18] sm:$0xff]
  %v2384 = vld [vmem:[%s2379 + $0x20] sm:$0xff]
  %v2385 = vld [vmem:[%s2379 + $0x28] sm:$0xff]
  %v2386 = vld [vmem:[%s2379 + $0x30] sm:$0xff]
  %v2387 = vld [vmem:[%s2379 + $0x38] sm:$0xff]
  %2388 = vmatprep.subr.mxu0 %v729
  %2389 = vmatpush1.msra.mxu0 %v728
  %2390 = vmatprep.subr.mxu0 %v737
  %2391 = vmatpush1.msra.mxu0 %v736
  %2392 = vmatprep.subr.mxu0 %v745
  %2393 = vmatpush1.msra.mxu0 %v744
  %2394 = vmatprep.subr.mxu0 %v753
  %2395 = vmatpush1.msra.mxu0 %v752
  %2396 = vmatprep.subr.mxu0 %v761
  %2397 = vmatpush1.msra.mxu0 %v760
  %2398 = vmatprep.subr.mxu0 %v769
  %2399 = vmatpush1.msra.mxu0 %v768
  %2400 = vmatprep.subr.mxu0 %v777
  %2401 = vmatpush1.msra.mxu0 %v776
  %2402 = vmatprep.subr.mxu0 %v785
  %2403 = vmatpush1.msra.mxu0 %v784
  %2404 = vmatprep.subr.mxu0 %v793
  %2405 = vmatpush1.msra.mxu0 %v792
  %2406 = vmatprep.subr.mxu0 %v801
  %2407 = vmatpush1.msra.mxu0 %v800
  %2408 = vmatprep.subr.mxu0 %v809
  %2409 = vmatpush1.msra.mxu0 %v808
  %2410 = vmatprep.subr.mxu0 %v817
  %2411 = vmatpush1.msra.mxu0 %v816
  %2412 = vmatprep.subr.mxu0 %v825
  %2413 = vmatpush1.msra.mxu0 %v824
  %2414 = vmatprep.subr.mxu0 %v833
  %2415 = vmatpush1.msra.mxu0 %v832
  %2416 = vmatprep.subr.mxu0 %v841
  %2417 = vmatpush1.msra.mxu0 %v840
  %2418 = vmatprep.subr.mxu0 %v849
  %2419 = vmatpush1.msra.mxu0 %v848
  %2420 = vmatprep.subr.mxu0 %v857
  %2421 = vmatpush1.msra.mxu0 %v856
  %2422 = vmatprep.subr.mxu0 %v865
  %2423 = vmatpush1.msra.mxu0 %v864
  %2424 = vmatprep.subr.mxu0 %v873
  %2425 = vmatpush1.msra.mxu0 %v872
  %2426 = vmatprep.subr.mxu0 %v881
  %2427 = vmatpush1.msra.mxu0 %v880
  %2428 = vmatprep.subr.mxu0 %v889
  %2429 = vmatpush1.msra.mxu0 %v888
  %2430 = vmatprep.subr.mxu0 %v897
  %2431 = vmatpush1.msra.mxu0 %v896
  %2432 = vmatprep.subr.mxu0 %v905
  %2433 = vmatpush1.msra.mxu0 %v904
  %2434 = vmatprep.subr.mxu0 %v913
  %2435 = vmatpush1.msra.mxu0 %v912
  %2436 = vmatprep.subr.mxu0 %v921
  %2437 = vmatpush1.msra.mxu0 %v920
  %2438 = vmatprep.subr.mxu0 %v929
  %2439 = vmatpush1.msra.mxu0 %v928
  %2440 = vmatprep.subr.mxu0 %v937
  %2441 = vmatpush1.msra.mxu0 %v936
  %2442 = vmatprep.subr.mxu0 %v945
  %2443 = vmatpush1.msra.mxu0 %v944
  %2444 = vmatprep.subr.mxu0 %v953
  %2445 = vmatpush1.msra.mxu0 %v952
  %2446 = vmatprep.subr.mxu0 %v961
  %2447 = vmatpush1.msra.mxu0 %v960
  %2448 = vmatprep.subr.mxu0 %v969
  %2449 = vmatpush1.msra.mxu0 %v968
  %2450 = vmatprep.subr.mxu0 %v977
  %2451 = vmatpush1.msra.mxu0 %v976
  %2452 = vmatprep.mubr.f32.mxu0 %v2376
  %2453 = vmatmul.mubr.f32.gmra.mrb[0].mxu0 %v2375
  %v2454 = vpop.f32.mrb[0].mxu0
  %v2455 = vadd.f32 0.0, %v2454
  %v2456 = vpop.f32.mrb[0].mxu0
  %v2457 = vadd.f32 0.0, %v2456
  %2458 = vdwg.mxu0
  %2459 = vmatprep.subr.mxu0 %v731
  %2460 = vmatpush1.msra.mxu0 %v730
  %2461 = vmatprep.subr.mxu0 %v739
  %2462 = vmatpush1.msra.mxu0 %v738
  %2463 = vmatprep.subr.mxu0 %v747
  %2464 = vmatpush1.msra.mxu0 %v746
  %2465 = vmatprep.subr.mxu0 %v755
  %2466 = vmatpush1.msra.mxu0 %v754
  %2467 = vmatprep.subr.mxu0 %v763
  %2468 = vmatpush1.msra.mxu0 %v762
  %2469 = vmatprep.subr.mxu0 %v771
  %2470 = vmatpush1.msra.mxu0 %v770
  %2471 = vmatprep.subr.mxu0 %v779
  %2472 = vmatpush1.msra.mxu0 %v778
  %2473 = vmatprep.subr.mxu0 %v787
  %2474 = vmatpush1.msra.mxu0 %v786
  %2475 = vmatprep.subr.mxu0 %v795
  %2476 = vmatpush1.msra.mxu0 %v794
  %2477 = vmatprep.subr.mxu0 %v803
  %2478 = vmatpush1.msra.mxu0 %v802
  %2479 = vmatprep.subr.mxu0 %v811
  %2480 = vmatpush1.msra.mxu0 %v810
  %2481 = vmatprep.subr.mxu0 %v819
  %2482 = vmatpush1.msra.mxu0 %v818
  %2483 = vmatprep.subr.mxu0 %v827
  %2484 = vmatpush1.msra.mxu0 %v826
  %2485 = vmatprep.subr.mxu0 %v835
  %2486 = vmatpush1.msra.mxu0 %v834
  %2487 = vmatprep.subr.mxu0 %v843
  %2488 = vmatpush1.msra.mxu0 %v842
  %2489 = vmatprep.subr.mxu0 %v851
  %2490 = vmatpush1.msra.mxu0 %v850
  %2491 = vmatprep.subr.mxu0 %v859
  %2492 = vmatpush1.msra.mxu0 %v858
  %2493 = vmatprep.subr.mxu0 %v867
  %2494 = vmatpush1.msra.mxu0 %v866
  %2495 = vmatprep.subr.mxu0 %v875
  %2496 = vmatpush1.msra.mxu0 %v874
  %2497 = vmatprep.subr.mxu0 %v883
  %2498 = vmatpush1.msra.mxu0 %v882
  %2499 = vmatprep.subr.mxu0 %v891
  %2500 = vmatpush1.msra.mxu0 %v890
  %2501 = vmatprep.subr.mxu0 %v899
  %2502 = vmatpush1.msra.mxu0 %v898
  %2503 = vmatprep.subr.mxu0 %v907
  %2504 = vmatpush1.msra.mxu0 %v906
  %2505 = vmatprep.subr.mxu0 %v915
  %2506 = vmatpush1.msra.mxu0 %v914
  %2507 = vmatprep.subr.mxu0 %v923
  %2508 = vmatpush1.msra.mxu0 %v922
  %2509 = vmatprep.subr.mxu0 %v931
  %2510 = vmatpush1.msra.mxu0 %v930
  %2511 = vmatprep.subr.mxu0 %v939
  %2512 = vmatpush1.msra.mxu0 %v938
  %2513 = vmatprep.subr.mxu0 %v947
  %2514 = vmatpush1.msra.mxu0 %v946
  %2515 = vmatprep.subr.mxu0 %v955
  %2516 = vmatpush1.msra.mxu0 %v954
  %2517 = vmatprep.subr.mxu0 %v963
  %2518 = vmatpush1.msra.mxu0 %v962
  %2519 = vmatprep.subr.mxu0 %v971
  %2520 = vmatpush1.msra.mxu0 %v970
  %2521 = vmatprep.subr.mxu0 %v979
  %2522 = vmatpush1.msra.mxu0 %v978
  %2523 = vmatprep.mubr.f32.mxu0 %v2376
  %2524 = vmatmul.mubr.f32.gmra.mrb[0].mxu0 %v2375
  %v2525 = vpop.f32.mrb[0].mxu0
  %v2526 = vadd.f32 0.0, %v2525
  %v2527 = vpop.f32.mrb[0].mxu0
  %v2528 = vadd.f32 0.0, %v2527
  %2529 = vdwg.mxu0
  %2530 = vmatprep.subr.mxu0 %v733
  %2531 = vmatpush1.msra.mxu0 %v732
  %2532 = vmatprep.subr.mxu0 %v741
  %2533 = vmatpush1.msra.mxu0 %v740
  %2534 = vmatprep.subr.mxu0 %v749
  %2535 = vmatpush1.msra.mxu0 %v748
  %2536 = vmatprep.subr.mxu0 %v757
  %2537 = vmatpush1.msra.mxu0 %v756
  %2538 = vmatprep.subr.mxu0 %v765
  %2539 = vmatpush1.msra.mxu0 %v764
  %2540 = vmatprep.subr.mxu0 %v773
  %2541 = vmatpush1.msra.mxu0 %v772
  %2542 = vmatprep.subr.mxu0 %v781
  %2543 = vmatpush1.msra.mxu0 %v780
  %2544 = vmatprep.subr.mxu0 %v789
  %2545 = vmatpush1.msra.mxu0 %v788
  %2546 = vmatprep.subr.mxu0 %v797
  %2547 = vmatpush1.msra.mxu0 %v796
  %2548 = vmatprep.subr.mxu0 %v805
  %2549 = vmatpush1.msra.mxu0 %v804
  %2550 = vmatprep.subr.mxu0 %v813
  %2551 = vmatpush1.msra.mxu0 %v812
  %2552 = vmatprep.subr.mxu0 %v821
  %2553 = vmatpush1.msra.mxu0 %v820
  %2554 = vmatprep.subr.mxu0 %v829
  %2555 = vmatpush1.msra.mxu0 %v828
  %2556 = vmatprep.subr.mxu0 %v837
  %2557 = vmatpush1.msra.mxu0 %v836
  %2558 = vmatprep.subr.mxu0 %v845
  %2559 = vmatpush1.msra.mxu0 %v844
  %2560 = vmatprep.subr.mxu0 %v853
  %2561 = vmatpush1.msra.mxu0 %v852
  %2562 = vmatprep.subr.mxu0 %v861
  %2563 = vmatpush1.msra.mxu0 %v860
  %2564 = vmatprep.subr.mxu0 %v869
  %2565 = vmatpush1.msra.mxu0 %v868
  %2566 = vmatprep.subr.mxu0 %v877
  %2567 = vmatpush1.msra.mxu0 %v876
  %2568 = vmatprep.subr.mxu0 %v885
  %2569 = vmatpush1.msra.mxu0 %v884
  %2570 = vmatprep.subr.mxu0 %v893
  %2571 = vmatpush1.msra.mxu0 %v892
  %2572 = vmatprep.subr.mxu0 %v901
  %2573 = vmatpush1.msra.mxu0 %v900
  %2574 = vmatprep.subr.mxu0 %v909
  %2575 = vmatpush1.msra.mxu0 %v908
  %2576 = vmatprep.subr.mxu0 %v917
  %2577 = vmatpush1.msra.mxu0 %v916
  %2578 = vmatprep.subr.mxu0 %v925
  %2579 = vmatpush1.msra.mxu0 %v924
  %2580 = vmatprep.subr.mxu0 %v933
  %2581 = vmatpush1.msra.mxu0 %v932
  %2582 = vmatprep.subr.mxu0 %v941
  %2583 = vmatpush1.msra.mxu0 %v940
  %2584 = vmatprep.subr.mxu0 %v949
  %2585 = vmatpush1.msra.mxu0 %v948
  %2586 = vmatprep.subr.mxu0 %v957
  %2587 = vmatpush1.msra.mxu0 %v956
  %2588 = vmatprep.subr.mxu0 %v965
  %2589 = vmatpush1.msra.mxu0 %v964
  %2590 = vmatprep.subr.mxu0 %v973
  %2591 = vmatpush1.msra.mxu0 %v972
  %2592 = vmatprep.subr.mxu0 %v981
  %2593 = vmatpush1.msra.mxu0 %v980
  %2594 = vmatprep.mubr.f32.mxu0 %v2376
  %2595 = vmatmul.mubr.f32.gmra.mrb[0].mxu0 %v2375
  %v2596 = vpop.f32.mrb[0].mxu0
  %v2597 = vadd.f32 0.0, %v2596
  %v2598 = vpop.f32.mrb[0].mxu0
  %v2599 = vadd.f32 0.0, %v2598
  %2600 = vdwg.mxu0
  %2601 = vmatprep.subr.mxu0 %v735
  %2602 = vmatpush1.msra.mxu0 %v734
  %2603 = vmatprep.subr.mxu0 %v743
  %2604 = vmatpush1.msra.mxu0 %v742
  %2605 = vmatprep.subr.mxu0 %v751
  %2606 = vmatpush1.msra.mxu0 %v750
  %2607 = vmatprep.subr.mxu0 %v759
  %2608 = vmatpush1.msra.mxu0 %v758
  %2609 = vmatprep.subr.mxu0 %v767
  %2610 = vmatpush1.msra.mxu0 %v766
  %2611 = vmatprep.subr.mxu0 %v775
  %2612 = vmatpush1.msra.mxu0 %v774
  %2613 = vmatprep.subr.mxu0 %v783
  %2614 = vmatpush1.msra.mxu0 %v782
  %2615 = vmatprep.subr.mxu0 %v791
  %2616 = vmatpush1.msra.mxu0 %v790
  %2617 = vmatprep.subr.mxu0 %v799
  %2618 = vmatpush1.msra.mxu0 %v798
  %2619 = vmatprep.subr.mxu0 %v807
  %2620 = vmatpush1.msra.mxu0 %v806
  %2621 = vmatprep.subr.mxu0 %v815
  %2622 = vmatpush1.msra.mxu0 %v814
  %2623 = vmatprep.subr.mxu0 %v823
  %2624 = vmatpush1.msra.mxu0 %v822
  %2625 = vmatprep.subr.mxu0 %v831
  %2626 = vmatpush1.msra.mxu0 %v830
  %2627 = vmatprep.subr.mxu0 %v839
  %2628 = vmatpush1.msra.mxu0 %v838
  %2629 = vmatprep.subr.mxu0 %v847
  %2630 = vmatpush1.msra.mxu0 %v846
  %2631 = vmatprep.subr.mxu0 %v855
  %2632 = vmatpush1.msra.mxu0 %v854
  %2633 = vmatprep.subr.mxu0 %v863
  %2634 = vmatpush1.msra.mxu0 %v862
  %2635 = vmatprep.subr.mxu0 %v871
  %2636 = vmatpush1.msra.mxu0 %v870
  %2637 = vmatprep.subr.mxu0 %v879
  %2638 = vmatpush1.msra.mxu0 %v878
  %2639 = vmatprep.subr.mxu0 %v887
  %2640 = vmatpush1.msra.mxu0 %v886
  %2641 = vmatprep.subr.mxu0 %v895
  %2642 = vmatpush1.msra.mxu0 %v894
  %2643 = vmatprep.subr.mxu0 %v903
  %2644 = vmatpush1.msra.mxu0 %v902
  %2645 = vmatprep.subr.mxu0 %v911
  %2646 = vmatpush1.msra.mxu0 %v910
  %2647 = vmatprep.subr.mxu0 %v919
  %2648 = vmatpush1.msra.mxu0 %v918
  %2649 = vmatprep.subr.mxu0 %v927
  %2650 = vmatpush1.msra.mxu0 %v926
  %2651 = vmatprep.subr.mxu0 %v935
  %2652 = vmatpush1.msra.mxu0 %v934
  %2653 = vmatprep.subr.mxu0 %v943
  %2654 = vmatpush1.msra.mxu0 %v942
  %2655 = vmatprep.subr.mxu0 %v951
  %2656 = vmatpush1.msra.mxu0 %v950
  %2657 = vmatprep.subr.mxu0 %v959
  %2658 = vmatpush1.msra.mxu0 %v958
  %2659 = vmatprep.subr.mxu0 %v967
  %2660 = vmatpush1.msra.mxu0 %v966
  %2661 = vmatprep.subr.mxu0 %v975
  %2662 = vmatpush1.msra.mxu0 %v974
  %2663 = vmatprep.subr.mxu0 %v983
  %2664 = vmatpush1.msra.mxu0 %v982
  %2665 = vmatprep.mubr.f32.mxu0 %v2376
  %2666 = vmatmul.mubr.f32.gmra.mrb[0].mxu0 %v2375
  %v2667 = vpop.f32.mrb[0].mxu0
  %v2668 = vadd.f32 0.0, %v2667
  %v2669 = vpop.f32.mrb[0].mxu0
  %v2670 = vadd.f32 0.0, %v2669
  %2671 = vdwg.mxu0
  %v2672 = vadd.f32 %v2380, %v2455
  %v2673 = vadd.f32 %v2381, %v2457
  %v2674 = vadd.f32 %v2382, %v2526
  %v2675 = vadd.f32 %v2383, %v2528
  %v2676 = vadd.f32 %v2384, %v2597
  %v2677 = vadd.f32 %v2385, %v2599
  %v2678 = vadd.f32 %v2386, %v2668
  %v2679 = vadd.f32 %v2387, %v2670
  %v2680 = vxor.u32 %v2672, 2147483648
  %v2681 = vxor.u32 %v2673, 2147483648
  %v2682 = vmul.f32 %v2680, 1.442695
  %v2683 = vpow.pop %v2682
  %v2684 = vmul.f32 %v2681, 1.442695
  %v2685 = vpow.pop %v2684
  %v2686 = vadd.f32 %v2683, 1.0
  %v2687 = vadd.f32 %v2685, 1.0
  %v2688 = vrcp.pop %v2686
  %v2689 = vmul.f32 1.0, %v2688
  %v2690 = vrcp.pop %v2687
  %v2691 = vmul.f32 1.0, %v2690
  %v2692 = vxor.u32 %v2674, 2147483648
  %v2693 = vxor.u32 %v2675, 2147483648
  %v2694 = vmul.f32 %v2692, 1.442695
  %v2695 = vpow.pop %v2694
  %v2696 = vmul.f32 %v2693, 1.442695
  %v2697 = vpow.pop %v2696
  %v2698 = vadd.f32 %v2695, 1.0
  %v2699 = vadd.f32 %v2697, 1.0
  %v2700 = vrcp.pop %v2698
  %v2701 = vmul.f32 1.0, %v2700
  %v2702 = vrcp.pop %v2699
  %v2703 = vmul.f32 1.0, %v2702
  %v2704 = vtanh.pop %v2676
  %v2705 = vtanh.pop %v2677
  %v2706 = vxor.u32 %v2678, 2147483648
  %v2707 = vxor.u32 %v2679, 2147483648
  %v2708 = vmul.f32 %v2706, 1.442695
  %v2709 = vpow.pop %v2708
  %v2710 = vmul.f32 %v2707, 1.442695
  %v2711 = vpow.pop %v2710
  %v2712 = vadd.f32 %v2709, 1.0
  %v2713 = vadd.f32 %v2711, 1.0
  %v2714 = vrcp.pop %v2712
  %v2715 = vmul.f32 1.0, %v2714
  %v2716 = vrcp.pop %v2713
  %v2717 = vmul.f32 1.0, %v2716
  %v2718 = vmul.f32 %v2701, %v2371
  %v2719 = vmul.f32 %v2703, %v2372
  %v2720 = vmul.f32 %v2689, %v2704
  %v2721 = vmul.f32 %v2691, %v2705
  %v2722 = vadd.f32 %v2718, %v2720
  %v2723 = vadd.f32 %v2719, %v2721
  %v2724 = vtanh.pop %v2722
  %v2725 = vtanh.pop %v2723
  %v2726 = vmul.f32 %v2715, %v2724
  %v2727 = vmul.f32 %v2717, %v2725
  %s2728 = smul.u32 5, 8
  %s2729 = smul.addr %s2728, 8
  %s2730 = scalar_lea.vmem [#allocation2], %s2729
  %v2731 = vld [vmem:[%s2730] sm:$0xff]
  %v2732 = vld [vmem:[%s2730 + $0x8] sm:$0xff]
  %v2733 = vld [vmem:[%s2730 + $0x10] sm:$0xff]
  %v2734 = vld [vmem:[%s2730 + $0x18] sm:$0xff]
  %v2735 = vld [vmem:[%s2730 + $0x20] sm:$0xff]
  %v2736 = vld [vmem:[%s2730 + $0x28] sm:$0xff]
  %v2737 = vld [vmem:[%s2730 + $0x30] sm:$0xff]
  %v2738 = vld [vmem:[%s2730 + $0x38] sm:$0xff]
  %2739 = vmatprep.subr.mxu0 %v729
  %2740 = vmatpush1.msra.mxu0 %v728
  %2741 = vmatprep.subr.mxu0 %v737
  %2742 = vmatpush1.msra.mxu0 %v736
  %2743 = vmatprep.subr.mxu0 %v745
  %2744 = vmatpush1.msra.mxu0 %v744
  %2745 = vmatprep.subr.mxu0 %v753
  %2746 = vmatpush1.msra.mxu0 %v752
  %2747 = vmatprep.subr.mxu0 %v761
  %2748 = vmatpush1.msra.mxu0 %v760
  %2749 = vmatprep.subr.mxu0 %v769
  %2750 = vmatpush1.msra.mxu0 %v768
  %2751 = vmatprep.subr.mxu0 %v777
  %2752 = vmatpush1.msra.mxu0 %v776
  %2753 = vmatprep.subr.mxu0 %v785
  %2754 = vmatpush1.msra.mxu0 %v784
  %2755 = vmatprep.subr.mxu0 %v793
  %2756 = vmatpush1.msra.mxu0 %v792
  %2757 = vmatprep.subr.mxu0 %v801
  %2758 = vmatpush1.msra.mxu0 %v800
  %2759 = vmatprep.subr.mxu0 %v809
  %2760 = vmatpush1.msra.mxu0 %v808
  %2761 = vmatprep.subr.mxu0 %v817
  %2762 = vmatpush1.msra.mxu0 %v816
  %2763 = vmatprep.subr.mxu0 %v825
  %2764 = vmatpush1.msra.mxu0 %v824
  %2765 = vmatprep.subr.mxu0 %v833
  %2766 = vmatpush1.msra.mxu0 %v832
  %2767 = vmatprep.subr.mxu0 %v841
  %2768 = vmatpush1.msra.mxu0 %v840
  %2769 = vmatprep.subr.mxu0 %v849
  %2770 = vmatpush1.msra.mxu0 %v848
  %2771 = vmatprep.subr.mxu0 %v857
  %2772 = vmatpush1.msra.mxu0 %v856
  %2773 = vmatprep.subr.mxu0 %v865
  %2774 = vmatpush1.msra.mxu0 %v864
  %2775 = vmatprep.subr.mxu0 %v873
  %2776 = vmatpush1.msra.mxu0 %v872
  %2777 = vmatprep.subr.mxu0 %v881
  %2778 = vmatpush1.msra.mxu0 %v880
  %2779 = vmatprep.subr.mxu0 %v889
  %2780 = vmatpush1.msra.mxu0 %v888
  %2781 = vmatprep.subr.mxu0 %v897
  %2782 = vmatpush1.msra.mxu0 %v896
  %2783 = vmatprep.subr.mxu0 %v905
  %2784 = vmatpush1.msra.mxu0 %v904
  %2785 = vmatprep.subr.mxu0 %v913
  %2786 = vmatpush1.msra.mxu0 %v912
  %2787 = vmatprep.subr.mxu0 %v921
  %2788 = vmatpush1.msra.mxu0 %v920
  %2789 = vmatprep.subr.mxu0 %v929
  %2790 = vmatpush1.msra.mxu0 %v928
  %2791 = vmatprep.subr.mxu0 %v937
  %2792 = vmatpush1.msra.mxu0 %v936
  %2793 = vmatprep.subr.mxu0 %v945
  %2794 = vmatpush1.msra.mxu0 %v944
  %2795 = vmatprep.subr.mxu0 %v953
  %2796 = vmatpush1.msra.mxu0 %v952
  %2797 = vmatprep.subr.mxu0 %v961
  %2798 = vmatpush1.msra.mxu0 %v960
  %2799 = vmatprep.subr.mxu0 %v969
  %2800 = vmatpush1.msra.mxu0 %v968
  %2801 = vmatprep.subr.mxu0 %v977
  %2802 = vmatpush1.msra.mxu0 %v976
  %2803 = vmatprep.mubr.f32.mxu0 %v2727
  %2804 = vmatmul.mubr.f32.gmra.mrb[0].mxu0 %v2726
  %v2805 = vpop.f32.mrb[0].mxu0
  %v2806 = vadd.f32 0.0, %v2805
  %v2807 = vpop.f32.mrb[0].mxu0
  %v2808 = vadd.f32 0.0, %v2807
  %2809 = vdwg.mxu0
  %2810 = vmatprep.subr.mxu0 %v731
  %2811 = vmatpush1.msra.mxu0 %v730
  %2812 = vmatprep.subr.mxu0 %v739
  %2813 = vmatpush1.msra.mxu0 %v738
  %2814 = vmatprep.subr.mxu0 %v747
  %2815 = vmatpush1.msra.mxu0 %v746
  %2816 = vmatprep.subr.mxu0 %v755
  %2817 = vmatpush1.msra.mxu0 %v754
  %2818 = vmatprep.subr.mxu0 %v763
  %2819 = vmatpush1.msra.mxu0 %v762
  %2820 = vmatprep.subr.mxu0 %v771
  %2821 = vmatpush1.msra.mxu0 %v770
  %2822 = vmatprep.subr.mxu0 %v779
  %2823 = vmatpush1.msra.mxu0 %v778
  %2824 = vmatprep.subr.mxu0 %v787
  %2825 = vmatpush1.msra.mxu0 %v786
  %2826 = vmatprep.subr.mxu0 %v795
  %2827 = vmatpush1.msra.mxu0 %v794
  %2828 = vmatprep.subr.mxu0 %v803
  %2829 = vmatpush1.msra.mxu0 %v802
  %2830 = vmatprep.subr.mxu0 %v811
  %2831 = vmatpush1.msra.mxu0 %v810
  %2832 = vmatprep.subr.mxu0 %v819
  %2833 = vmatpush1.msra.mxu0 %v818
  %2834 = vmatprep.subr.mxu0 %v827
  %2835 = vmatpush1.msra.mxu0 %v826
  %2836 = vmatprep.subr.mxu0 %v835
  %2837 = vmatpush1.msra.mxu0 %v834
  %2838 = vmatprep.subr.mxu0 %v843
  %2839 = vmatpush1.msra.mxu0 %v842
  %2840 = vmatprep.subr.mxu0 %v851
  %2841 = vmatpush1.msra.mxu0 %v850
  %2842 = vmatprep.subr.mxu0 %v859
  %2843 = vmatpush1.msra.mxu0 %v858
  %2844 = vmatprep.subr.mxu0 %v867
  %2845 = vmatpush1.msra.mxu0 %v866
  %2846 = vmatprep.subr.mxu0 %v875
  %2847 = vmatpush1.msra.mxu0 %v874
  %2848 = vmatprep.subr.mxu0 %v883
  %2849 = vmatpush1.msra.mxu0 %v882
  %2850 = vmatprep.subr.mxu0 %v891
  %2851 = vmatpush1.msra.mxu0 %v890
  %2852 = vmatprep.subr.mxu0 %v899
  %2853 = vmatpush1.msra.mxu0 %v898
  %2854 = vmatprep.subr.mxu0 %v907
  %2855 = vmatpush1.msra.mxu0 %v906
  %2856 = vmatprep.subr.mxu0 %v915
  %2857 = vmatpush1.msra.mxu0 %v914
  %2858 = vmatprep.subr.mxu0 %v923
  %2859 = vmatpush1.msra.mxu0 %v922
  %2860 = vmatprep.subr.mxu0 %v931
  %2861 = vmatpush1.msra.mxu0 %v930
  %2862 = vmatprep.subr.mxu0 %v939
  %2863 = vmatpush1.msra.mxu0 %v938
  %2864 = vmatprep.subr.mxu0 %v947
  %2865 = vmatpush1.msra.mxu0 %v946
  %2866 = vmatprep.subr.mxu0 %v955
  %2867 = vmatpush1.msra.mxu0 %v954
  %2868 = vmatprep.subr.mxu0 %v963
  %2869 = vmatpush1.msra.mxu0 %v962
  %2870 = vmatprep.subr.mxu0 %v971
  %2871 = vmatpush1.msra.mxu0 %v970
  %2872 = vmatprep.subr.mxu0 %v979
  %2873 = vmatpush1.msra.mxu0 %v978
  %2874 = vmatprep.mubr.f32.mxu0 %v2727
  %2875 = vmatmul.mubr.f32.gmra.mrb[0].mxu0 %v2726
  %v2876 = vpop.f32.mrb[0].mxu0
  %v2877 = vadd.f32 0.0, %v2876
  %v2878 = vpop.f32.mrb[0].mxu0
  %v2879 = vadd.f32 0.0, %v2878
  %2880 = vdwg.mxu0
  %2881 = vmatprep.subr.mxu0 %v733
  %2882 = vmatpush1.msra.mxu0 %v732
  %2883 = vmatprep.subr.mxu0 %v741
  %2884 = vmatpush1.msra.mxu0 %v740
  %2885 = vmatprep.subr.mxu0 %v749
  %2886 = vmatpush1.msra.mxu0 %v748
  %2887 = vmatprep.subr.mxu0 %v757
  %2888 = vmatpush1.msra.mxu0 %v756
  %2889 = vmatprep.subr.mxu0 %v765
  %2890 = vmatpush1.msra.mxu0 %v764
  %2891 = vmatprep.subr.mxu0 %v773
  %2892 = vmatpush1.msra.mxu0 %v772
  %2893 = vmatprep.subr.mxu0 %v781
  %2894 = vmatpush1.msra.mxu0 %v780
  %2895 = vmatprep.subr.mxu0 %v789
  %2896 = vmatpush1.msra.mxu0 %v788
  %2897 = vmatprep.subr.mxu0 %v797
  %2898 = vmatpush1.msra.mxu0 %v796
  %2899 = vmatprep.subr.mxu0 %v805
  %2900 = vmatpush1.msra.mxu0 %v804
  %2901 = vmatprep.subr.mxu0 %v813
  %2902 = vmatpush1.msra.mxu0 %v812
  %2903 = vmatprep.subr.mxu0 %v821
  %2904 = vmatpush1.msra.mxu0 %v820
  %2905 = vmatprep.subr.mxu0 %v829
  %2906 = vmatpush1.msra.mxu0 %v828
  %2907 = vmatprep.subr.mxu0 %v837
  %2908 = vmatpush1.msra.mxu0 %v836
  %2909 = vmatprep.subr.mxu0 %v845
  %2910 = vmatpush1.msra.mxu0 %v844
  %2911 = vmatprep.subr.mxu0 %v853
  %2912 = vmatpush1.msra.mxu0 %v852
  %2913 = vmatprep.subr.mxu0 %v861
  %2914 = vmatpush1.msra.mxu0 %v860
  %2915 = vmatprep.subr.mxu0 %v869
  %2916 = vmatpush1.msra.mxu0 %v868
  %2917 = vmatprep.subr.mxu0 %v877
  %2918 = vmatpush1.msra.mxu0 %v876
  %2919 = vmatprep.subr.mxu0 %v885
  %2920 = vmatpush1.msra.mxu0 %v884
  %2921 = vmatprep.subr.mxu0 %v893
  %2922 = vmatpush1.msra.mxu0 %v892
  %2923 = vmatprep.subr.mxu0 %v901
  %2924 = vmatpush1.msra.mxu0 %v900
  %2925 = vmatprep.subr.mxu0 %v909
  %2926 = vmatpush1.msra.mxu0 %v908
  %2927 = vmatprep.subr.mxu0 %v917
  %2928 = vmatpush1.msra.mxu0 %v916
  %2929 = vmatprep.subr.mxu0 %v925
  %2930 = vmatpush1.msra.mxu0 %v924
  %2931 = vmatprep.subr.mxu0 %v933
  %2932 = vmatpush1.msra.mxu0 %v932
  %2933 = vmatprep.subr.mxu0 %v941
  %2934 = vmatpush1.msra.mxu0 %v940
  %2935 = vmatprep.subr.mxu0 %v949
  %2936 = vmatpush1.msra.mxu0 %v948
  %2937 = vmatprep.subr.mxu0 %v957
  %2938 = vmatpush1.msra.mxu0 %v956
  %2939 = vmatprep.subr.mxu0 %v965
  %2940 = vmatpush1.msra.mxu0 %v964
  %2941 = vmatprep.subr.mxu0 %v973
  %2942 = vmatpush1.msra.mxu0 %v972
  %2943 = vmatprep.subr.mxu0 %v981
  %2944 = vmatpush1.msra.mxu0 %v980
  %2945 = vmatprep.mubr.f32.mxu0 %v2727
  %2946 = vmatmul.mubr.f32.gmra.mrb[0].mxu0 %v2726
  %v2947 = vpop.f32.mrb[0].mxu0
  %v2948 = vadd.f32 0.0, %v2947
  %v2949 = vpop.f32.mrb[0].mxu0
  %v2950 = vadd.f32 0.0, %v2949
  %2951 = vdwg.mxu0
  %2952 = vmatprep.subr.mxu0 %v735
  %2953 = vmatpush1.msra.mxu0 %v734
  %2954 = vmatprep.subr.mxu0 %v743
  %2955 = vmatpush1.msra.mxu0 %v742
  %2956 = vmatprep.subr.mxu0 %v751
  %2957 = vmatpush1.msra.mxu0 %v750
  %2958 = vmatprep.subr.mxu0 %v759
  %2959 = vmatpush1.msra.mxu0 %v758
  %2960 = vmatprep.subr.mxu0 %v767
  %2961 = vmatpush1.msra.mxu0 %v766
  %2962 = vmatprep.subr.mxu0 %v775
  %2963 = vmatpush1.msra.mxu0 %v774
  %2964 = vmatprep.subr.mxu0 %v783
  %2965 = vmatpush1.msra.mxu0 %v782
  %2966 = vmatprep.subr.mxu0 %v791
  %2967 = vmatpush1.msra.mxu0 %v790
  %2968 = vmatprep.subr.mxu0 %v799
  %2969 = vmatpush1.msra.mxu0 %v798
  %2970 = vmatprep.subr.mxu0 %v807
  %2971 = vmatpush1.msra.mxu0 %v806
  %2972 = vmatprep.subr.mxu0 %v815
  %2973 = vmatpush1.msra.mxu0 %v814
  %2974 = vmatprep.subr.mxu0 %v823
  %2975 = vmatpush1.msra.mxu0 %v822
  %2976 = vmatprep.subr.mxu0 %v831
  %2977 = vmatpush1.msra.mxu0 %v830
  %2978 = vmatprep.subr.mxu0 %v839
  %2979 = vmatpush1.msra.mxu0 %v838
  %2980 = vmatprep.subr.mxu0 %v847
  %2981 = vmatpush1.msra.mxu0 %v846
  %2982 = vmatprep.subr.mxu0 %v855
  %2983 = vmatpush1.msra.mxu0 %v854
  %2984 = vmatprep.subr.mxu0 %v863
  %2985 = vmatpush1.msra.mxu0 %v862
  %2986 = vmatprep.subr.mxu0 %v871
  %2987 = vmatpush1.msra.mxu0 %v870
  %2988 = vmatprep.subr.mxu0 %v879
  %2989 = vmatpush1.msra.mxu0 %v878
  %2990 = vmatprep.subr.mxu0 %v887
  %2991 = vmatpush1.msra.mxu0 %v886
  %2992 = vmatprep.subr.mxu0 %v895
  %2993 = vmatpush1.msra.mxu0 %v894
  %2994 = vmatprep.subr.mxu0 %v903
  %2995 = vmatpush1.msra.mxu0 %v902
  %2996 = vmatprep.subr.mxu0 %v911
  %2997 = vmatpush1.msra.mxu0 %v910
  %2998 = vmatprep.subr.mxu0 %v919
  %2999 = vmatpush1.msra.mxu0 %v918
  %3000 = vmatprep.subr.mxu0 %v927
  %3001 = vmatpush1.msra.mxu0 %v926
  %3002 = vmatprep.subr.mxu0 %v935
  %3003 = vmatpush1.msra.mxu0 %v934
  %3004 = vmatprep.subr.mxu0 %v943
  %3005 = vmatpush1.msra.mxu0 %v942
  %3006 = vmatprep.subr.mxu0 %v951
  %3007 = vmatpush1.msra.mxu0 %v950
  %3008 = vmatprep.subr.mxu0 %v959
  %3009 = vmatpush1.msra.mxu0 %v958
  %3010 = vmatprep.subr.mxu0 %v967
  %3011 = vmatpush1.msra.mxu0 %v966
  %3012 = vmatprep.subr.mxu0 %v975
  %3013 = vmatpush1.msra.mxu0 %v974
  %3014 = vmatprep.subr.mxu0 %v983
  %3015 = vmatpush1.msra.mxu0 %v982
  %3016 = vmatprep.mubr.f32.mxu0 %v2727
  %3017 = vmatmul.mubr.f32.gmra.mrb[0].mxu0 %v2726
  %v3018 = vpop.f32.mrb[0].mxu0
  %v3019 = vadd.f32 0.0, %v3018
  %v3020 = vpop.f32.mrb[0].mxu0
  %v3021 = vadd.f32 0.0, %v3020
  %3022 = vdwg.mxu0
  %v3023 = vadd.f32 %v2731, %v2806
  %v3024 = vadd.f32 %v2732, %v2808
  %v3025 = vadd.f32 %v2733, %v2877
  %v3026 = vadd.f32 %v2734, %v2879
  %v3027 = vadd.f32 %v2735, %v2948
  %v3028 = vadd.f32 %v2736, %v2950
  %v3029 = vadd.f32 %v2737, %v3019
  %v3030 = vadd.f32 %v2738, %v3021
  %v3031 = vxor.u32 %v3023, 2147483648
  %v3032 = vxor.u32 %v3024, 2147483648
  %v3033 = vmul.f32 %v3031, 1.442695
  %v3034 = vpow.pop %v3033
  %v3035 = vmul.f32 %v3032, 1.442695
  %v3036 = vpow.pop %v3035
  %v3037 = vadd.f32 %v3034, 1.0
  %v3038 = vadd.f32 %v3036, 1.0
  %v3039 = vrcp.pop %v3037
  %v3040 = vmul.f32 1.0, %v3039
  %v3041 = vrcp.pop %v3038
  %v3042 = vmul.f32 1.0, %v3041
  %v3043 = vxor.u32 %v3025, 2147483648
  %v3044 = vxor.u32 %v3026, 2147483648
  %v3045 = vmul.f32 %v3043, 1.442695
  %v3046 = vpow.pop %v3045
  %v3047 = vmul.f32 %v3044, 1.442695
  %v3048 = vpow.pop %v3047
  %v3049 = vadd.f32 %v3046, 1.0
  %v3050 = vadd.f32 %v3048, 1.0
  %v3051 = vrcp.pop %v3049
  %v3052 = vmul.f32 1.0, %v3051
  %v3053 = vrcp.pop %v3050
  %v3054 = vmul.f32 1.0, %v3053
  %v3055 = vtanh.pop %v3027
  %v3056 = vtanh.pop %v3028
  %v3057 = vxor.u32 %v3029, 2147483648
  %v3058 = vxor.u32 %v3030, 2147483648
  %v3059 = vmul.f32 %v3057, 1.442695
  %v3060 = vpow.pop %v3059
  %v3061 = vmul.f32 %v3058, 1.442695
  %v3062 = vpow.pop %v3061
  %v3063 = vadd.f32 %v3060, 1.0
  %v3064 = vadd.f32 %v3062, 1.0
  %v3065 = vrcp.pop %v3063
  %v3066 = vmul.f32 1.0, %v3065
  %v3067 = vrcp.pop %v3064
  %v3068 = vmul.f32 1.0, %v3067
  %v3069 = vmul.f32 %v3052, %v2722
  %v3070 = vmul.f32 %v3054, %v2723
  %v3071 = vmul.f32 %v3040, %v3055
  %v3072 = vmul.f32 %v3042, %v3056
  %v3073 = vadd.f32 %v3069, %v3071
  %v3074 = vadd.f32 %v3070, %v3072
  %v3075 = vtanh.pop %v3073
  %v3076 = vtanh.pop %v3074
  %v3077 = vmul.f32 %v3066, %v3075
  %v3078 = vmul.f32 %v3068, %v3076
  %s3079 = smul.u32 6, 8
  %s3080 = smul.addr %s3079, 8
  %s3081 = scalar_lea.vmem [#allocation2], %s3080
  %v3082 = vld [vmem:[%s3081] sm:$0xff]
  %v3083 = vld [vmem:[%s3081 + $0x8] sm:$0xff]
  %v3084 = vld [vmem:[%s3081 + $0x10] sm:$0xff]
  %v3085 = vld [vmem:[%s3081 + $0x18] sm:$0xff]
  %v3086 = vld [vmem:[%s3081 + $0x20] sm:$0xff]
  %v3087 = vld [vmem:[%s3081 + $0x28] sm:$0xff]
  %v3088 = vld [vmem:[%s3081 + $0x30] sm:$0xff]
  %v3089 = vld [vmem:[%s3081 + $0x38] sm:$0xff]
  %3090 = vmatprep.subr.mxu0 %v729
  %3091 = vmatpush1.msra.mxu0 %v728
  %3092 = vmatprep.subr.mxu0 %v737
  %3093 = vmatpush1.msra.mxu0 %v736
  %3094 = vmatprep.subr.mxu0 %v745
  %3095 = vmatpush1.msra.mxu0 %v744
  %3096 = vmatprep.subr.mxu0 %v753
  %3097 = vmatpush1.msra.mxu0 %v752
  %3098 = vmatprep.subr.mxu0 %v761
  %3099 = vmatpush1.msra.mxu0 %v760
  %3100 = vmatprep.subr.mxu0 %v769
  %3101 = vmatpush1.msra.mxu0 %v768
  %3102 = vmatprep.subr.mxu0 %v777
  %3103 = vmatpush1.msra.mxu0 %v776
  %3104 = vmatprep.subr.mxu0 %v785
  %3105 = vmatpush1.msra.mxu0 %v784
  %3106 = vmatprep.subr.mxu0 %v793
  %3107 = vmatpush1.msra.mxu0 %v792
  %3108 = vmatprep.subr.mxu0 %v801
  %3109 = vmatpush1.msra.mxu0 %v800
  %3110 = vmatprep.subr.mxu0 %v809
  %3111 = vmatpush1.msra.mxu0 %v808
  %3112 = vmatprep.subr.mxu0 %v817
  %3113 = vmatpush1.msra.mxu0 %v816
  %3114 = vmatprep.subr.mxu0 %v825
  %3115 = vmatpush1.msra.mxu0 %v824
  %3116 = vmatprep.subr.mxu0 %v833
  %3117 = vmatpush1.msra.mxu0 %v832
  %3118 = vmatprep.subr.mxu0 %v841
  %3119 = vmatpush1.msra.mxu0 %v840
  %3120 = vmatprep.subr.mxu0 %v849
  %3121 = vmatpush1.msra.mxu0 %v848
  %3122 = vmatprep.subr.mxu0 %v857
  %3123 = vmatpush1.msra.mxu0 %v856
  %3124 = vmatprep.subr.mxu0 %v865
  %3125 = vmatpush1.msra.mxu0 %v864
  %3126 = vmatprep.subr.mxu0 %v873
  %3127 = vmatpush1.msra.mxu0 %v872
  %3128 = vmatprep.subr.mxu0 %v881
  %3129 = vmatpush1.msra.mxu0 %v880
  %3130 = vmatprep.subr.mxu0 %v889
  %3131 = vmatpush1.msra.mxu0 %v888
  %3132 = vmatprep.subr.mxu0 %v897
  %3133 = vmatpush1.msra.mxu0 %v896
  %3134 = vmatprep.subr.mxu0 %v905
  %3135 = vmatpush1.msra.mxu0 %v904
  %3136 = vmatprep.subr.mxu0 %v913
  %3137 = vmatpush1.msra.mxu0 %v912
  %3138 = vmatprep.subr.mxu0 %v921
  %3139 = vmatpush1.msra.mxu0 %v920
  %3140 = vmatprep.subr.mxu0 %v929
  %3141 = vmatpush1.msra.mxu0 %v928
  %3142 = vmatprep.subr.mxu0 %v937
  %3143 = vmatpush1.msra.mxu0 %v936
  %3144 = vmatprep.subr.mxu0 %v945
  %3145 = vmatpush1.msra.mxu0 %v944
  %3146 = vmatprep.subr.mxu0 %v953
  %3147 = vmatpush1.msra.mxu0 %v952
  %3148 = vmatprep.subr.mxu0 %v961
  %3149 = vmatpush1.msra.mxu0 %v960
  %3150 = vmatprep.subr.mxu0 %v969
  %3151 = vmatpush1.msra.mxu0 %v968
  %3152 = vmatprep.subr.mxu0 %v977
  %3153 = vmatpush1.msra.mxu0 %v976
  %3154 = vmatprep.mubr.f32.mxu0 %v3078
  %3155 = vmatmul.mubr.f32.gmra.mrb[0].mxu0 %v3077
  %v3156 = vpop.f32.mrb[0].mxu0
  %v3157 = vadd.f32 0.0, %v3156
  %v3158 = vpop.f32.mrb[0].mxu0
  %v3159 = vadd.f32 0.0, %v3158
  %3160 = vdwg.mxu0
  %3161 = vmatprep.subr.mxu0 %v731
  %3162 = vmatpush1.msra.mxu0 %v730
  %3163 = vmatprep.subr.mxu0 %v739
  %3164 = vmatpush1.msra.mxu0 %v738
  %3165 = vmatprep.subr.mxu0 %v747
  %3166 = vmatpush1.msra.mxu0 %v746
  %3167 = vmatprep.subr.mxu0 %v755
  %3168 = vmatpush1.msra.mxu0 %v754
  %3169 = vmatprep.subr.mxu0 %v763
  %3170 = vmatpush1.msra.mxu0 %v762
  %3171 = vmatprep.subr.mxu0 %v771
  %3172 = vmatpush1.msra.mxu0 %v770
  %3173 = vmatprep.subr.mxu0 %v779
  %3174 = vmatpush1.msra.mxu0 %v778
  %3175 = vmatprep.subr.mxu0 %v787
  %3176 = vmatpush1.msra.mxu0 %v786
  %3177 = vmatprep.subr.mxu0 %v795
  %3178 = vmatpush1.msra.mxu0 %v794
  %3179 = vmatprep.subr.mxu0 %v803
  %3180 = vmatpush1.msra.mxu0 %v802
  %3181 = vmatprep.subr.mxu0 %v811
  %3182 = vmatpush1.msra.mxu0 %v810
  %3183 = vmatprep.subr.mxu0 %v819
  %3184 = vmatpush1.msra.mxu0 %v818
  %3185 = vmatprep.subr.mxu0 %v827
  %3186 = vmatpush1.msra.mxu0 %v826
  %3187 = vmatprep.subr.mxu0 %v835
  %3188 = vmatpush1.msra.mxu0 %v834
  %3189 = vmatprep.subr.mxu0 %v843
  %3190 = vmatpush1.msra.mxu0 %v842
  %3191 = vmatprep.subr.mxu0 %v851
  %3192 = vmatpush1.msra.mxu0 %v850
  %3193 = vmatprep.subr.mxu0 %v859
  %3194 = vmatpush1.msra.mxu0 %v858
  %3195 = vmatprep.subr.mxu0 %v867
  %3196 = vmatpush1.msra.mxu0 %v866
  %3197 = vmatprep.subr.mxu0 %v875
  %3198 = vmatpush1.msra.mxu0 %v874
  %3199 = vmatprep.subr.mxu0 %v883
  %3200 = vmatpush1.msra.mxu0 %v882
  %3201 = vmatprep.subr.mxu0 %v891
  %3202 = vmatpush1.msra.mxu0 %v890
  %3203 = vmatprep.subr.mxu0 %v899
  %3204 = vmatpush1.msra.mxu0 %v898
  %3205 = vmatprep.subr.mxu0 %v907
  %3206 = vmatpush1.msra.mxu0 %v906
  %3207 = vmatprep.subr.mxu0 %v915
  %3208 = vmatpush1.msra.mxu0 %v914
  %3209 = vmatprep.subr.mxu0 %v923
  %3210 = vmatpush1.msra.mxu0 %v922
  %3211 = vmatprep.subr.mxu0 %v931
  %3212 = vmatpush1.msra.mxu0 %v930
  %3213 = vmatprep.subr.mxu0 %v939
  %3214 = vmatpush1.msra.mxu0 %v938
  %3215 = vmatprep.subr.mxu0 %v947
  %3216 = vmatpush1.msra.mxu0 %v946
  %3217 = vmatprep.subr.mxu0 %v955
  %3218 = vmatpush1.msra.mxu0 %v954
  %3219 = vmatprep.subr.mxu0 %v963
  %3220 = vmatpush1.msra.mxu0 %v962
  %3221 = vmatprep.subr.mxu0 %v971
  %3222 = vmatpush1.msra.mxu0 %v970
  %3223 = vmatprep.subr.mxu0 %v979
  %3224 = vmatpush1.msra.mxu0 %v978
  %3225 = vmatprep.mubr.f32.mxu0 %v3078
  %3226 = vmatmul.mubr.f32.gmra.mrb[0].mxu0 %v3077
  %v3227 = vpop.f32.mrb[0].mxu0
  %v3228 = vadd.f32 0.0, %v3227
  %v3229 = vpop.f32.mrb[0].mxu0
  %v3230 = vadd.f32 0.0, %v3229
  %3231 = vdwg.mxu0
  %3232 = vmatprep.subr.mxu0 %v733
  %3233 = vmatpush1.msra.mxu0 %v732
  %3234 = vmatprep.subr.mxu0 %v741
  %3235 = vmatpush1.msra.mxu0 %v740
  %3236 = vmatprep.subr.mxu0 %v749
  %3237 = vmatpush1.msra.mxu0 %v748
  %3238 = vmatprep.subr.mxu0 %v757
  %3239 = vmatpush1.msra.mxu0 %v756
  %3240 = vmatprep.subr.mxu0 %v765
  %3241 = vmatpush1.msra.mxu0 %v764
  %3242 = vmatprep.subr.mxu0 %v773
  %3243 = vmatpush1.msra.mxu0 %v772
  %3244 = vmatprep.subr.mxu0 %v781
  %3245 = vmatpush1.msra.mxu0 %v780
  %3246 = vmatprep.subr.mxu0 %v789
  %3247 = vmatpush1.msra.mxu0 %v788
  %3248 = vmatprep.subr.mxu0 %v797
  %3249 = vmatpush1.msra.mxu0 %v796
  %3250 = vmatprep.subr.mxu0 %v805
  %3251 = vmatpush1.msra.mxu0 %v804
  %3252 = vmatprep.subr.mxu0 %v813
  %3253 = vmatpush1.msra.mxu0 %v812
  %3254 = vmatprep.subr.mxu0 %v821
  %3255 = vmatpush1.msra.mxu0 %v820
  %3256 = vmatprep.subr.mxu0 %v829
  %3257 = vmatpush1.msra.mxu0 %v828
  %3258 = vmatprep.subr.mxu0 %v837
  %3259 = vmatpush1.msra.mxu0 %v836
  %3260 = vmatprep.subr.mxu0 %v845
  %3261 = vmatpush1.msra.mxu0 %v844
  %3262 = vmatprep.subr.mxu0 %v853
  %3263 = vmatpush1.msra.mxu0 %v852
  %3264 = vmatprep.subr.mxu0 %v861
  %3265 = vmatpush1.msra.mxu0 %v860
  %3266 = vmatprep.subr.mxu0 %v869
  %3267 = vmatpush1.msra.mxu0 %v868
  %3268 = vmatprep.subr.mxu0 %v877
  %3269 = vmatpush1.msra.mxu0 %v876
  %3270 = vmatprep.subr.mxu0 %v885
  %3271 = vmatpush1.msra.mxu0 %v884
  %3272 = vmatprep.subr.mxu0 %v893
  %3273 = vmatpush1.msra.mxu0 %v892
  %3274 = vmatprep.subr.mxu0 %v901
  %3275 = vmatpush1.msra.mxu0 %v900
  %3276 = vmatprep.subr.mxu0 %v909
  %3277 = vmatpush1.msra.mxu0 %v908
  %3278 = vmatprep.subr.mxu0 %v917
  %3279 = vmatpush1.msra.mxu0 %v916
  %3280 = vmatprep.subr.mxu0 %v925
  %3281 = vmatpush1.msra.mxu0 %v924
  %3282 = vmatprep.subr.mxu0 %v933
  %3283 = vmatpush1.msra.mxu0 %v932
  %3284 = vmatprep.subr.mxu0 %v941
  %3285 = vmatpush1.msra.mxu0 %v940
  %3286 = vmatprep.subr.mxu0 %v949
  %3287 = vmatpush1.msra.mxu0 %v948
  %3288 = vmatprep.subr.mxu0 %v957
  %3289 = vmatpush1.msra.mxu0 %v956
  %3290 = vmatprep.subr.mxu0 %v965
  %3291 = vmatpush1.msra.mxu0 %v964
  %3292 = vmatprep.subr.mxu0 %v973
  %3293 = vmatpush1.msra.mxu0 %v972
  %3294 = vmatprep.subr.mxu0 %v981
  %3295 = vmatpush1.msra.mxu0 %v980
  %3296 = vmatprep.mubr.f32.mxu0 %v3078
  %3297 = vmatmul.mubr.f32.gmra.mrb[0].mxu0 %v3077
  %v3298 = vpop.f32.mrb[0].mxu0
  %v3299 = vadd.f32 0.0, %v3298
  %v3300 = vpop.f32.mrb[0].mxu0
  %v3301 = vadd.f32 0.0, %v3300
  %3302 = vdwg.mxu0
  %3303 = vmatprep.subr.mxu0 %v735
  %3304 = vmatpush1.msra.mxu0 %v734
  %3305 = vmatprep.subr.mxu0 %v743
  %3306 = vmatpush1.msra.mxu0 %v742
  %3307 = vmatprep.subr.mxu0 %v751
  %3308 = vmatpush1.msra.mxu0 %v750
  %3309 = vmatprep.subr.mxu0 %v759
  %3310 = vmatpush1.msra.mxu0 %v758
  %3311 = vmatprep.subr.mxu0 %v767
  %3312 = vmatpush1.msra.mxu0 %v766
  %3313 = vmatprep.subr.mxu0 %v775
  %3314 = vmatpush1.msra.mxu0 %v774
  %3315 = vmatprep.subr.mxu0 %v783
  %3316 = vmatpush1.msra.mxu0 %v782
  %3317 = vmatprep.subr.mxu0 %v791
  %3318 = vmatpush1.msra.mxu0 %v790
  %3319 = vmatprep.subr.mxu0 %v799
  %3320 = vmatpush1.msra.mxu0 %v798
  %3321 = vmatprep.subr.mxu0 %v807
  %3322 = vmatpush1.msra.mxu0 %v806
  %3323 = vmatprep.subr.mxu0 %v815
  %3324 = vmatpush1.msra.mxu0 %v814
  %3325 = vmatprep.subr.mxu0 %v823
  %3326 = vmatpush1.msra.mxu0 %v822
  %3327 = vmatprep.subr.mxu0 %v831
  %3328 = vmatpush1.msra.mxu0 %v830
  %3329 = vmatprep.subr.mxu0 %v839
  %3330 = vmatpush1.msra.mxu0 %v838
  %3331 = vmatprep.subr.mxu0 %v847
  %3332 = vmatpush1.msra.mxu0 %v846
  %3333 = vmatprep.subr.mxu0 %v855
  %3334 = vmatpush1.msra.mxu0 %v854
  %3335 = vmatprep.subr.mxu0 %v863
  %3336 = vmatpush1.msra.mxu0 %v862
  %3337 = vmatprep.subr.mxu0 %v871
  %3338 = vmatpush1.msra.mxu0 %v870
  %3339 = vmatprep.subr.mxu0 %v879
  %3340 = vmatpush1.msra.mxu0 %v878
  %3341 = vmatprep.subr.mxu0 %v887
  %3342 = vmatpush1.msra.mxu0 %v886
  %3343 = vmatprep.subr.mxu0 %v895
  %3344 = vmatpush1.msra.mxu0 %v894
  %3345 = vmatprep.subr.mxu0 %v903
  %3346 = vmatpush1.msra.mxu0 %v902
  %3347 = vmatprep.subr.mxu0 %v911
  %3348 = vmatpush1.msra.mxu0 %v910
  %3349 = vmatprep.subr.mxu0 %v919
  %3350 = vmatpush1.msra.mxu0 %v918
  %3351 = vmatprep.subr.mxu0 %v927
  %3352 = vmatpush1.msra.mxu0 %v926
  %3353 = vmatprep.subr.mxu0 %v935
  %3354 = vmatpush1.msra.mxu0 %v934
  %3355 = vmatprep.subr.mxu0 %v943
  %3356 = vmatpush1.msra.mxu0 %v942
  %3357 = vmatprep.subr.mxu0 %v951
  %3358 = vmatpush1.msra.mxu0 %v950
  %3359 = vmatprep.subr.mxu0 %v959
  %3360 = vmatpush1.msra.mxu0 %v958
  %3361 = vmatprep.subr.mxu0 %v967
  %3362 = vmatpush1.msra.mxu0 %v966
  %3363 = vmatprep.subr.mxu0 %v975
  %3364 = vmatpush1.msra.mxu0 %v974
  %3365 = vmatprep.subr.mxu0 %v983
  %3366 = vmatpush1.msra.mxu0 %v982
  %3367 = vmatprep.mubr.f32.mxu0 %v3078
  %3368 = vmatmul.mubr.f32.gmra.mrb[0].mxu0 %v3077
  %v3369 = vpop.f32.mrb[0].mxu0
  %v3370 = vadd.f32 0.0, %v3369
  %v3371 = vpop.f32.mrb[0].mxu0
  %v3372 = vadd.f32 0.0, %v3371
  %3373 = vdwg.mxu0
  %v3374 = vadd.f32 %v3082, %v3157
  %v3375 = vadd.f32 %v3083, %v3159
  %v3376 = vadd.f32 %v3084, %v3228
  %v3377 = vadd.f32 %v3085, %v3230
  %v3378 = vadd.f32 %v3086, %v3299
  %v3379 = vadd.f32 %v3087, %v3301
  %v3380 = vadd.f32 %v3088, %v3370
  %v3381 = vadd.f32 %v3089, %v3372
  %v3382 = vxor.u32 %v3374, 2147483648
  %v3383 = vxor.u32 %v3375, 2147483648
  %v3384 = vmul.f32 %v3382, 1.442695
  %v3385 = vpow.pop %v3384
  %v3386 = vmul.f32 %v3383, 1.442695
  %v3387 = vpow.pop %v3386
  %v3388 = vadd.f32 %v3385, 1.0
  %v3389 = vadd.f32 %v3387, 1.0
  %v3390 = vrcp.pop %v3388
  %v3391 = vmul.f32 1.0, %v3390
  %v3392 = vrcp.pop %v3389
  %v3393 = vmul.f32 1.0, %v3392
  %v3394 = vxor.u32 %v3376, 2147483648
  %v3395 = vxor.u32 %v3377, 2147483648
  %v3396 = vmul.f32 %v3394, 1.442695
  %v3397 = vpow.pop %v3396
  %v3398 = vmul.f32 %v3395, 1.442695
  %v3399 = vpow.pop %v3398
  %v3400 = vadd.f32 %v3397, 1.0
  %v3401 = vadd.f32 %v3399, 1.0
  %v3402 = vrcp.pop %v3400
  %v3403 = vmul.f32 1.0, %v3402
  %v3404 = vrcp.pop %v3401
  %v3405 = vmul.f32 1.0, %v3404
  %v3406 = vtanh.pop %v3378
  %v3407 = vtanh.pop %v3379
  %v3408 = vxor.u32 %v3380, 2147483648
  %v3409 = vxor.u32 %v3381, 2147483648
  %v3410 = vmul.f32 %v3408, 1.442695
  %v3411 = vpow.pop %v3410
  %v3412 = vmul.f32 %v3409, 1.442695
  %v3413 = vpow.pop %v3412
  %v3414 = vadd.f32 %v3411, 1.0
  %v3415 = vadd.f32 %v3413, 1.0
  %v3416 = vrcp.pop %v3414
  %v3417 = vmul.f32 1.0, %v3416
  %v3418 = vrcp.pop %v3415
  %v3419 = vmul.f32 1.0, %v3418
  %v3420 = vmul.f32 %v3403, %v3073
  %v3421 = vmul.f32 %v3405, %v3074
  %v3422 = vmul.f32 %v3391, %v3406
  %v3423 = vmul.f32 %v3393, %v3407
  %v3424 = vadd.f32 %v3420, %v3422
  %v3425 = vadd.f32 %v3421, %v3423
  %v3426 = vtanh.pop %v3424
  %v3427 = vtanh.pop %v3425
  %v3428 = vmul.f32 %v3417, %v3426
  %v3429 = vmul.f32 %v3419, %v3427
  %s3430 = smul.u32 7, 8
  %s3431 = smul.addr %s3430, 8
  %s3432 = scalar_lea.vmem [#allocation2], %s3431
  %v3433 = vld [vmem:[%s3432] sm:$0xff]
  %v3434 = vld [vmem:[%s3432 + $0x8] sm:$0xff]
  %v3435 = vld [vmem:[%s3432 + $0x10] sm:$0xff]
  %v3436 = vld [vmem:[%s3432 + $0x18] sm:$0xff]
  %v3437 = vld [vmem:[%s3432 + $0x20] sm:$0xff]
  %v3438 = vld [vmem:[%s3432 + $0x28] sm:$0xff]
  %3439 = vmatprep.subr.mxu0 %v729
  %3440 = vmatpush1.msra.mxu0 %v728
  %3441 = vmatprep.subr.mxu0 %v737
  %3442 = vmatpush1.msra.mxu0 %v736
  %3443 = vmatprep.subr.mxu0 %v745
  %3444 = vmatpush1.msra.mxu0 %v744
  %3445 = vmatprep.subr.mxu0 %v753
  %3446 = vmatpush1.msra.mxu0 %v752
  %3447 = vmatprep.subr.mxu0 %v761
  %3448 = vmatpush1.msra.mxu0 %v760
  %3449 = vmatprep.subr.mxu0 %v769
  %3450 = vmatpush1.msra.mxu0 %v768
  %3451 = vmatprep.subr.mxu0 %v777
  %3452 = vmatpush1.msra.mxu0 %v776
  %3453 = vmatprep.subr.mxu0 %v785
  %3454 = vmatpush1.msra.mxu0 %v784
  %3455 = vmatprep.subr.mxu0 %v793
  %3456 = vmatpush1.msra.mxu0 %v792
  %3457 = vmatprep.subr.mxu0 %v801
  %3458 = vmatpush1.msra.mxu0 %v800
  %3459 = vmatprep.subr.mxu0 %v809
  %3460 = vmatpush1.msra.mxu0 %v808
  %3461 = vmatprep.subr.mxu0 %v817
  %3462 = vmatpush1.msra.mxu0 %v816
  %3463 = vmatprep.subr.mxu0 %v825
  %3464 = vmatpush1.msra.mxu0 %v824
  %3465 = vmatprep.subr.mxu0 %v833
  %3466 = vmatpush1.msra.mxu0 %v832
  %3467 = vmatprep.subr.mxu0 %v841
  %3468 = vmatpush1.msra.mxu0 %v840
  %3469 = vmatprep.subr.mxu0 %v849
  %3470 = vmatpush1.msra.mxu0 %v848
  %3471 = vmatprep.subr.mxu0 %v857
  %3472 = vmatpush1.msra.mxu0 %v856
  %3473 = vmatprep.subr.mxu0 %v865
  %3474 = vmatpush1.msra.mxu0 %v864
  %3475 = vmatprep.subr.mxu0 %v873
  %3476 = vmatpush1.msra.mxu0 %v872
  %3477 = vmatprep.subr.mxu0 %v881
  %3478 = vmatpush1.msra.mxu0 %v880
  %3479 = vmatprep.subr.mxu0 %v889
  %3480 = vmatpush1.msra.mxu0 %v888
  %3481 = vmatprep.subr.mxu0 %v897
  %3482 = vmatpush1.msra.mxu0 %v896
  %3483 = vmatprep.subr.mxu0 %v905
  %3484 = vmatpush1.msra.mxu0 %v904
  %3485 = vmatprep.subr.mxu0 %v913
  %3486 = vmatpush1.msra.mxu0 %v912
  %3487 = vmatprep.subr.mxu0 %v921
  %3488 = vmatpush1.msra.mxu0 %v920
  %3489 = vmatprep.subr.mxu0 %v929
  %3490 = vmatpush1.msra.mxu0 %v928
  %3491 = vmatprep.subr.mxu0 %v937
  %3492 = vmatpush1.msra.mxu0 %v936
  %3493 = vmatprep.subr.mxu0 %v945
  %3494 = vmatpush1.msra.mxu0 %v944
  %3495 = vmatprep.subr.mxu0 %v953
  %3496 = vmatpush1.msra.mxu0 %v952
  %3497 = vmatprep.subr.mxu0 %v961
  %3498 = vmatpush1.msra.mxu0 %v960
  %3499 = vmatprep.subr.mxu0 %v969
  %3500 = vmatpush1.msra.mxu0 %v968
  %3501 = vmatprep.subr.mxu0 %v977
  %3502 = vmatpush1.msra.mxu0 %v976
  %3503 = vmatprep.mubr.f32.mxu0 %v3429
  %3504 = vmatmul.mubr.f32.gmra.mrb[0].mxu0 %v3428
  %v3505 = vpop.f32.mrb[0].mxu0
  %v3506 = vadd.f32 0.0, %v3505
  %v3507 = vpop.f32.mrb[0].mxu0
  %v3508 = vadd.f32 0.0, %v3507
  %3509 = vdwg.mxu0
  %3510 = vmatprep.subr.mxu0 %v731
  %3511 = vmatpush1.msra.mxu0 %v730
  %3512 = vmatprep.subr.mxu0 %v739
  %3513 = vmatpush1.msra.mxu0 %v738
  %3514 = vmatprep.subr.mxu0 %v747
  %3515 = vmatpush1.msra.mxu0 %v746
  %3516 = vmatprep.subr.mxu0 %v755
  %3517 = vmatpush1.msra.mxu0 %v754
  %3518 = vmatprep.subr.mxu0 %v763
  %3519 = vmatpush1.msra.mxu0 %v762
  %3520 = vmatprep.subr.mxu0 %v771
  %3521 = vmatpush1.msra.mxu0 %v770
  %3522 = vmatprep.subr.mxu0 %v779
  %3523 = vmatpush1.msra.mxu0 %v778
  %3524 = vmatprep.subr.mxu0 %v787
  %3525 = vmatpush1.msra.mxu0 %v786
  %3526 = vmatprep.subr.mxu0 %v795
  %3527 = vmatpush1.msra.mxu0 %v794
  %3528 = vmatprep.subr.mxu0 %v803
  %3529 = vmatpush1.msra.mxu0 %v802
  %3530 = vmatprep.subr.mxu0 %v811
  %3531 = vmatpush1.msra.mxu0 %v810
  %3532 = vmatprep.subr.mxu0 %v819
  %3533 = vmatpush1.msra.mxu0 %v818
  %3534 = vmatprep.subr.mxu0 %v827
  %3535 = vmatpush1.msra.mxu0 %v826
  %3536 = vmatprep.subr.mxu0 %v835
  %3537 = vmatpush1.msra.mxu0 %v834
  %3538 = vmatprep.subr.mxu0 %v843
  %3539 = vmatpush1.msra.mxu0 %v842
  %3540 = vmatprep.subr.mxu0 %v851
  %3541 = vmatpush1.msra.mxu0 %v850
  %3542 = vmatprep.subr.mxu0 %v859
  %3543 = vmatpush1.msra.mxu0 %v858
  %3544 = vmatprep.subr.mxu0 %v867
  %3545 = vmatpush1.msra.mxu0 %v866
  %3546 = vmatprep.subr.mxu0 %v875
  %3547 = vmatpush1.msra.mxu0 %v874
  %3548 = vmatprep.subr.mxu0 %v883
  %3549 = vmatpush1.msra.mxu0 %v882
  %3550 = vmatprep.subr.mxu0 %v891
  %3551 = vmatpush1.msra.mxu0 %v890
  %3552 = vmatprep.subr.mxu0 %v899
  %3553 = vmatpush1.msra.mxu0 %v898
  %3554 = vmatprep.subr.mxu0 %v907
  %3555 = vmatpush1.msra.mxu0 %v906
  %3556 = vmatprep.subr.mxu0 %v915
  %3557 = vmatpush1.msra.mxu0 %v914
  %3558 = vmatprep.subr.mxu0 %v923
  %3559 = vmatpush1.msra.mxu0 %v922
  %3560 = vmatprep.subr.mxu0 %v931
  %3561 = vmatpush1.msra.mxu0 %v930
  %3562 = vmatprep.subr.mxu0 %v939
  %3563 = vmatpush1.msra.mxu0 %v938
  %3564 = vmatprep.subr.mxu0 %v947
  %3565 = vmatpush1.msra.mxu0 %v946
  %3566 = vmatprep.subr.mxu0 %v955
  %3567 = vmatpush1.msra.mxu0 %v954
  %3568 = vmatprep.subr.mxu0 %v963
  %3569 = vmatpush1.msra.mxu0 %v962
  %3570 = vmatprep.subr.mxu0 %v971
  %3571 = vmatpush1.msra.mxu0 %v970
  %3572 = vmatprep.subr.mxu0 %v979
  %3573 = vmatpush1.msra.mxu0 %v978
  %3574 = vmatprep.mubr.f32.mxu0 %v3429
  %3575 = vmatmul.mubr.f32.gmra.mrb[0].mxu0 %v3428
  %v3576 = vpop.f32.mrb[0].mxu0
  %v3577 = vadd.f32 0.0, %v3576
  %v3578 = vpop.f32.mrb[0].mxu0
  %v3579 = vadd.f32 0.0, %v3578
  %3580 = vdwg.mxu0
  %3581 = vmatprep.subr.mxu0 %v733
  %3582 = vmatpush1.msra.mxu0 %v732
  %3583 = vmatprep.subr.mxu0 %v741
  %3584 = vmatpush1.msra.mxu0 %v740
  %3585 = vmatprep.subr.mxu0 %v749
  %3586 = vmatpush1.msra.mxu0 %v748
  %3587 = vmatprep.subr.mxu0 %v757
  %3588 = vmatpush1.msra.mxu0 %v756
  %3589 = vmatprep.subr.mxu0 %v765
  %3590 = vmatpush1.msra.mxu0 %v764
  %3591 = vmatprep.subr.mxu0 %v773
  %3592 = vmatpush1.msra.mxu0 %v772
  %3593 = vmatprep.subr.mxu0 %v781
  %3594 = vmatpush1.msra.mxu0 %v780
  %3595 = vmatprep.subr.mxu0 %v789
  %3596 = vmatpush1.msra.mxu0 %v788
  %3597 = vmatprep.subr.mxu0 %v797
  %3598 = vmatpush1.msra.mxu0 %v796
  %3599 = vmatprep.subr.mxu0 %v805
  %3600 = vmatpush1.msra.mxu0 %v804
  %3601 = vmatprep.subr.mxu0 %v813
  %3602 = vmatpush1.msra.mxu0 %v812
  %3603 = vmatprep.subr.mxu0 %v821
  %3604 = vmatpush1.msra.mxu0 %v820
  %3605 = vmatprep.subr.mxu0 %v829
  %3606 = vmatpush1.msra.mxu0 %v828
  %3607 = vmatprep.subr.mxu0 %v837
  %3608 = vmatpush1.msra.mxu0 %v836
  %3609 = vmatprep.subr.mxu0 %v845
  %3610 = vmatpush1.msra.mxu0 %v844
  %3611 = vmatprep.subr.mxu0 %v853
  %3612 = vmatpush1.msra.mxu0 %v852
  %3613 = vmatprep.subr.mxu0 %v861
  %3614 = vmatpush1.msra.mxu0 %v860
  %3615 = vmatprep.subr.mxu0 %v869
  %3616 = vmatpush1.msra.mxu0 %v868
  %3617 = vmatprep.subr.mxu0 %v877
  %3618 = vmatpush1.msra.mxu0 %v876
  %3619 = vmatprep.subr.mxu0 %v885
  %3620 = vmatpush1.msra.mxu0 %v884
  %3621 = vmatprep.subr.mxu0 %v893
  %3622 = vmatpush1.msra.mxu0 %v892
  %3623 = vmatprep.subr.mxu0 %v901
  %3624 = vmatpush1.msra.mxu0 %v900
  %3625 = vmatprep.subr.mxu0 %v909
  %3626 = vmatpush1.msra.mxu0 %v908
  %3627 = vmatprep.subr.mxu0 %v917
  %3628 = vmatpush1.msra.mxu0 %v916
  %3629 = vmatprep.subr.mxu0 %v925
  %3630 = vmatpush1.msra.mxu0 %v924
  %3631 = vmatprep.subr.mxu0 %v933
  %3632 = vmatpush1.msra.mxu0 %v932
  %3633 = vmatprep.subr.mxu0 %v941
  %3634 = vmatpush1.msra.mxu0 %v940
  %3635 = vmatprep.subr.mxu0 %v949
  %3636 = vmatpush1.msra.mxu0 %v948
  %3637 = vmatprep.subr.mxu0 %v957
  %3638 = vmatpush1.msra.mxu0 %v956
  %3639 = vmatprep.subr.mxu0 %v965
  %3640 = vmatpush1.msra.mxu0 %v964
  %3641 = vmatprep.subr.mxu0 %v973
  %3642 = vmatpush1.msra.mxu0 %v972
  %3643 = vmatprep.subr.mxu0 %v981
  %3644 = vmatpush1.msra.mxu0 %v980
  %3645 = vmatprep.mubr.f32.mxu0 %v3429
  %3646 = vmatmul.mubr.f32.gmra.mrb[0].mxu0 %v3428
  %v3647 = vpop.f32.mrb[0].mxu0
  %v3648 = vadd.f32 0.0, %v3647
  %v3649 = vpop.f32.mrb[0].mxu0
  %v3650 = vadd.f32 0.0, %v3649
  %3651 = vdwg.mxu0
  %v3652 = vadd.f32 %v3433, %v3506
  %v3653 = vadd.f32 %v3434, %v3508
  %v3654 = vadd.f32 %v3435, %v3577
  %v3655 = vadd.f32 %v3436, %v3579
  %v3656 = vadd.f32 %v3437, %v3648
  %v3657 = vadd.f32 %v3438, %v3650
  %v3658 = vxor.u32 %v3652, 2147483648
  %v3659 = vxor.u32 %v3653, 2147483648
  %v3660 = vmul.f32 %v3658, 1.442695
  %v3661 = vpow.pop %v3660
  %v3662 = vmul.f32 %v3659, 1.442695
  %v3663 = vpow.pop %v3662
  %v3664 = vadd.f32 %v3661, 1.0
  %v3665 = vadd.f32 %v3663, 1.0
  %v3666 = vrcp.pop %v3664
  %v3667 = vmul.f32 1.0, %v3666
  %v3668 = vrcp.pop %v3665
  %v3669 = vmul.f32 1.0, %v3668
  %v3670 = vxor.u32 %v3654, 2147483648
  %v3671 = vxor.u32 %v3655, 2147483648
  %v3672 = vmul.f32 %v3670, 1.442695
  %v3673 = vpow.pop %v3672
  %v3674 = vmul.f32 %v3671, 1.442695
  %v3675 = vpow.pop %v3674
  %v3676 = vadd.f32 %v3673, 1.0
  %v3677 = vadd.f32 %v3675, 1.0
  %v3678 = vrcp.pop %v3676
  %v3679 = vmul.f32 1.0, %v3678
  %v3680 = vrcp.pop %v3677
  %v3681 = vmul.f32 1.0, %v3680
  %v3682 = vtanh.pop %v3656
  %v3683 = vtanh.pop %v3657
  %v3684 = vmul.f32 %v3679, %v3424
  %v3685 = vmul.f32 %v3681, %v3425
  %v3686 = vmul.f32 %v3667, %v3682
  %v3687 = vmul.f32 %v3669, %v3683
  %v3688 = vadd.f32 %v3684, %v3686
  %v3689 = vadd.f32 %v3685, %v3687
  %v3690 = vld [vmem:[%s4] sm:$0xff]
  %v3691 = vld [vmem:[%s4 + $0x8] sm:$0xff]
  %v3692 = vld [vmem:[%s4 + $0x10] sm:$0xff]
  %v3693 = vld [vmem:[%s4 + $0x18] sm:$0xff]
  %v3694 = vld [vmem:[%s4 + $0x20] sm:$0xff]
  %v3695 = vld [vmem:[%s4 + $0x28] sm:$0xff]
  %v3696 = vld [vmem:[%s4 + $0x30] sm:$0xff]
  %v3697 = vld [vmem:[%s4 + $0x38] sm:$0xff]
  %v3698 = vld [vmem:[%s4 + $0x40] sm:$0xff]
  %v3699 = vld [vmem:[%s4 + $0x48] sm:$0xff]
  %v3700 = vld [vmem:[%s4 + $0x50] sm:$0xff]
  %v3701 = vld [vmem:[%s4 + $0x58] sm:$0xff]
  %v3702 = vld [vmem:[%s4 + $0x60] sm:$0xff]
  %v3703 = vld [vmem:[%s4 + $0x68] sm:$0xff]
  %v3704 = vld [vmem:[%s4 + $0x70] sm:$0xff]
  %v3705 = vld [vmem:[%s4 + $0x78] sm:$0xff]
  %v3706 = vld [vmem:[%s4 + $0x80] sm:$0xff]
  %v3707 = vld [vmem:[%s4 + $0x88] sm:$0xff]
  %v3708 = vld [vmem:[%s4 + $0x90] sm:$0xff]
  %v3709 = vld [vmem:[%s4 + $0x98] sm:$0xff]
  %v3710 = vld [vmem:[%s4 + $0xa0] sm:$0xff]
  %v3711 = vld [vmem:[%s4 + $0xa8] sm:$0xff]
  %v3712 = vld [vmem:[%s4 + $0xb0] sm:$0xff]
  %v3713 = vld [vmem:[%s4 + $0xb8] sm:$0xff]
  %v3714 = vld [vmem:[%s4 + $0xc0] sm:$0xff]
  %v3715 = vld [vmem:[%s4 + $0xc8] sm:$0xff]
  %v3716 = vld [vmem:[%s4 + $0xd0] sm:$0xff]
  %v3717 = vld [vmem:[%s4 + $0xd8] sm:$0xff]
  %v3718 = vld [vmem:[%s4 + $0xe0] sm:$0xff]
  %v3719 = vld [vmem:[%s4 + $0xe8] sm:$0xff]
  %v3720 = vld [vmem:[%s4 + $0xf0] sm:$0xff]
  %v3721 = vld [vmem:[%s4 + $0xf8] sm:$0xff]
  %v3722 = vld [vmem:[%s5] sm:$0x1]
  %v3724 = vlaneseq
  %v3725 = vshrl.u32 %v3724, 7
  %v3726 = vsub.s32 0, %v3725
  %v3727 = vrot.slane %v3722, %v3726
  %3729 = vmatprep.subr.mxu0 0.0
  %3730 = vmatpush1.msra.mxu0 %v3690
  %3731 = vmatprep.subr.mxu0 0.0
  %3732 = vmatpush1.msra.mxu0 %v3691
  %3733 = vmatprep.subr.mxu0 0.0
  %3734 = vmatpush1.msra.mxu0 %v3692
  %3735 = vmatprep.subr.mxu0 0.0
  %3736 = vmatpush1.msra.mxu0 %v3693
  %3737 = vmatprep.subr.mxu0 0.0
  %3738 = vmatpush1.msra.mxu0 %v3694
  %3739 = vmatprep.subr.mxu0 0.0
  %3740 = vmatpush1.msra.mxu0 %v3695
  %3741 = vmatprep.subr.mxu0 0.0
  %3742 = vmatpush1.msra.mxu0 %v3696
  %3743 = vmatprep.subr.mxu0 0.0
  %3744 = vmatpush1.msra.mxu0 %v3697
  %3745 = vmatprep.subr.mxu0 0.0
  %3746 = vmatpush1.msra.mxu0 %v3698
  %3747 = vmatprep.subr.mxu0 0.0
  %3748 = vmatpush1.msra.mxu0 %v3699
  %3749 = vmatprep.subr.mxu0 0.0
  %3750 = vmatpush1.msra.mxu0 %v3700
  %3751 = vmatprep.subr.mxu0 0.0
  %3752 = vmatpush1.msra.mxu0 %v3701
  %3753 = vmatprep.subr.mxu0 0.0
  %3754 = vmatpush1.msra.mxu0 %v3702
  %3755 = vmatprep.subr.mxu0 0.0
  %3756 = vmatpush1.msra.mxu0 %v3703
  %3757 = vmatprep.subr.mxu0 0.0
  %3758 = vmatpush1.msra.mxu0 %v3704
  %3759 = vmatprep.subr.mxu0 0.0
  %3760 = vmatpush1.msra.mxu0 %v3705
  %3761 = vmatprep.subr.mxu0 0.0
  %3762 = vmatpush1.msra.mxu0 %v3706
  %3763 = vmatprep.subr.mxu0 0.0
  %3764 = vmatpush1.msra.mxu0 %v3707
  %3765 = vmatprep.subr.mxu0 0.0
  %3766 = vmatpush1.msra.mxu0 %v3708
  %3767 = vmatprep.subr.mxu0 0.0
  %3768 = vmatpush1.msra.mxu0 %v3709
  %3769 = vmatprep.subr.mxu0 0.0
  %3770 = vmatpush1.msra.mxu0 %v3710
  %3771 = vmatprep.subr.mxu0 0.0
  %3772 = vmatpush1.msra.mxu0 %v3711
  %3773 = vmatprep.subr.mxu0 0.0
  %3774 = vmatpush1.msra.mxu0 %v3712
  %3775 = vmatprep.subr.mxu0 0.0
  %3776 = vmatpush1.msra.mxu0 %v3713
  %3777 = vmatprep.subr.mxu0 0.0
  %3778 = vmatpush1.msra.mxu0 %v3714
  %3779 = vmatprep.subr.mxu0 0.0
  %3780 = vmatpush1.msra.mxu0 %v3715
  %3781 = vmatprep.subr.mxu0 0.0
  %3782 = vmatpush1.msra.mxu0 %v3716
  %3783 = vmatprep.subr.mxu0 0.0
  %3784 = vmatpush1.msra.mxu0 %v3717
  %3785 = vmatprep.subr.mxu0 0.0
  %3786 = vmatpush1.msra.mxu0 %v3718
  %3787 = vmatprep.subr.mxu0 0.0
  %3788 = vmatpush1.msra.mxu0 %v3719
  %3789 = vmatprep.subr.mxu0 0.0
  %3790 = vmatpush1.msra.mxu0 %v3720
  %3791 = vmatprep.subr.mxu0 0.0
  %3792 = vmatpush1.msra.mxu0 %v3721
  %3793 = vmatprep.mubr.f32.mxu0 %v3689
  %3794 = vmatmul.mubr.f32.gmra.mrb[0].mxu0 %v3688
  %v3795 = vpop.f32.mrb[0].mxu0
  %v3796 = vadd.f32 %v3727, %v3795
  %v3797 = vpop.f32.mrb[0].mxu0
  %3798 = vdwg.mxu0
  %3799 = vst [vmem:[%s6] sm:$0xff] %v3796
  // Predicated region
  $region26: #{lstm_language_module_forward.1} parent=0 // pred_check
    _
  $region27: #{lstm_language_module_forward.1} parent=0 // pred_check_branch
    %3801 = sbr.rel (0) target = $region29
  $region28: #{lstm_language_module_forward.1} parent=0 // pred_region
    _
  $region29: #{lstm_language_module_forward.1} parent=0 // pred_fallthru
    _
  // Predicated region
  $region30: #{lstm_language_module_forward.1} parent=0 // pred_check
    _
  $region31: #{lstm_language_module_forward.1} parent=0 // pred_check_branch
    %3803 = sbr.rel (0) target = $region33
  $region32: #{lstm_language_module_forward.1} parent=0 // pred_region
    _
  $region33: #{lstm_language_module_forward.1} parent=0 // pred_fallthru
    _

</llo_original>
